<compile_context>
chip_gen: v6e
topology: v6e:2x2x1
jax: 0.10.0
libtpu: 0.0.40
codegen_flags: <defaults>
</compile_context>

<pallas_src>
import jax
import jax.numpy as jnp
from jax.experimental import pallas as pl
from jax.experimental.pallas import tpu as pltpu

K = 3        # kernel_size
L = 17       # sequence length (hard-coded by the reshape((-1, 1, 17)) in forward)
HID = 16     # hidden channels
CIN = 2
COUT = 2
EPS = 1e-5


def pointsolver_kernel(x_ref, mask_ref, w_in_ref, b_in_ref, w_mid_ref, b_mid_ref,
                       w_out_ref, b_out_ref, gamma_ref, beta_ref, o_ref, act_ref):
    """All 12 convs + ReLUs + skips + 3 BatchNorms in one invocation.

    x_ref    : (R2, 16)  flattened (batch, length) rows, channels padded 2->16,
               zero rows at internal batch boundaries. R2 = B*(L+2) - 2.
    mask_ref : (R2, 1)   1.0 at real rows, 0.0 at batch-boundary halo rows.
    act_ref  : (R2+2, 48) persistent im2col scratch; columns [k*16:(k+1)*16]
               of row r hold the activation of row (r - 1 + k)  (the 3 taps).
    o_ref    : (R2, 2)   conv43 output rows (halo rows dropped by the wrapper).
    """
    R2 = x_ref.shape[0]
    batch = (R2 + 2) // (L + 2)
    inv_n = 1.0 / float(batch * L)          # BatchNorm element count per channel

    # zero once: global halo rows / tap positions that are never written stay 0.
    act_ref[...] = jnp.zeros_like(act_ref)

    # hoisted broadcasts (JAX does not CSE broadcast_in_dim).
    mask_b = jnp.broadcast_to(mask_ref[...], (R2, HID))
    x0 = x_ref[...]
    skip = jnp.broadcast_to(x0[:, 0:1] + x0[:, 1:2], (R2, HID))   # x[:,0,:]+x[:,1,:]

    def store_act(y):
        # Scatter the new (R2, 16) activation into its three tap positions.
        # Replaces the per-layer concatenate-pad of the previous version.
        act_ref[2:R2 + 2, 0:HID] = y              # tap k=0 (reads row l-1)
        act_ref[1:R2 + 1, HID:2 * HID] = y        # tap k=1 (reads row l)
        act_ref[0:R2, 2 * HID:3 * HID] = y        # tap k=2 (reads row l+1)

    def conv_relu(w2d, b):
        # One im2col matmul per layer: (R2, 48) @ (48, 16).
        col = act_ref[1:R2 + 1, :]
        y = jnp.dot(col, w2d, preferred_element_type=jnp.float32) + b
        return jnp.maximum(y, 0.0) * mask_b       # re-zero halo rows

    def bn_skip(gamma, beta):
        # Training-mode BatchNorm over the B*L real rows + skip addition.
        a = act_ref[1:R2 + 1, HID:2 * HID]        # current activation (center tap)
        mean = jnp.sum(a, axis=0, keepdims=True) * inv_n     # halo rows are zero
        d = a - mean
        var = jnp.sum(mask_b * d * d, axis=0, keepdims=True) * inv_n
        inv = jax.lax.rsqrt(var + EPS)
        return mask_b * (d * inv * gamma + beta) + skip

    store_act(x0)
    # block 1
    store_act(conv_relu(w_in_ref[...], b_in_ref[...]))        # conv11
    store_act(conv_relu(w_mid_ref[0], b_mid_ref[0]))          # conv12
    store_act(conv_relu(w_mid_ref[1], b_mid_ref[1]))          # conv13
    store_act(bn_skip(gamma_ref[0], beta_ref[0]))             # bn1 (+ skip)
    # block 2
    store_act(conv_relu(w_mid_ref[2], b_mid_ref[2]))          # conv21
    store_act(conv_relu(w_mid_ref[3], b_mid_ref[3]))          # conv22
    store_act(conv_relu(w_mid_ref[4], b_mid_ref[4]))          # conv23
    store_act(bn_skip(gamma_ref[1], beta_ref[1]))             # bn2 (+ skip)
    # block 3
    store_act(conv_relu(w_mid_ref[5], b_mid_ref[5]))          # conv31
    store_act(conv_relu(w_mid_ref[6], b_mid_ref[6]))          # conv32
    store_act(conv_relu(w_mid_ref[7], b_mid_ref[7]))          # conv33
    store_act(bn_skip(gamma_ref[2], beta_ref[2]))             # bn3 (+ skip)
    # block 4
    store_act(conv_relu(w_mid_ref[8], b_mid_ref[8]))          # conv41
    store_act(conv_relu(w_mid_ref[9], b_mid_ref[9]))          # conv42
    # conv43 (16 -> 2) + relu, straight to the output (halo rows dropped later).
    col = act_ref[1:R2 + 1, :]
    o_ref[...] = jnp.maximum(
        jnp.dot(col, w_out_ref[...], preferred_element_type=jnp.float32)
        + b_out_ref[...], 0.0)


@jax.jit
def pointsolver_forward(x_ncl, params):
    """x_ncl: (B, Cin=2, L=17) in PyTorch NCL layout. Returns (B, Cout=2, L)."""
    x = x_ncl.astype(jnp.float32)
    B = x.shape[0]
    R = B * (L + 2)                               # flattened, per-batch-haloed rows
    R2 = R - 2

    # (B, C, L) -> channels-last, pad channels 2->16, insert per-batch halo rows,
    # flatten (batch, length) onto the sublane axis, drop the 2 global halo rows.
    x_cl = jnp.transpose(x, (0, 2, 1))                              # (B, L, 2)
    x_cl = jnp.pad(x_cl, ((0, 0), (1, 1), (0, HID - CIN)))          # (B, L+2, 16)
    x_rows = x_cl.reshape(R, HID)[1:R - 1]                          # (R2, 16)

    # 1.0 at real sequence rows, 0.0 at batch-boundary halo rows.
    j = jnp.arange(L + 2)
    row_ok = ((j > 0) & (j < L + 1)).astype(jnp.float32)            # (L+2,)
    mask = jnp.tile(row_ok, (B,))[1:R - 1].reshape(R2, 1)           # (R2, 1)

    # im2col weight layout (K*16, Cout); conv11's Cin is zero-padded 2->16.
    w_in2d = jnp.pad(params['w_in'],
                     ((0, 0), (0, HID - CIN), (0, 0))).reshape(K * HID, HID)
    w_mid2d = params['w_mid'].reshape(10, K * HID, HID)
    w_out2d = params['w_out'].reshape(K * HID, COUT)
    b_in2 = params['b_in'].reshape(1, HID)
    b_mid2 = params['b_mid'].reshape(10, 1, HID)
    b_out2 = params['b_out'].reshape(1, COUT)
    gamma2 = params['gamma'].reshape(3, 1, HID)
    beta2 = params['beta'].reshape(3, 1, HID)

    operands = (x_rows, mask, w_in2d, b_in2, w_mid2d, b_mid2,
                w_out2d, b_out2, gamma2, beta2)

    flops = 2 * R2 * (K * HID) * HID * 11 + 2 * R2 * (K * HID) * COUT
    bytes_acc = 4 * (sum(int(op.size) for op in operands) + R2 * COUT)

    out = pl.pallas_call(
        pointsolver_kernel,
        out_shape=jax.ShapeDtypeStruct((R2, COUT), jnp.float32),
        in_specs=[pl.BlockSpec(memory_space=pltpu.MemorySpace.VMEM)] * len(operands),
        out_specs=pl.BlockSpec(memory_space=pltpu.MemorySpace.VMEM),
        scratch_shapes=[pltpu.VMEM((R, K * HID), jnp.float32)],
        cost_estimate=pl.CostEstimate(flops=flops, transcendentals=3 * HID,
                                      bytes_accessed=bytes_acc),
    )(*operands)

    # (R2, 2) -> (B, 2, L): re-insert the 2 global halo rows, un-flatten, drop halos.
    out = jnp.pad(out, ((1, 1), (0, 0))).reshape(B, L + 2, COUT)[:, 1:L + 1, :]
    return jnp.transpose(out, (0, 2, 1))


def init_params(key):
    """Deterministic PyTorch-style init: U(-1/sqrt(Cin*K), 1/sqrt(Cin*K)).

    Weight layout is (K, Cin, Cout) == PyTorch Conv1d weight (Cout, Cin, K)
    transposed; tap k reads sequence position l + k - 1.
    """
    def conv_init(k, cin, cout):
        k1, k2 = jax.random.split(k)
        bound = 1.0 / (cin * K) ** 0.5
        w = jax.random.uniform(k1, (K, cin, cout), jnp.float32, -bound, bound)
        b = jax.random.uniform(k2, (cout,), jnp.float32, -bound, bound)
        return w, b

    keys = jax.random.split(key, 12)
    w_in, b_in = conv_init(keys[0], CIN, HID)
    w_mid, b_mid = [], []
    for i in range(10):                                      # conv12..conv42 (16->16)
        w, b = conv_init(keys[1 + i], HID, HID)
        w_mid.append(w)
        b_mid.append(b)
    w_out, b_out = conv_init(keys[11], HID, COUT)
    return dict(
        w_in=w_in, b_in=b_in,
        w_mid=jnp.stack(w_mid), b_mid=jnp.stack(b_mid),
        w_out=w_out, b_out=b_out,
        gamma=jnp.ones((3, HID), jnp.float32),               # bn1..bn3 weight
        beta=jnp.zeros((3, HID), jnp.float32),               # bn1..bn3 bias
    )


if __name__ == "__main__":
    key = jax.random.PRNGKey(0)
    pkey, xkey = jax.random.split(key)
    params = init_params(pkey)

    B = 2
    x = jax.random.normal(xkey, (B, CIN, L), jnp.float32)    # PyTorch NCL input

    out = pointsolver_forward(x, params)
    out = jax.block_until_ready(out)
    assert out.shape == (B, COUT, L), out.shape
    assert bool(jnp.all(jnp.isfinite(out)))
    print("KERNEL_OK")
</pallas_src>

<mosaic_0001>
module attributes {stable_mosaic.version = 11 : i64} {
  func.func @pointsolver_kernel(%arg0: memref<36x16xf32, #tpu.memory_space<vmem>>, %arg1: memref<36x1xf32, #tpu.memory_space<vmem>>, %arg2: memref<48x16xf32, #tpu.memory_space<vmem>>, %arg3: memref<1x16xf32, #tpu.memory_space<vmem>>, %arg4: memref<10x48x16xf32, #tpu.memory_space<vmem>>, %arg5: memref<10x1x16xf32, #tpu.memory_space<vmem>>, %arg6: memref<48x2xf32, #tpu.memory_space<vmem>>, %arg7: memref<1x2xf32, #tpu.memory_space<vmem>>, %arg8: memref<3x1x16xf32, #tpu.memory_space<vmem>>, %arg9: memref<3x1x16xf32, #tpu.memory_space<vmem>>, %arg10: memref<36x2xf32, #tpu.memory_space<vmem>>, %arg11: memref<38x48xf32, #tpu.memory_space<vmem>>) attributes {dimension_semantics = [], scalar_prefetch = 0 : i64, scratch_operands = 1 : i64, tpu.core_type = #tpu.core_type<tc>} {
    %cst = arith.constant 0.000000e+00 : f32
    %0 = vector.broadcast %cst : f32 to vector<38x48xf32>
    %c0 = arith.constant 0 : index
    %c0_0 = arith.constant 0 : index
    %1 = vector.load %arg11[%c0, %c0_0] : memref<38x48xf32, #tpu.memory_space<vmem>>, vector<38x48xf32>
    tpu.vector_store %arg11[%c0, %c0_0], %0 {strides = array<i32>} : memref<38x48xf32, #tpu.memory_space<vmem>>, vector<38x48xf32>,
    %c0_1 = arith.constant 0 : index
    %c0_2 = arith.constant 0 : index
    %2 = vector.load %arg1[%c0_1, %c0_2] : memref<36x1xf32, #tpu.memory_space<vmem>>, vector<36x1xf32>
    %3 = vector.shape_cast %2 : vector<36x1xf32> to vector<36x1xf32>
    %4 = vector.broadcast %3 : vector<36x1xf32> to vector<36x16xf32>
    %c0_3 = arith.constant 0 : index
    %c0_4 = arith.constant 0 : index
    %5 = vector.load %arg0[%c0_3, %c0_4] : memref<36x16xf32, #tpu.memory_space<vmem>>, vector<36x16xf32>
    %6 = vector.extract_strided_slice %5 {offsets = [0, 0], sizes = [36, 1], strides = [1, 1]} : vector<36x16xf32> to vector<36x1xf32>
    %7 = vector.extract_strided_slice %5 {offsets = [0, 1], sizes = [36, 1], strides = [1, 1]} : vector<36x16xf32> to vector<36x1xf32>
    %8 = arith.addf %6, %7 : vector<36x1xf32>
    %9 = vector.shape_cast %8 : vector<36x1xf32> to vector<36x1xf32>
    %10 = vector.broadcast %9 : vector<36x1xf32> to vector<36x16xf32>
    %c2 = arith.constant 2 : index
    %c0_5 = arith.constant 0 : index
    %11 = vector.load %arg11[%c2, %c0_5] : memref<38x48xf32, #tpu.memory_space<vmem>>, vector<36x16xf32>
    tpu.vector_store %arg11[%c2, %c0_5], %5 {strides = array<i32>} : memref<38x48xf32, #tpu.memory_space<vmem>>, vector<36x16xf32>,
    %c1 = arith.constant 1 : index
    %c16 = arith.constant 16 : index
    %12 = vector.load %arg11[%c1, %c16] : memref<38x48xf32, #tpu.memory_space<vmem>>, vector<36x16xf32>
    tpu.vector_store %arg11[%c1, %c16], %5 {strides = array<i32>} : memref<38x48xf32, #tpu.memory_space<vmem>>, vector<36x16xf32>,
    %c0_6 = arith.constant 0 : index
    %c32 = arith.constant 32 : index
    %13 = vector.load %arg11[%c0_6, %c32] : memref<38x48xf32, #tpu.memory_space<vmem>>, vector<36x16xf32>
    tpu.vector_store %arg11[%c0_6, %c32], %5 {strides = array<i32>} : memref<38x48xf32, #tpu.memory_space<vmem>>, vector<36x16xf32>,
    %c0_7 = arith.constant 0 : index
    %c0_8 = arith.constant 0 : index
    %14 = vector.load %arg2[%c0_7, %c0_8] : memref<48x16xf32, #tpu.memory_space<vmem>>, vector<48x16xf32>
    %c0_9 = arith.constant 0 : index
    %c0_10 = arith.constant 0 : index
    %15 = vector.load %arg3[%c0_9, %c0_10] : memref<1x16xf32, #tpu.memory_space<vmem>>, vector<1x16xf32>
    %c1_11 = arith.constant 1 : index
    %c0_12 = arith.constant 0 : index
    %16 = vector.load %arg11[%c1_11, %c0_12] : memref<38x48xf32, #tpu.memory_space<vmem>>, vector<36x48xf32>
    %cst_13 = arith.constant dense<0.000000e+00> : vector<36x16xf32>
    %17 = tpu.matmul %16, %14, %cst_13 {dimension_numbers = #tpu.dot_dimension_numbers<[1], [0], [0], [1], [0, 0, 1, 1], [], []>} : vector<36x48xf32>, vector<48x16xf32>, vector<36x16xf32> -> vector<36x16xf32>
    %18 = vector.broadcast %15 : vector<1x16xf32> to vector<36x16xf32>
    %19 = arith.addf %17, %18 : vector<36x16xf32>
    %cst_14 = arith.constant 0.000000e+00 : f32
    %20 = vector.broadcast %cst_14 : f32 to vector<36x16xf32>
    %21 = arith.maximumf %19, %20 : vector<36x16xf32>
    %22 = arith.mulf %21, %4 : vector<36x16xf32>
    %c2_15 = arith.constant 2 : index
    %c0_16 = arith.constant 0 : index
    %23 = vector.load %arg11[%c2_15, %c0_16] : memref<38x48xf32, #tpu.memory_space<vmem>>, vector<36x16xf32>
    tpu.vector_store %arg11[%c2_15, %c0_16], %22 {strides = array<i32>} : memref<38x48xf32, #tpu.memory_space<vmem>>, vector<36x16xf32>,
    %c1_17 = arith.constant 1 : index
    %c16_18 = arith.constant 16 : index
    %24 = vector.load %arg11[%c1_17, %c16_18] : memref<38x48xf32, #tpu.memory_space<vmem>>, vector<36x16xf32>
    tpu.vector_store %arg11[%c1_17, %c16_18], %22 {strides = array<i32>} : memref<38x48xf32, #tpu.memory_space<vmem>>, vector<36x16xf32>,
    %c0_19 = arith.constant 0 : index
    %c32_20 = arith.constant 32 : index
    %25 = vector.load %arg11[%c0_19, %c32_20] : memref<38x48xf32, #tpu.memory_space<vmem>>, vector<36x16xf32>
    tpu.vector_store %arg11[%c0_19, %c32_20], %22 {strides = array<i32>} : memref<38x48xf32, #tpu.memory_space<vmem>>, vector<36x16xf32>,
    %c0_21 = arith.constant 0 : index
    %c0_22 = arith.constant 0 : index
    %c0_23 = arith.constant 0 : index
    %26 = vector.load %arg4[%c0_21, %c0_22, %c0_23] : memref<10x48x16xf32, #tpu.memory_space<vmem>>, vector<1x48x16xf32>
    %27 = vector.shape_cast %26 : vector<1x48x16xf32> to vector<48x16xf32>
    %c0_24 = arith.constant 0 : index
    %c0_25 = arith.constant 0 : index
    %c0_26 = arith.constant 0 : index
    %28 = vector.load %arg5[%c0_24, %c0_25, %c0_26] : memref<10x1x16xf32, #tpu.memory_space<vmem>>, vector<1x1x16xf32>
    %29 = vector.shape_cast %28 : vector<1x1x16xf32> to vector<1x16xf32>
    %c1_27 = arith.constant 1 : index
    %c0_28 = arith.constant 0 : index
    %30 = vector.load %arg11[%c1_27, %c0_28] : memref<38x48xf32, #tpu.memory_space<vmem>>, vector<36x48xf32>
    %cst_29 = arith.constant dense<0.000000e+00> : vector<36x16xf32>
    %31 = tpu.matmul %30, %27, %cst_29 {dimension_numbers = #tpu.dot_dimension_numbers<[1], [0], [0], [1], [0, 0, 1, 1], [], []>} : vector<36x48xf32>, vector<48x16xf32>, vector<36x16xf32> -> vector<36x16xf32>
    %32 = vector.broadcast %29 : vector<1x16xf32> to vector<36x16xf32>
    %33 = arith.addf %31, %32 : vector<36x16xf32>
    %cst_30 = arith.constant 0.000000e+00 : f32
    %34 = vector.broadcast %cst_30 : f32 to vector<36x16xf32>
    %35 = arith.maximumf %33, %34 : vector<36x16xf32>
    %36 = arith.mulf %35, %4 : vector<36x16xf32>
    %c2_31 = arith.constant 2 : index
    %c0_32 = arith.constant 0 : index
    %37 = vector.load %arg11[%c2_31, %c0_32] : memref<38x48xf32, #tpu.memory_space<vmem>>, vector<36x16xf32>
    tpu.vector_store %arg11[%c2_31, %c0_32], %36 {strides = array<i32>} : memref<38x48xf32, #tpu.memory_space<vmem>>, vector<36x16xf32>,
    %c1_33 = arith.constant 1 : index
    %c16_34 = arith.constant 16 : index
    %38 = vector.load %arg11[%c1_33, %c16_34] : memref<38x48xf32, #tpu.memory_space<vmem>>, vector<36x16xf32>
    tpu.vector_store %arg11[%c1_33, %c16_34], %36 {strides = array<i32>} : memref<38x48xf32, #tpu.memory_space<vmem>>, vector<36x16xf32>,
    %c0_35 = arith.constant 0 : index
    %c32_36 = arith.constant 32 : index
    %39 = vector.load %arg11[%c0_35, %c32_36] : memref<38x48xf32, #tpu.memory_space<vmem>>, vector<36x16xf32>
    tpu.vector_store %arg11[%c0_35, %c32_36], %36 {strides = array<i32>} : memref<38x48xf32, #tpu.memory_space<vmem>>, vector<36x16xf32>,
    %c1_37 = arith.constant 1 : index
    %c0_38 = arith.constant 0 : index
    %c0_39 = arith.constant 0 : index
    %40 = vector.load %arg4[%c1_37, %c0_38, %c0_39] : memref<10x48x16xf32, #tpu.memory_space<vmem>>, vector<1x48x16xf32>
    %41 = vector.shape_cast %40 : vector<1x48x16xf32> to vector<48x16xf32>
    %c1_40 = arith.constant 1 : index
    %c0_41 = arith.constant 0 : index
    %c0_42 = arith.constant 0 : index
    %42 = vector.load %arg5[%c1_40, %c0_41, %c0_42] : memref<10x1x16xf32, #tpu.memory_space<vmem>>, vector<1x1x16xf32>
    %43 = vector.shape_cast %42 : vector<1x1x16xf32> to vector<1x16xf32>
    %c1_43 = arith.constant 1 : index
    %c0_44 = arith.constant 0 : index
    %44 = vector.load %arg11[%c1_43, %c0_44] : memref<38x48xf32, #tpu.memory_space<vmem>>, vector<36x48xf32>
    %cst_45 = arith.constant dense<0.000000e+00> : vector<36x16xf32>
    %45 = tpu.matmul %44, %41, %cst_45 {dimension_numbers = #tpu.dot_dimension_numbers<[1], [0], [0], [1], [0, 0, 1, 1], [], []>} : vector<36x48xf32>, vector<48x16xf32>, vector<36x16xf32> -> vector<36x16xf32>
    %46 = vector.broadcast %43 : vector<1x16xf32> to vector<36x16xf32>
    %47 = arith.addf %45, %46 : vector<36x16xf32>
    %cst_46 = arith.constant 0.000000e+00 : f32
    %48 = vector.broadcast %cst_46 : f32 to vector<36x16xf32>
    %49 = arith.maximumf %47, %48 : vector<36x16xf32>
    %50 = arith.mulf %49, %4 : vector<36x16xf32>
    %c2_47 = arith.constant 2 : index
    %c0_48 = arith.constant 0 : index
    %51 = vector.load %arg11[%c2_47, %c0_48] : memref<38x48xf32, #tpu.memory_space<vmem>>, vector<36x16xf32>
    tpu.vector_store %arg11[%c2_47, %c0_48], %50 {strides = array<i32>} : memref<38x48xf32, #tpu.memory_space<vmem>>, vector<36x16xf32>,
    %c1_49 = arith.constant 1 : index
    %c16_50 = arith.constant 16 : index
    %52 = vector.load %arg11[%c1_49, %c16_50] : memref<38x48xf32, #tpu.memory_space<vmem>>, vector<36x16xf32>
    tpu.vector_store %arg11[%c1_49, %c16_50], %50 {strides = array<i32>} : memref<38x48xf32, #tpu.memory_space<vmem>>, vector<36x16xf32>,
    %c0_51 = arith.constant 0 : index
    %c32_52 = arith.constant 32 : index
    %53 = vector.load %arg11[%c0_51, %c32_52] : memref<38x48xf32, #tpu.memory_space<vmem>>, vector<36x16xf32>
    tpu.vector_store %arg11[%c0_51, %c32_52], %50 {strides = array<i32>} : memref<38x48xf32, #tpu.memory_space<vmem>>, vector<36x16xf32>,
    %c0_53 = arith.constant 0 : index
    %c0_54 = arith.constant 0 : index
    %c0_55 = arith.constant 0 : index
    %54 = vector.load %arg8[%c0_53, %c0_54, %c0_55] : memref<3x1x16xf32, #tpu.memory_space<vmem>>, vector<1x1x16xf32>
    %55 = vector.shape_cast %54 : vector<1x1x16xf32> to vector<1x16xf32>
    %c0_56 = arith.constant 0 : index
    %c0_57 = arith.constant 0 : index
    %c0_58 = arith.constant 0 : index
    %56 = vector.load %arg9[%c0_56, %c0_57, %c0_58] : memref<3x1x16xf32, #tpu.memory_space<vmem>>, vector<1x1x16xf32>
    %57 = vector.shape_cast %56 : vector<1x1x16xf32> to vector<1x16xf32>
    %c1_59 = arith.constant 1 : index
    %c16_60 = arith.constant 16 : index
    %58 = vector.load %arg11[%c1_59, %c16_60] : memref<38x48xf32, #tpu.memory_space<vmem>>, vector<36x16xf32>
    %cst_61 = arith.constant dense<0.000000e+00> : vector<16xf32>
    %59 = vector.multi_reduction <add>, %58, %cst_61 [0] : vector<36x16xf32> to vector<16xf32>
    %60 = vector.shape_cast %59 : vector<16xf32> to vector<1x16xf32>
    %cst_62 = arith.constant 0.0294117648 : f32
    %61 = vector.broadcast %cst_62 : f32 to vector<1x16xf32>
    %62 = arith.mulf %60, %61 : vector<1x16xf32>
    %63 = vector.broadcast %62 : vector<1x16xf32> to vector<36x16xf32>
    %64 = arith.subf %58, %63 : vector<36x16xf32>
    %65 = arith.mulf %4, %64 : vector<36x16xf32>
    %66 = arith.mulf %65, %64 : vector<36x16xf32>
    %cst_63 = arith.constant dense<0.000000e+00> : vector<16xf32>
    %67 = vector.multi_reduction <add>, %66, %cst_63 [0] : vector<36x16xf32> to vector<16xf32>
    %68 = vector.shape_cast %67 : vector<16xf32> to vector<1x16xf32>
    %cst_64 = arith.constant 0.0294117648 : f32
    %69 = vector.broadcast %cst_64 : f32 to vector<1x16xf32>
    %70 = arith.mulf %68, %69 : vector<1x16xf32>
    %cst_65 = arith.constant 9.99999974E-6 : f32
    %71 = vector.broadcast %cst_65 : f32 to vector<1x16xf32>
    %72 = arith.addf %70, %71 : vector<1x16xf32>
    %73 = math.rsqrt %72 : vector<1x16xf32>
    %74 = vector.broadcast %73 : vector<1x16xf32> to vector<36x16xf32>
    %75 = arith.mulf %64, %74 : vector<36x16xf32>
    %76 = vector.broadcast %55 : vector<1x16xf32> to vector<36x16xf32>
    %77 = arith.mulf %75, %76 : vector<36x16xf32>
    %78 = vector.broadcast %57 : vector<1x16xf32> to vector<36x16xf32>
    %79 = arith.addf %77, %78 : vector<36x16xf32>
    %80 = arith.mulf %4, %79 : vector<36x16xf32>
    %81 = arith.addf %80, %10 : vector<36x16xf32>
    %c2_66 = arith.constant 2 : index
    %c0_67 = arith.constant 0 : index
    %82 = vector.load %arg11[%c2_66, %c0_67] : memref<38x48xf32, #tpu.memory_space<vmem>>, vector<36x16xf32>
    tpu.vector_store %arg11[%c2_66, %c0_67], %81 {strides = array<i32>} : memref<38x48xf32, #tpu.memory_space<vmem>>, vector<36x16xf32>,
    %c1_68 = arith.constant 1 : index
    %c16_69 = arith.constant 16 : index
    %83 = vector.load %arg11[%c1_68, %c16_69] : memref<38x48xf32, #tpu.memory_space<vmem>>, vector<36x16xf32>
    tpu.vector_store %arg11[%c1_68, %c16_69], %81 {strides = array<i32>} : memref<38x48xf32, #tpu.memory_space<vmem>>, vector<36x16xf32>,
    %c0_70 = arith.constant 0 : index
    %c32_71 = arith.constant 32 : index
    %84 = vector.load %arg11[%c0_70, %c32_71] : memref<38x48xf32, #tpu.memory_space<vmem>>, vector<36x16xf32>
    tpu.vector_store %arg11[%c0_70, %c32_71], %81 {strides = array<i32>} : memref<38x48xf32, #tpu.memory_space<vmem>>, vector<36x16xf32>,
    %c2_72 = arith.constant 2 : index
    %c0_73 = arith.constant 0 : index
    %c0_74 = arith.constant 0 : index
    %85 = vector.load %arg4[%c2_72, %c0_73, %c0_74] : memref<10x48x16xf32, #tpu.memory_space<vmem>>, vector<1x48x16xf32>
    %86 = vector.shape_cast %85 : vector<1x48x16xf32> to vector<48x16xf32>
    %c2_75 = arith.constant 2 : index
    %c0_76 = arith.constant 0 : index
    %c0_77 = arith.constant 0 : index
    %87 = vector.load %arg5[%c2_75, %c0_76, %c0_77] : memref<10x1x16xf32, #tpu.memory_space<vmem>>, vector<1x1x16xf32>
    %88 = vector.shape_cast %87 : vector<1x1x16xf32> to vector<1x16xf32>
    %c1_78 = arith.constant 1 : index
    %c0_79 = arith.constant 0 : index
    %89 = vector.load %arg11[%c1_78, %c0_79] : memref<38x48xf32, #tpu.memory_space<vmem>>, vector<36x48xf32>
    %cst_80 = arith.constant dense<0.000000e+00> : vector<36x16xf32>
    %90 = tpu.matmul %89, %86, %cst_80 {dimension_numbers = #tpu.dot_dimension_numbers<[1], [0], [0], [1], [0, 0, 1, 1], [], []>} : vector<36x48xf32>, vector<48x16xf32>, vector<36x16xf32> -> vector<36x16xf32>
    %91 = vector.broadcast %88 : vector<1x16xf32> to vector<36x16xf32>
    %92 = arith.addf %90, %91 : vector<36x16xf32>
    %cst_81 = arith.constant 0.000000e+00 : f32
    %93 = vector.broadcast %cst_81 : f32 to vector<36x16xf32>
    %94 = arith.maximumf %92, %93 : vector<36x16xf32>
    %95 = arith.mulf %94, %4 : vector<36x16xf32>
    %c2_82 = arith.constant 2 : index
    %c0_83 = arith.constant 0 : index
    %96 = vector.load %arg11[%c2_82, %c0_83] : memref<38x48xf32, #tpu.memory_space<vmem>>, vector<36x16xf32>
    tpu.vector_store %arg11[%c2_82, %c0_83], %95 {strides = array<i32>} : memref<38x48xf32, #tpu.memory_space<vmem>>, vector<36x16xf32>,
    %c1_84 = arith.constant 1 : index
    %c16_85 = arith.constant 16 : index
    %97 = vector.load %arg11[%c1_84, %c16_85] : memref<38x48xf32, #tpu.memory_space<vmem>>, vector<36x16xf32>
    tpu.vector_store %arg11[%c1_84, %c16_85], %95 {strides = array<i32>} : memref<38x48xf32, #tpu.memory_space<vmem>>, vector<36x16xf32>,
    %c0_86 = arith.constant 0 : index
    %c32_87 = arith.constant 32 : index
    %98 = vector.load %arg11[%c0_86, %c32_87] : memref<38x48xf32, #tpu.memory_space<vmem>>, vector<36x16xf32>
    tpu.vector_store %arg11[%c0_86, %c32_87], %95 {strides = array<i32>} : memref<38x48xf32, #tpu.memory_space<vmem>>, vector<36x16xf32>,
    %c3 = arith.constant 3 : index
    %c0_88 = arith.constant 0 : index
    %c0_89 = arith.constant 0 : index
    %99 = vector.load %arg4[%c3, %c0_88, %c0_89] : memref<10x48x16xf32, #tpu.memory_space<vmem>>, vector<1x48x16xf32>
    %100 = vector.shape_cast %99 : vector<1x48x16xf32> to vector<48x16xf32>
    %c3_90 = arith.constant 3 : index
    %c0_91 = arith.constant 0 : index
    %c0_92 = arith.constant 0 : index
    %101 = vector.load %arg5[%c3_90, %c0_91, %c0_92] : memref<10x1x16xf32, #tpu.memory_space<vmem>>, vector<1x1x16xf32>
    %102 = vector.shape_cast %101 : vector<1x1x16xf32> to vector<1x16xf32>
    %c1_93 = arith.constant 1 : index
    %c0_94 = arith.constant 0 : index
    %103 = vector.load %arg11[%c1_93, %c0_94] : memref<38x48xf32, #tpu.memory_space<vmem>>, vector<36x48xf32>
    %cst_95 = arith.constant dense<0.000000e+00> : vector<36x16xf32>
    %104 = tpu.matmul %103, %100, %cst_95 {dimension_numbers = #tpu.dot_dimension_numbers<[1], [0], [0], [1], [0, 0, 1, 1], [], []>} : vector<36x48xf32>, vector<48x16xf32>, vector<36x16xf32> -> vector<36x16xf32>
    %105 = vector.broadcast %102 : vector<1x16xf32> to vector<36x16xf32>
    %106 = arith.addf %104, %105 : vector<36x16xf32>
    %cst_96 = arith.constant 0.000000e+00 : f32
    %107 = vector.broadcast %cst_96 : f32 to vector<36x16xf32>
    %108 = arith.maximumf %106, %107 : vector<36x16xf32>
    %109 = arith.mulf %108, %4 : vector<36x16xf32>
    %c2_97 = arith.constant 2 : index
    %c0_98 = arith.constant 0 : index
    %110 = vector.load %arg11[%c2_97, %c0_98] : memref<38x48xf32, #tpu.memory_space<vmem>>, vector<36x16xf32>
    tpu.vector_store %arg11[%c2_97, %c0_98], %109 {strides = array<i32>} : memref<38x48xf32, #tpu.memory_space<vmem>>, vector<36x16xf32>,
    %c1_99 = arith.constant 1 : index
    %c16_100 = arith.constant 16 : index
    %111 = vector.load %arg11[%c1_99, %c16_100] : memref<38x48xf32, #tpu.memory_space<vmem>>, vector<36x16xf32>
    tpu.vector_store %arg11[%c1_99, %c16_100], %109 {strides = array<i32>} : memref<38x48xf32, #tpu.memory_space<vmem>>, vector<36x16xf32>,
    %c0_101 = arith.constant 0 : index
    %c32_102 = arith.constant 32 : index
    %112 = vector.load %arg11[%c0_101, %c32_102] : memref<38x48xf32, #tpu.memory_space<vmem>>, vector<36x16xf32>
    tpu.vector_store %arg11[%c0_101, %c32_102], %109 {strides = array<i32>} : memref<38x48xf32, #tpu.memory_space<vmem>>, vector<36x16xf32>,
    %c4 = arith.constant 4 : index
    %c0_103 = arith.constant 0 : index
    %c0_104 = arith.constant 0 : index
    %113 = vector.load %arg4[%c4, %c0_103, %c0_104] : memref<10x48x16xf32, #tpu.memory_space<vmem>>, vector<1x48x16xf32>
    %114 = vector.shape_cast %113 : vector<1x48x16xf32> to vector<48x16xf32>
    %c4_105 = arith.constant 4 : index
    %c0_106 = arith.constant 0 : index
    %c0_107 = arith.constant 0 : index
    %115 = vector.load %arg5[%c4_105, %c0_106, %c0_107] : memref<10x1x16xf32, #tpu.memory_space<vmem>>, vector<1x1x16xf32>
    %116 = vector.shape_cast %115 : vector<1x1x16xf32> to vector<1x16xf32>
    %c1_108 = arith.constant 1 : index
    %c0_109 = arith.constant 0 : index
    %117 = vector.load %arg11[%c1_108, %c0_109] : memref<38x48xf32, #tpu.memory_space<vmem>>, vector<36x48xf32>
    %cst_110 = arith.constant dense<0.000000e+00> : vector<36x16xf32>
    %118 = tpu.matmul %117, %114, %cst_110 {dimension_numbers = #tpu.dot_dimension_numbers<[1], [0], [0], [1], [0, 0, 1, 1], [], []>} : vector<36x48xf32>, vector<48x16xf32>, vector<36x16xf32> -> vector<36x16xf32>
    %119 = vector.broadcast %116 : vector<1x16xf32> to vector<36x16xf32>
    %120 = arith.addf %118, %119 : vector<36x16xf32>
    %cst_111 = arith.constant 0.000000e+00 : f32
    %121 = vector.broadcast %cst_111 : f32 to vector<36x16xf32>
    %122 = arith.maximumf %120, %121 : vector<36x16xf32>
    %123 = arith.mulf %122, %4 : vector<36x16xf32>
    %c2_112 = arith.constant 2 : index
    %c0_113 = arith.constant 0 : index
    %124 = vector.load %arg11[%c2_112, %c0_113] : memref<38x48xf32, #tpu.memory_space<vmem>>, vector<36x16xf32>
    tpu.vector_store %arg11[%c2_112, %c0_113], %123 {strides = array<i32>} : memref<38x48xf32, #tpu.memory_space<vmem>>, vector<36x16xf32>,
    %c1_114 = arith.constant 1 : index
    %c16_115 = arith.constant 16 : index
    %125 = vector.load %arg11[%c1_114, %c16_115] : memref<38x48xf32, #tpu.memory_space<vmem>>, vector<36x16xf32>
    tpu.vector_store %arg11[%c1_114, %c16_115], %123 {strides = array<i32>} : memref<38x48xf32, #tpu.memory_space<vmem>>, vector<36x16xf32>,
    %c0_116 = arith.constant 0 : index
    %c32_117 = arith.constant 32 : index
    %126 = vector.load %arg11[%c0_116, %c32_117] : memref<38x48xf32, #tpu.memory_space<vmem>>, vector<36x16xf32>
    tpu.vector_store %arg11[%c0_116, %c32_117], %123 {strides = array<i32>} : memref<38x48xf32, #tpu.memory_space<vmem>>, vector<36x16xf32>,
    %c1_118 = arith.constant 1 : index
    %c0_119 = arith.constant 0 : index
    %c0_120 = arith.constant 0 : index
    %127 = vector.load %arg8[%c1_118, %c0_119, %c0_120] : memref<3x1x16xf32, #tpu.memory_space<vmem>>, vector<1x1x16xf32>
    %128 = vector.shape_cast %127 : vector<1x1x16xf32> to vector<1x16xf32>
    %c1_121 = arith.constant 1 : index
    %c0_122 = arith.constant 0 : index
    %c0_123 = arith.constant 0 : index
    %129 = vector.load %arg9[%c1_121, %c0_122, %c0_123] : memref<3x1x16xf32, #tpu.memory_space<vmem>>, vector<1x1x16xf32>
    %130 = vector.shape_cast %129 : vector<1x1x16xf32> to vector<1x16xf32>
    %c1_124 = arith.constant 1 : index
    %c16_125 = arith.constant 16 : index
    %131 = vector.load %arg11[%c1_124, %c16_125] : memref<38x48xf32, #tpu.memory_space<vmem>>, vector<36x16xf32>
    %cst_126 = arith.constant dense<0.000000e+00> : vector<16xf32>
    %132 = vector.multi_reduction <add>, %131, %cst_126 [0] : vector<36x16xf32> to vector<16xf32>
    %133 = vector.shape_cast %132 : vector<16xf32> to vector<1x16xf32>
    %cst_127 = arith.constant 0.0294117648 : f32
    %134 = vector.broadcast %cst_127 : f32 to vector<1x16xf32>
    %135 = arith.mulf %133, %134 : vector<1x16xf32>
    %136 = vector.broadcast %135 : vector<1x16xf32> to vector<36x16xf32>
    %137 = arith.subf %131, %136 : vector<36x16xf32>
    %138 = arith.mulf %4, %137 : vector<36x16xf32>
    %139 = arith.mulf %138, %137 : vector<36x16xf32>
    %cst_128 = arith.constant dense<0.000000e+00> : vector<16xf32>
    %140 = vector.multi_reduction <add>, %139, %cst_128 [0] : vector<36x16xf32> to vector<16xf32>
    %141 = vector.shape_cast %140 : vector<16xf32> to vector<1x16xf32>
    %cst_129 = arith.constant 0.0294117648 : f32
    %142 = vector.broadcast %cst_129 : f32 to vector<1x16xf32>
    %143 = arith.mulf %141, %142 : vector<1x16xf32>
    %cst_130 = arith.constant 9.99999974E-6 : f32
    %144 = vector.broadcast %cst_130 : f32 to vector<1x16xf32>
    %145 = arith.addf %143, %144 : vector<1x16xf32>
    %146 = math.rsqrt %145 : vector<1x16xf32>
    %147 = vector.broadcast %146 : vector<1x16xf32> to vector<36x16xf32>
    %148 = arith.mulf %137, %147 : vector<36x16xf32>
    %149 = vector.broadcast %128 : vector<1x16xf32> to vector<36x16xf32>
    %150 = arith.mulf %148, %149 : vector<36x16xf32>
    %151 = vector.broadcast %130 : vector<1x16xf32> to vector<36x16xf32>
    %152 = arith.addf %150, %151 : vector<36x16xf32>
    %153 = arith.mulf %4, %152 : vector<36x16xf32>
    %154 = arith.addf %153, %10 : vector<36x16xf32>
    %c2_131 = arith.constant 2 : index
    %c0_132 = arith.constant 0 : index
    %155 = vector.load %arg11[%c2_131, %c0_132] : memref<38x48xf32, #tpu.memory_space<vmem>>, vector<36x16xf32>
    tpu.vector_store %arg11[%c2_131, %c0_132], %154 {strides = array<i32>} : memref<38x48xf32, #tpu.memory_space<vmem>>, vector<36x16xf32>,
    %c1_133 = arith.constant 1 : index
    %c16_134 = arith.constant 16 : index
    %156 = vector.load %arg11[%c1_133, %c16_134] : memref<38x48xf32, #tpu.memory_space<vmem>>, vector<36x16xf32>
    tpu.vector_store %arg11[%c1_133, %c16_134], %154 {strides = array<i32>} : memref<38x48xf32, #tpu.memory_space<vmem>>, vector<36x16xf32>,
    %c0_135 = arith.constant 0 : index
    %c32_136 = arith.constant 32 : index
    %157 = vector.load %arg11[%c0_135, %c32_136] : memref<38x48xf32, #tpu.memory_space<vmem>>, vector<36x16xf32>
    tpu.vector_store %arg11[%c0_135, %c32_136], %154 {strides = array<i32>} : memref<38x48xf32, #tpu.memory_space<vmem>>, vector<36x16xf32>,
    %c5 = arith.constant 5 : index
    %c0_137 = arith.constant 0 : index
    %c0_138 = arith.constant 0 : index
    %158 = vector.load %arg4[%c5, %c0_137, %c0_138] : memref<10x48x16xf32, #tpu.memory_space<vmem>>, vector<1x48x16xf32>
    %159 = vector.shape_cast %158 : vector<1x48x16xf32> to vector<48x16xf32>
    %c5_139 = arith.constant 5 : index
    %c0_140 = arith.constant 0 : index
    %c0_141 = arith.constant 0 : index
    %160 = vector.load %arg5[%c5_139, %c0_140, %c0_141] : memref<10x1x16xf32, #tpu.memory_space<vmem>>, vector<1x1x16xf32>
    %161 = vector.shape_cast %160 : vector<1x1x16xf32> to vector<1x16xf32>
    %c1_142 = arith.constant 1 : index
    %c0_143 = arith.constant 0 : index
    %162 = vector.load %arg11[%c1_142, %c0_143] : memref<38x48xf32, #tpu.memory_space<vmem>>, vector<36x48xf32>
    %cst_144 = arith.constant dense<0.000000e+00> : vector<36x16xf32>
    %163 = tpu.matmul %162, %159, %cst_144 {dimension_numbers = #tpu.dot_dimension_numbers<[1], [0], [0], [1], [0, 0, 1, 1], [], []>} : vector<36x48xf32>, vector<48x16xf32>, vector<36x16xf32> -> vector<36x16xf32>
    %164 = vector.broadcast %161 : vector<1x16xf32> to vector<36x16xf32>
    %165 = arith.addf %163, %164 : vector<36x16xf32>
    %cst_145 = arith.constant 0.000000e+00 : f32
    %166 = vector.broadcast %cst_145 : f32 to vector<36x16xf32>
    %167 = arith.maximumf %165, %166 : vector<36x16xf32>
    %168 = arith.mulf %167, %4 : vector<36x16xf32>
    %c2_146 = arith.constant 2 : index
    %c0_147 = arith.constant 0 : index
    %169 = vector.load %arg11[%c2_146, %c0_147] : memref<38x48xf32, #tpu.memory_space<vmem>>, vector<36x16xf32>
    tpu.vector_store %arg11[%c2_146, %c0_147], %168 {strides = array<i32>} : memref<38x48xf32, #tpu.memory_space<vmem>>, vector<36x16xf32>,
    %c1_148 = arith.constant 1 : index
    %c16_149 = arith.constant 16 : index
    %170 = vector.load %arg11[%c1_148, %c16_149] : memref<38x48xf32, #tpu.memory_space<vmem>>, vector<36x16xf32>
    tpu.vector_store %arg11[%c1_148, %c16_149], %168 {strides = array<i32>} : memref<38x48xf32, #tpu.memory_space<vmem>>, vector<36x16xf32>,
    %c0_150 = arith.constant 0 : index
    %c32_151 = arith.constant 32 : index
    %171 = vector.load %arg11[%c0_150, %c32_151] : memref<38x48xf32, #tpu.memory_space<vmem>>, vector<36x16xf32>
    tpu.vector_store %arg11[%c0_150, %c32_151], %168 {strides = array<i32>} : memref<38x48xf32, #tpu.memory_space<vmem>>, vector<36x16xf32>,
    %c6 = arith.constant 6 : index
    %c0_152 = arith.constant 0 : index
    %c0_153 = arith.constant 0 : index
    %172 = vector.load %arg4[%c6, %c0_152, %c0_153] : memref<10x48x16xf32, #tpu.memory_space<vmem>>, vector<1x48x16xf32>
    %173 = vector.shape_cast %172 : vector<1x48x16xf32> to vector<48x16xf32>
    %c6_154 = arith.constant 6 : index
    %c0_155 = arith.constant 0 : index
    %c0_156 = arith.constant 0 : index
    %174 = vector.load %arg5[%c6_154, %c0_155, %c0_156] : memref<10x1x16xf32, #tpu.memory_space<vmem>>, vector<1x1x16xf32>
    %175 = vector.shape_cast %174 : vector<1x1x16xf32> to vector<1x16xf32>
    %c1_157 = arith.constant 1 : index
    %c0_158 = arith.constant 0 : index
    %176 = vector.load %arg11[%c1_157, %c0_158] : memref<38x48xf32, #tpu.memory_space<vmem>>, vector<36x48xf32>
    %cst_159 = arith.constant dense<0.000000e+00> : vector<36x16xf32>
    %177 = tpu.matmul %176, %173, %cst_159 {dimension_numbers = #tpu.dot_dimension_numbers<[1], [0], [0], [1], [0, 0, 1, 1], [], []>} : vector<36x48xf32>, vector<48x16xf32>, vector<36x16xf32> -> vector<36x16xf32>
    %178 = vector.broadcast %175 : vector<1x16xf32> to vector<36x16xf32>
    %179 = arith.addf %177, %178 : vector<36x16xf32>
    %cst_160 = arith.constant 0.000000e+00 : f32
    %180 = vector.broadcast %cst_160 : f32 to vector<36x16xf32>
    %181 = arith.maximumf %179, %180 : vector<36x16xf32>
    %182 = arith.mulf %181, %4 : vector<36x16xf32>
    %c2_161 = arith.constant 2 : index
    %c0_162 = arith.constant 0 : index
    %183 = vector.load %arg11[%c2_161, %c0_162] : memref<38x48xf32, #tpu.memory_space<vmem>>, vector<36x16xf32>
    tpu.vector_store %arg11[%c2_161, %c0_162], %182 {strides = array<i32>} : memref<38x48xf32, #tpu.memory_space<vmem>>, vector<36x16xf32>,
    %c1_163 = arith.constant 1 : index
    %c16_164 = arith.constant 16 : index
    %184 = vector.load %arg11[%c1_163, %c16_164] : memref<38x48xf32, #tpu.memory_space<vmem>>, vector<36x16xf32>
    tpu.vector_store %arg11[%c1_163, %c16_164], %182 {strides = array<i32>} : memref<38x48xf32, #tpu.memory_space<vmem>>, vector<36x16xf32>,
    %c0_165 = arith.constant 0 : index
    %c32_166 = arith.constant 32 : index
    %185 = vector.load %arg11[%c0_165, %c32_166] : memref<38x48xf32, #tpu.memory_space<vmem>>, vector<36x16xf32>
    tpu.vector_store %arg11[%c0_165, %c32_166], %182 {strides = array<i32>} : memref<38x48xf32, #tpu.memory_space<vmem>>, vector<36x16xf32>,
    %c7 = arith.constant 7 : index
    %c0_167 = arith.constant 0 : index
    %c0_168 = arith.constant 0 : index
    %186 = vector.load %arg4[%c7, %c0_167, %c0_168] : memref<10x48x16xf32, #tpu.memory_space<vmem>>, vector<1x48x16xf32>
    %187 = vector.shape_cast %186 : vector<1x48x16xf32> to vector<48x16xf32>
    %c7_169 = arith.constant 7 : index
    %c0_170 = arith.constant 0 : index
    %c0_171 = arith.constant 0 : index
    %188 = vector.load %arg5[%c7_169, %c0_170, %c0_171] : memref<10x1x16xf32, #tpu.memory_space<vmem>>, vector<1x1x16xf32>
    %189 = vector.shape_cast %188 : vector<1x1x16xf32> to vector<1x16xf32>
    %c1_172 = arith.constant 1 : index
    %c0_173 = arith.constant 0 : index
    %190 = vector.load %arg11[%c1_172, %c0_173] : memref<38x48xf32, #tpu.memory_space<vmem>>, vector<36x48xf32>
    %cst_174 = arith.constant dense<0.000000e+00> : vector<36x16xf32>
    %191 = tpu.matmul %190, %187, %cst_174 {dimension_numbers = #tpu.dot_dimension_numbers<[1], [0], [0], [1], [0, 0, 1, 1], [], []>} : vector<36x48xf32>, vector<48x16xf32>, vector<36x16xf32> -> vector<36x16xf32>
    %192 = vector.broadcast %189 : vector<1x16xf32> to vector<36x16xf32>
    %193 = arith.addf %191, %192 : vector<36x16xf32>
    %cst_175 = arith.constant 0.000000e+00 : f32
    %194 = vector.broadcast %cst_175 : f32 to vector<36x16xf32>
    %195 = arith.maximumf %193, %194 : vector<36x16xf32>
    %196 = arith.mulf %195, %4 : vector<36x16xf32>
    %c2_176 = arith.constant 2 : index
    %c0_177 = arith.constant 0 : index
    %197 = vector.load %arg11[%c2_176, %c0_177] : memref<38x48xf32, #tpu.memory_space<vmem>>, vector<36x16xf32>
    tpu.vector_store %arg11[%c2_176, %c0_177], %196 {strides = array<i32>} : memref<38x48xf32, #tpu.memory_space<vmem>>, vector<36x16xf32>,
    %c1_178 = arith.constant 1 : index
    %c16_179 = arith.constant 16 : index
    %198 = vector.load %arg11[%c1_178, %c16_179] : memref<38x48xf32, #tpu.memory_space<vmem>>, vector<36x16xf32>
    tpu.vector_store %arg11[%c1_178, %c16_179], %196 {strides = array<i32>} : memref<38x48xf32, #tpu.memory_space<vmem>>, vector<36x16xf32>,
    %c0_180 = arith.constant 0 : index
    %c32_181 = arith.constant 32 : index
    %199 = vector.load %arg11[%c0_180, %c32_181] : memref<38x48xf32, #tpu.memory_space<vmem>>, vector<36x16xf32>
    tpu.vector_store %arg11[%c0_180, %c32_181], %196 {strides = array<i32>} : memref<38x48xf32, #tpu.memory_space<vmem>>, vector<36x16xf32>,
    %c2_182 = arith.constant 2 : index
    %c0_183 = arith.constant 0 : index
    %c0_184 = arith.constant 0 : index
    %200 = vector.load %arg8[%c2_182, %c0_183, %c0_184] : memref<3x1x16xf32, #tpu.memory_space<vmem>>, vector<1x1x16xf32>
    %201 = vector.shape_cast %200 : vector<1x1x16xf32> to vector<1x16xf32>
    %c2_185 = arith.constant 2 : index
    %c0_186 = arith.constant 0 : index
    %c0_187 = arith.constant 0 : index
    %202 = vector.load %arg9[%c2_185, %c0_186, %c0_187] : memref<3x1x16xf32, #tpu.memory_space<vmem>>, vector<1x1x16xf32>
    %203 = vector.shape_cast %202 : vector<1x1x16xf32> to vector<1x16xf32>
    %c1_188 = arith.constant 1 : index
    %c16_189 = arith.constant 16 : index
    %204 = vector.load %arg11[%c1_188, %c16_189] : memref<38x48xf32, #tpu.memory_space<vmem>>, vector<36x16xf32>
    %cst_190 = arith.constant dense<0.000000e+00> : vector<16xf32>
    %205 = vector.multi_reduction <add>, %204, %cst_190 [0] : vector<36x16xf32> to vector<16xf32>
    %206 = vector.shape_cast %205 : vector<16xf32> to vector<1x16xf32>
    %cst_191 = arith.constant 0.0294117648 : f32
    %207 = vector.broadcast %cst_191 : f32 to vector<1x16xf32>
    %208 = arith.mulf %206, %207 : vector<1x16xf32>
    %209 = vector.broadcast %208 : vector<1x16xf32> to vector<36x16xf32>
    %210 = arith.subf %204, %209 : vector<36x16xf32>
    %211 = arith.mulf %4, %210 : vector<36x16xf32>
    %212 = arith.mulf %211, %210 : vector<36x16xf32>
    %cst_192 = arith.constant dense<0.000000e+00> : vector<16xf32>
    %213 = vector.multi_reduction <add>, %212, %cst_192 [0] : vector<36x16xf32> to vector<16xf32>
    %214 = vector.shape_cast %213 : vector<16xf32> to vector<1x16xf32>
    %cst_193 = arith.constant 0.0294117648 : f32
    %215 = vector.broadcast %cst_193 : f32 to vector<1x16xf32>
    %216 = arith.mulf %214, %215 : vector<1x16xf32>
    %cst_194 = arith.constant 9.99999974E-6 : f32
    %217 = vector.broadcast %cst_194 : f32 to vector<1x16xf32>
    %218 = arith.addf %216, %217 : vector<1x16xf32>
    %219 = math.rsqrt %218 : vector<1x16xf32>
    %220 = vector.broadcast %219 : vector<1x16xf32> to vector<36x16xf32>
    %221 = arith.mulf %210, %220 : vector<36x16xf32>
    %222 = vector.broadcast %201 : vector<1x16xf32> to vector<36x16xf32>
    %223 = arith.mulf %221, %222 : vector<36x16xf32>
    %224 = vector.broadcast %203 : vector<1x16xf32> to vector<36x16xf32>
    %225 = arith.addf %223, %224 : vector<36x16xf32>
    %226 = arith.mulf %4, %225 : vector<36x16xf32>
    %227 = arith.addf %226, %10 : vector<36x16xf32>
    %c2_195 = arith.constant 2 : index
    %c0_196 = arith.constant 0 : index
    %228 = vector.load %arg11[%c2_195, %c0_196] : memref<38x48xf32, #tpu.memory_space<vmem>>, vector<36x16xf32>
    tpu.vector_store %arg11[%c2_195, %c0_196], %227 {strides = array<i32>} : memref<38x48xf32, #tpu.memory_space<vmem>>, vector<36x16xf32>,
    %c1_197 = arith.constant 1 : index
    %c16_198 = arith.constant 16 : index
    %229 = vector.load %arg11[%c1_197, %c16_198] : memref<38x48xf32, #tpu.memory_space<vmem>>, vector<36x16xf32>
    tpu.vector_store %arg11[%c1_197, %c16_198], %227 {strides = array<i32>} : memref<38x48xf32, #tpu.memory_space<vmem>>, vector<36x16xf32>,
    %c0_199 = arith.constant 0 : index
    %c32_200 = arith.constant 32 : index
    %230 = vector.load %arg11[%c0_199, %c32_200] : memref<38x48xf32, #tpu.memory_space<vmem>>, vector<36x16xf32>
    tpu.vector_store %arg11[%c0_199, %c32_200], %227 {strides = array<i32>} : memref<38x48xf32, #tpu.memory_space<vmem>>, vector<36x16xf32>,
    %c8 = arith.constant 8 : index
    %c0_201 = arith.constant 0 : index
    %c0_202 = arith.constant 0 : index
    %231 = vector.load %arg4[%c8, %c0_201, %c0_202] : memref<10x48x16xf32, #tpu.memory_space<vmem>>, vector<1x48x16xf32>
    %232 = vector.shape_cast %231 : vector<1x48x16xf32> to vector<48x16xf32>
    %c8_203 = arith.constant 8 : index
    %c0_204 = arith.constant 0 : index
    %c0_205 = arith.constant 0 : index
    %233 = vector.load %arg5[%c8_203, %c0_204, %c0_205] : memref<10x1x16xf32, #tpu.memory_space<vmem>>, vector<1x1x16xf32>
    %234 = vector.shape_cast %233 : vector<1x1x16xf32> to vector<1x16xf32>
    %c1_206 = arith.constant 1 : index
    %c0_207 = arith.constant 0 : index
    %235 = vector.load %arg11[%c1_206, %c0_207] : memref<38x48xf32, #tpu.memory_space<vmem>>, vector<36x48xf32>
    %cst_208 = arith.constant dense<0.000000e+00> : vector<36x16xf32>
    %236 = tpu.matmul %235, %232, %cst_208 {dimension_numbers = #tpu.dot_dimension_numbers<[1], [0], [0], [1], [0, 0, 1, 1], [], []>} : vector<36x48xf32>, vector<48x16xf32>, vector<36x16xf32> -> vector<36x16xf32>
    %237 = vector.broadcast %234 : vector<1x16xf32> to vector<36x16xf32>
    %238 = arith.addf %236, %237 : vector<36x16xf32>
    %cst_209 = arith.constant 0.000000e+00 : f32
    %239 = vector.broadcast %cst_209 : f32 to vector<36x16xf32>
    %240 = arith.maximumf %238, %239 : vector<36x16xf32>
    %241 = arith.mulf %240, %4 : vector<36x16xf32>
    %c2_210 = arith.constant 2 : index
    %c0_211 = arith.constant 0 : index
    %242 = vector.load %arg11[%c2_210, %c0_211] : memref<38x48xf32, #tpu.memory_space<vmem>>, vector<36x16xf32>
    tpu.vector_store %arg11[%c2_210, %c0_211], %241 {strides = array<i32>} : memref<38x48xf32, #tpu.memory_space<vmem>>, vector<36x16xf32>,
    %c1_212 = arith.constant 1 : index
    %c16_213 = arith.constant 16 : index
    %243 = vector.load %arg11[%c1_212, %c16_213] : memref<38x48xf32, #tpu.memory_space<vmem>>, vector<36x16xf32>
    tpu.vector_store %arg11[%c1_212, %c16_213], %241 {strides = array<i32>} : memref<38x48xf32, #tpu.memory_space<vmem>>, vector<36x16xf32>,
    %c0_214 = arith.constant 0 : index
    %c32_215 = arith.constant 32 : index
    %244 = vector.load %arg11[%c0_214, %c32_215] : memref<38x48xf32, #tpu.memory_space<vmem>>, vector<36x16xf32>
    tpu.vector_store %arg11[%c0_214, %c32_215], %241 {strides = array<i32>} : memref<38x48xf32, #tpu.memory_space<vmem>>, vector<36x16xf32>,
    %c9 = arith.constant 9 : index
    %c0_216 = arith.constant 0 : index
    %c0_217 = arith.constant 0 : index
    %245 = vector.load %arg4[%c9, %c0_216, %c0_217] : memref<10x48x16xf32, #tpu.memory_space<vmem>>, vector<1x48x16xf32>
    %246 = vector.shape_cast %245 : vector<1x48x16xf32> to vector<48x16xf32>
    %c9_218 = arith.constant 9 : index
    %c0_219 = arith.constant 0 : index
    %c0_220 = arith.constant 0 : index
    %247 = vector.load %arg5[%c9_218, %c0_219, %c0_220] : memref<10x1x16xf32, #tpu.memory_space<vmem>>, vector<1x1x16xf32>
    %248 = vector.shape_cast %247 : vector<1x1x16xf32> to vector<1x16xf32>
    %c1_221 = arith.constant 1 : index
    %c0_222 = arith.constant 0 : index
    %249 = vector.load %arg11[%c1_221, %c0_222] : memref<38x48xf32, #tpu.memory_space<vmem>>, vector<36x48xf32>
    %cst_223 = arith.constant dense<0.000000e+00> : vector<36x16xf32>
    %250 = tpu.matmul %249, %246, %cst_223 {dimension_numbers = #tpu.dot_dimension_numbers<[1], [0], [0], [1], [0, 0, 1, 1], [], []>} : vector<36x48xf32>, vector<48x16xf32>, vector<36x16xf32> -> vector<36x16xf32>
    %251 = vector.broadcast %248 : vector<1x16xf32> to vector<36x16xf32>
    %252 = arith.addf %250, %251 : vector<36x16xf32>
    %cst_224 = arith.constant 0.000000e+00 : f32
    %253 = vector.broadcast %cst_224 : f32 to vector<36x16xf32>
    %254 = arith.maximumf %252, %253 : vector<36x16xf32>
    %255 = arith.mulf %254, %4 : vector<36x16xf32>
    %c2_225 = arith.constant 2 : index
    %c0_226 = arith.constant 0 : index
    %256 = vector.load %arg11[%c2_225, %c0_226] : memref<38x48xf32, #tpu.memory_space<vmem>>, vector<36x16xf32>
    tpu.vector_store %arg11[%c2_225, %c0_226], %255 {strides = array<i32>} : memref<38x48xf32, #tpu.memory_space<vmem>>, vector<36x16xf32>,
    %c1_227 = arith.constant 1 : index
    %c16_228 = arith.constant 16 : index
    %257 = vector.load %arg11[%c1_227, %c16_228] : memref<38x48xf32, #tpu.memory_space<vmem>>, vector<36x16xf32>
    tpu.vector_store %arg11[%c1_227, %c16_228], %255 {strides = array<i32>} : memref<38x48xf32, #tpu.memory_space<vmem>>, vector<36x16xf32>,
    %c0_229 = arith.constant 0 : index
    %c32_230 = arith.constant 32 : index
    %258 = vector.load %arg11[%c0_229, %c32_230] : memref<38x48xf32, #tpu.memory_space<vmem>>, vector<36x16xf32>
    tpu.vector_store %arg11[%c0_229, %c32_230], %255 {strides = array<i32>} : memref<38x48xf32, #tpu.memory_space<vmem>>, vector<36x16xf32>,
    %c1_231 = arith.constant 1 : index
    %c0_232 = arith.constant 0 : index
    %259 = vector.load %arg11[%c1_231, %c0_232] : memref<38x48xf32, #tpu.memory_space<vmem>>, vector<36x48xf32>
    %c0_233 = arith.constant 0 : index
    %c0_234 = arith.constant 0 : index
    %260 = vector.load %arg6[%c0_233, %c0_234] : memref<48x2xf32, #tpu.memory_space<vmem>>, vector<48x2xf32>
    %cst_235 = arith.constant dense<0.000000e+00> : vector<36x2xf32>
    %261 = tpu.matmul %259, %260, %cst_235 {dimension_numbers = #tpu.dot_dimension_numbers<[1], [0], [0], [1], [0, 0, 1, 1], [], []>} : vector<36x48xf32>, vector<48x2xf32>, vector<36x2xf32> -> vector<36x2xf32>
    %c0_236 = arith.constant 0 : index
    %c0_237 = arith.constant 0 : index
    %262 = vector.load %arg7[%c0_236, %c0_237] : memref<1x2xf32, #tpu.memory_space<vmem>>, vector<1x2xf32>
    %263 = vector.broadcast %262 : vector<1x2xf32> to vector<36x2xf32>
    %264 = arith.addf %261, %263 : vector<36x2xf32>
    %cst_238 = arith.constant 0.000000e+00 : f32
    %265 = vector.broadcast %cst_238 : f32 to vector<36x2xf32>
    %266 = arith.maximumf %264, %265 : vector<36x2xf32>
    %c0_239 = arith.constant 0 : index
    %c0_240 = arith.constant 0 : index
    %267 = vector.load %arg10[%c0_239, %c0_240] : memref<36x2xf32, #tpu.memory_space<vmem>>, vector<36x2xf32>
    tpu.vector_store %arg10[%c0_239, %c0_240], %266 {strides = array<i32>} : memref<36x2xf32, #tpu.memory_space<vmem>>, vector<36x2xf32>,
    return
  }
}

</mosaic_0001>

<llo_original>
// kernel: tile.8
$region0: #{tile.8}
  #allocation0 [shape = 's32[1]{0}', space=sflag, size = 0x4, scoped, tag = 'scoped memory for tile.8']
  %s0 = inlined_call_operand.vmem [shape: f32[19], index: 0, kind: input, shape index: {}]
  %s1 = inlined_call_operand.vmem [shape: f32[2,19], index: 1, kind: output, shape index: {}]
  // Predicated region
  $region2: #{tile.8} parent=0 // pred_check
    _
  $region3: #{tile.8} parent=0 // pred_check_branch
    %3 = sbr.rel (0) target = $region5
  $region4: #{tile.8} parent=0 // pred_region
    _
  $region5: #{tile.8} parent=0 // pred_fallthru
    _
  %v4 = vld [vmem:[%s0] ss:$0 sm:$0xff]
  %5 = vst [vmem:[%s1] sm:$0x3] %v4

// kernel: tile.9
$region0: #{tile.9}
  %s0 = inlined_call_operand.vmem [shape: f32[2,19], index: 0, kind: input, shape index: {}]
  %s1 = inlined_call_operand.vmem [shape: f32[38], index: 1, kind: output, shape index: {}]
  $region1: #{tile.9} parent=0
    #allocation0 [shape = 'u8[4096]{0}', space=vmem, size = 0x1000, scoped, tag = 'scoped mem for output reshape']
    #allocation1 [shape = 'u8[4096]{0}', space=vmem, size = 0x1000, scoped, tag = 'scoped mem for input reshape']
    %s3 = sshll.u32 1, 2
    %s4 = ssub.s32 %s3, 1
    %v5 = vld [vmem:[%s0] sm:%s4]
    %6 = vst [vmem:[#allocation1] sm:%s4] %v5
    %v7 = vld [vmem:[#allocation1] sm:$0x1]
    %vm8 = vcmask 154624
    %9 = vst.msk [vmem:[#allocation0] sm:$0x1] %vm8, %v7
    %s10 = scalar_lea.vmem [#allocation1], 1
    %v11 = vld [vmem:[%s10] sm:$0x1]
    %12 = vrot.lane.b32.xlu0 %v11, 19
    %v13 = vpop.permute.xlu0 %12
    %vm14 = vcmask 310424
    %15 = vst.msk [vmem:[#allocation0] sm:$0x1] %vm14, %v13
    %s17 = sshll.u32 1, 1
    %s18 = ssub.s32 %s17, 1
    %v20 = vld [vmem:[#allocation0] sm:%s18]
    %s21 = sshll.u32 1, 1
    %s22 = ssub.s32 %s21, 1
    %23 = vst [vmem:[%s1] sm:%s22] %v20

// kernel: pointsolver_forward.1
$region0: #{pointsolver_forward.1}
  #allocation0 [shape = 'u32[]', space=smem, size = 0x4, offset = 0x4, fixed_abs, tag = 'smem constant byte address 0x4 - core index']
  #allocation1 [shape = 'u32[144,128]{1,0:T(1,128)}', space=vmem, size = 0x12000, scoped, tag = 'internal scratch']
  #allocation2 [shape = 'f32[38,48]{1,0:T(8,128)}', space=vmem, size = 0x5000, scoped, tag = 'scratch operand']
  %s0 = inlined_call_operand.vmem [shape: f32[36,16], index: 0, kind: input, shape index: {}]
  %s1 = inlined_call_operand.vmem [shape: f32[36,1], index: 1, kind: input, shape index: {}]
  %s2 = inlined_call_operand.vmem [shape: f32[48,16], index: 2, kind: input, shape index: {}]
  %s3 = inlined_call_operand.vmem [shape: f32[1,16], index: 3, kind: input, shape index: {}]
  %s4 = inlined_call_operand.vmem [shape: f32[10,48,16], index: 4, kind: input, shape index: {}]
  %s5 = inlined_call_operand.vmem [shape: f32[10,1,16], index: 5, kind: input, shape index: {}]
  %s6 = inlined_call_operand.vmem [shape: f32[48,2], index: 6, kind: input, shape index: {}]
  %s7 = inlined_call_operand.vmem [shape: f32[1,2], index: 7, kind: input, shape index: {}]
  %s8 = inlined_call_operand.vmem [shape: f32[3,1,16], index: 8, kind: input, shape index: {}]
  %s9 = inlined_call_operand.vmem [shape: f32[3,1,16], index: 9, kind: input, shape index: {}]
  %s10 = inlined_call_operand.vmem [shape: f32[36,2], index: 10, kind: output, shape index: {}]
  %s11 = sld [smem:[#allocation0]]
  $region50: #{pointsolver_forward.1} parent=0
    _
  %s13 = ssub.s32 1, %s11
  %s14 = scalar_select 0, %s13, %s11
  // Predicated region
  $region2: #{pointsolver_forward.1} parent=0 // pred_check
    _
  $region3: #{pointsolver_forward.1} parent=0 // pred_check_branch
    %16 = sbr.rel (0) target = $region5
  $region4: #{pointsolver_forward.1} parent=0 // pred_region
    _
  $region5: #{pointsolver_forward.1} parent=0 // pred_fallthru
    _
  // Predicated region
  $region6: #{pointsolver_forward.1} parent=0 // pred_check
    _
  $region7: #{pointsolver_forward.1} parent=0 // pred_check_branch
    %18 = sbr.rel (0) target = $region9
  $region8: #{pointsolver_forward.1} parent=0 // pred_region
    _
  $region9: #{pointsolver_forward.1} parent=0 // pred_fallthru
    _
  // Predicated region
  $region10: #{pointsolver_forward.1} parent=0 // pred_check
    _
  $region11: #{pointsolver_forward.1} parent=0 // pred_check_branch
    %20 = sbr.rel (0) target = $region13
  $region12: #{pointsolver_forward.1} parent=0 // pred_region
    _
  $region13: #{pointsolver_forward.1} parent=0 // pred_fallthru
    _
  // Predicated region
  $region14: #{pointsolver_forward.1} parent=0 // pred_check
    _
  $region15: #{pointsolver_forward.1} parent=0 // pred_check_branch
    %22 = sbr.rel (0) target = $region17
  $region16: #{pointsolver_forward.1} parent=0 // pred_region
    _
  $region17: #{pointsolver_forward.1} parent=0 // pred_fallthru
    _
  // Predicated region
  $region18: #{pointsolver_forward.1} parent=0 // pred_check
    _
  $region19: #{pointsolver_forward.1} parent=0 // pred_check_branch
    %24 = sbr.rel (0) target = $region21
  $region20: #{pointsolver_forward.1} parent=0 // pred_region
    _
  $region21: #{pointsolver_forward.1} parent=0 // pred_fallthru
    _
  // Predicated region
  $region22: #{pointsolver_forward.1} parent=0 // pred_check
    _
  $region23: #{pointsolver_forward.1} parent=0 // pred_check_branch
    %26 = sbr.rel (0) target = $region25
  $region24: #{pointsolver_forward.1} parent=0 // pred_region
    _
  $region25: #{pointsolver_forward.1} parent=0 // pred_fallthru
    _
  // Predicated region
  $region26: #{pointsolver_forward.1} parent=0 // pred_check
    _
  $region27: #{pointsolver_forward.1} parent=0 // pred_check_branch
    %28 = sbr.rel (0) target = $region29
  $region28: #{pointsolver_forward.1} parent=0 // pred_region
    _
  $region29: #{pointsolver_forward.1} parent=0 // pred_fallthru
    _
  // Predicated region
  $region30: #{pointsolver_forward.1} parent=0 // pred_check
    _
  $region31: #{pointsolver_forward.1} parent=0 // pred_check_branch
    %30 = sbr.rel (0) target = $region33
  $region32: #{pointsolver_forward.1} parent=0 // pred_region
    _
  $region33: #{pointsolver_forward.1} parent=0 // pred_fallthru
    _
  // Predicated region
  $region34: #{pointsolver_forward.1} parent=0 // pred_check
    _
  $region35: #{pointsolver_forward.1} parent=0 // pred_check_branch
    %32 = sbr.rel (0) target = $region37
  $region36: #{pointsolver_forward.1} parent=0 // pred_region
    _
  $region37: #{pointsolver_forward.1} parent=0 // pred_fallthru
    _
  // Predicated region
  $region38: #{pointsolver_forward.1} parent=0 // pred_check
    _
  $region39: #{pointsolver_forward.1} parent=0 // pred_check_branch
    %34 = sbr.rel (0) target = $region41
  $region40: #{pointsolver_forward.1} parent=0 // pred_region
    _
  $region41: #{pointsolver_forward.1} parent=0 // pred_fallthru
    _
  %vm35 = vcmask 392192
  %36 = vst.msk [vmem:[#allocation2] sm:$0xff] %vm35, 0.0
  %37 = vst.msk [vmem:[#allocation2 + $0x8] sm:$0xff] %vm35, 0.0
  %38 = vst.msk [vmem:[#allocation2 + $0x10] sm:$0xff] %vm35, 0.0
  %39 = vst.msk [vmem:[#allocation2 + $0x18] sm:$0xff] %vm35, 0.0
  %vm40 = vcmask 390144
  %41 = vst.msk [vmem:[#allocation2 + $0x20] sm:$0x3f] %vm40, 0.0
  %v42 = vld [vmem:[%s1] sm:$0xff]
  %v43 = vld [vmem:[%s1 + $0x8] sm:$0xff]
  %v44 = vld [vmem:[%s1 + $0x10] sm:$0xff]
  %v45 = vld [vmem:[%s1 + $0x18] sm:$0xff]
  %v46 = vld [vmem:[%s1 + $0x20] sm:$0xf]
  %48 = vset.pattern.permute.xlu0 0
  %49 = vperm.xlu0 %48, %v42
  %v50 = vpop.permute.xlu0 %49
  %53 = vset.pattern.permute.xlu0 0
  %54 = vperm.xlu0 %53, %v43
  %v55 = vpop.permute.xlu0 %54
  %58 = vset.pattern.permute.xlu0 0
  %59 = vperm.xlu0 %58, %v44
  %v60 = vpop.permute.xlu0 %59
  %63 = vset.pattern.permute.xlu0 0
  %64 = vperm.xlu0 %63, %v45
  %v65 = vpop.permute.xlu0 %64
  %68 = vset.pattern.permute.xlu0 0
  %69 = vperm.xlu0 %68, %v46
  %v70 = vpop.permute.xlu0 %69
  %v72 = vld [vmem:[%s0] sm:$0xff]
  %v73 = vld [vmem:[%s0 + $0x8] sm:$0xff]
  %v74 = vld [vmem:[%s0 + $0x10] sm:$0xff]
  %v75 = vld [vmem:[%s0 + $0x18] sm:$0xff]
  %v76 = vld [vmem:[%s0 + $0x20] sm:$0xf]
  %82 = vrot.lane.b32.xlu0 %v72, 127
  %v83 = vpop.permute.xlu0 %82
  %84 = vrot.lane.b32.xlu0 %v73, 127
  %v85 = vpop.permute.xlu0 %84
  %86 = vrot.lane.b32.xlu0 %v74, 127
  %v87 = vpop.permute.xlu0 %86
  %88 = vrot.lane.b32.xlu0 %v75, 127
  %v89 = vpop.permute.xlu0 %88
  %90 = vrot.lane.b32.xlu0 %v76, 127
  %v91 = vpop.permute.xlu0 %90
  %v97 = vadd.f32 %v72, %v83
  %v98 = vadd.f32 %v73, %v85
  %v99 = vadd.f32 %v74, %v87
  %v100 = vadd.f32 %v75, %v89
  %v101 = vadd.f32 %v76, %v91
  %103 = vset.pattern.permute.xlu0 0
  %104 = vperm.xlu0 %103, %v97
  %v105 = vpop.permute.xlu0 %104
  %108 = vset.pattern.permute.xlu0 0
  %109 = vperm.xlu0 %108, %v98
  %v110 = vpop.permute.xlu0 %109
  %113 = vset.pattern.permute.xlu0 0
  %114 = vperm.xlu0 %113, %v99
  %v115 = vpop.permute.xlu0 %114
  %118 = vset.pattern.permute.xlu0 0
  %119 = vperm.xlu0 %118, %v100
  %v120 = vpop.permute.xlu0 %119
  %123 = vset.pattern.permute.xlu0 0
  %124 = vperm.xlu0 %123, %v101
  %v125 = vpop.permute.xlu0 %124
  %vm127 = vcmask 130048
  %128 = vst.msk [vmem:[#allocation2 + $0x2] sm:$0xff] %vm127, %v72
  %129 = vst.msk [vmem:[#allocation2 + $0xa] sm:$0xff] %vm127, %v73
  %130 = vst.msk [vmem:[#allocation2 + $0x12] sm:$0xff] %vm127, %v74
  %131 = vst.msk [vmem:[#allocation2 + $0x1a] sm:$0xff] %vm127, %v75
  %vm132 = vcmask 125952
  %133 = vst.msk [vmem:[#allocation2 + $0x22] sm:$0xf] %vm132, %v76
  %134 = vrot.lane.b32.xlu0 %v72, 16
  %v135 = vpop.permute.xlu0 %134
  %136 = vrot.lane.b32.xlu0 %v73, 16
  %v137 = vpop.permute.xlu0 %136
  %138 = vrot.lane.b32.xlu0 %v74, 16
  %v139 = vpop.permute.xlu0 %138
  %140 = vrot.lane.b32.xlu0 %v75, 16
  %v141 = vpop.permute.xlu0 %140
  %142 = vrot.lane.b32.xlu0 %v76, 16
  %v143 = vpop.permute.xlu0 %142
  %vm149 = vcmask 261248
  %150 = vst.msk [vmem:[#allocation2 + $0x1] sm:$0xff] %vm149, %v135
  %151 = vst.msk [vmem:[#allocation2 + $0x9] sm:$0xff] %vm149, %v137
  %152 = vst.msk [vmem:[#allocation2 + $0x11] sm:$0xff] %vm149, %v139
  %153 = vst.msk [vmem:[#allocation2 + $0x19] sm:$0xff] %vm149, %v141
  %vm154 = vcmask 257152
  %155 = vst.msk [vmem:[#allocation2 + $0x21] sm:$0xf] %vm154, %v143
  %156 = vrot.lane.b32.xlu0 %v72, 32
  %v157 = vpop.permute.xlu0 %156
  %158 = vrot.lane.b32.xlu0 %v73, 32
  %v159 = vpop.permute.xlu0 %158
  %160 = vrot.lane.b32.xlu0 %v74, 32
  %v161 = vpop.permute.xlu0 %160
  %162 = vrot.lane.b32.xlu0 %v75, 32
  %v163 = vpop.permute.xlu0 %162
  %164 = vrot.lane.b32.xlu0 %v76, 32
  %v165 = vpop.permute.xlu0 %164
  %vm171 = vcmask 392448
  %172 = vst.msk [vmem:[#allocation2] sm:$0xff] %vm171, %v157
  %173 = vst.msk [vmem:[#allocation2 + $0x8] sm:$0xff] %vm171, %v159
  %174 = vst.msk [vmem:[#allocation2 + $0x10] sm:$0xff] %vm171, %v161
  %175 = vst.msk [vmem:[#allocation2 + $0x18] sm:$0xff] %vm171, %v163
  %vm176 = vcmask 388352
  %177 = vst.msk [vmem:[#allocation2 + $0x20] sm:$0xf] %vm176, %v165
  %v178 = vld [vmem:[%s2] sm:$0xff]
  %v179 = vld [vmem:[%s2 + $0x8] sm:$0xff]
  %v180 = vld [vmem:[%s2 + $0x10] sm:$0xff]
  %v181 = vld [vmem:[%s2 + $0x18] sm:$0xff]
  %v182 = vld [vmem:[%s2 + $0x20] sm:$0xff]
  %v183 = vld [vmem:[%s2 + $0x28] sm:$0xff]
  %v184 = vld [vmem:[%s3] sm:$0x1]
  %v185 = vld [vmem:[#allocation2 + $0x1] sm:$0xff]
  %v186 = vld [vmem:[#allocation2 + $0x9] sm:$0xff]
  %v187 = vld [vmem:[#allocation2 + $0x11] sm:$0xff]
  %v188 = vld [vmem:[#allocation2 + $0x19] sm:$0xff]
  %v189 = vld [vmem:[#allocation2 + $0x21] sm:$0xf]
  %v191 = vlaneseq
  %v192 = vshrl.u32 %v191, 7
  %v193 = vsub.s32 0, %v192
  %v194 = vrot.slane %v184, %v193
  %v197 = vsel %vm35, %v185, 0
  %v200 = vsel %vm35, %v186, 0
  %v203 = vsel %vm35, %v187, 0
  %v206 = vsel %vm35, %v188, 0
  %v209 = vsel %vm35, %v189, 0
  %211 = vmatprep.subr.mxu0 0.0
  %212 = vmatpush1.msra.mxu0 0.0
  %213 = vmatprep.subr.mxu0 0.0
  %214 = vmatpush1.msra.mxu0 0.0
  %215 = vmatprep.subr.mxu0 0.0
  %216 = vmatpush1.msra.mxu0 0.0
  %217 = vmatprep.subr.mxu0 0.0
  %218 = vmatpush1.msra.mxu0 0.0
  %219 = vmatprep.subr.mxu0 0.0
  %220 = vmatpush1.msra.mxu0 0.0
  %221 = vmatprep.subr.mxu0 0.0
  %222 = vmatpush1.msra.mxu0 0.0
  %223 = vmatprep.subr.mxu0 0.0
  %224 = vmatpush1.msra.mxu0 0.0
  %225 = vmatprep.subr.mxu0 0.0
  %226 = vmatpush1.msra.mxu0 0.0
  %227 = vmatprep.subr.mxu0 0.0
  %228 = vmatpush1.msra.mxu0 0.0
  %229 = vmatprep.subr.mxu0 0.0
  %230 = vmatpush1.msra.mxu0 0.0
  %231 = vmatprep.subr.mxu0 0.0
  %232 = vmatpush1.msra.mxu0 %v183
  %233 = vmatprep.subr.mxu0 0.0
  %234 = vmatpush1.msra.mxu0 %v182
  %235 = vmatprep.subr.mxu0 0.0
  %236 = vmatpush1.msra.mxu0 %v181
  %237 = vmatprep.subr.mxu0 0.0
  %238 = vmatpush1.msra.mxu0 %v180
  %239 = vmatprep.subr.mxu0 0.0
  %240 = vmatpush1.msra.mxu0 %v179
  %241 = vmatprep.subr.mxu0 0.0
  %242 = vmatpush1.msra.mxu0 %v178
  %243 = vmatprep.subr.mxu0 0.0
  %244 = vmatpush2.msra.mxu0 0.0
  %245 = vmatprep.subr.mxu0 0.0
  %246 = vmatpush2.msra.mxu0 0.0
  %247 = vmatprep.subr.mxu0 0.0
  %248 = vmatpush2.msra.mxu0 0.0
  %249 = vmatprep.subr.mxu0 0.0
  %250 = vmatpush2.msra.mxu0 0.0
  %251 = vmatprep.subr.mxu0 0.0
  %252 = vmatpush2.msra.mxu0 0.0
  %253 = vmatprep.subr.mxu0 0.0
  %254 = vmatpush2.msra.mxu0 0.0
  %255 = vmatprep.subr.mxu0 0.0
  %256 = vmatpush2.msra.mxu0 0.0
  %257 = vmatprep.subr.mxu0 0.0
  %258 = vmatpush2.msra.mxu0 0.0
  %259 = vmatprep.subr.mxu0 0.0
  %260 = vmatpush2.msra.mxu0 0.0
  %261 = vmatprep.subr.mxu0 0.0
  %262 = vmatpush2.msra.mxu0 0.0
  %263 = vmatprep.subr.mxu0 0.0
  %264 = vmatpush2.msra.mxu0 0.0
  %265 = vmatprep.subr.mxu0 0.0
  %266 = vmatpush2.msra.mxu0 0.0
  %267 = vmatprep.subr.mxu0 0.0
  %268 = vmatpush2.msra.mxu0 0.0
  %269 = vmatprep.subr.mxu0 0.0
  %270 = vmatpush2.msra.mxu0 0.0
  %271 = vmatprep.subr.mxu0 0.0
  %272 = vmatpush2.msra.mxu0 0.0
  %273 = vmatprep.subr.mxu0 0.0
  %274 = vmatpush2.msra.mxu0 0.0
  %275 = vmatprep.mubr.f32.mxu0 0.0
  %276 = vmatmul.mubr.f32.gmra.mxu0 %v197
  %v277 = vpop.f32.mrf.mxu0
  %v278 = vadd.f32 %v194, %v277
  %v279 = vpop.f32.mrf.mxu0
  %280 = vmatprep.mubr.f32.mxu0 0.0
  %281 = vmatmul.mubr.f32.gmra.mxu0 %v200
  %v282 = vpop.f32.mrf.mxu0
  %v283 = vadd.f32 %v194, %v282
  %v284 = vpop.f32.mrf.mxu0
  %285 = vmatprep.mubr.f32.mxu0 0.0
  %286 = vmatmul.mubr.f32.gmra.mxu0 %v203
  %v287 = vpop.f32.mrf.mxu0
  %v288 = vadd.f32 %v194, %v287
  %v289 = vpop.f32.mrf.mxu0
  %290 = vmatprep.mubr.f32.mxu0 0.0
  %291 = vmatmul.mubr.f32.gmra.mxu0 %v206
  %v292 = vpop.f32.mrf.mxu0
  %v293 = vadd.f32 %v194, %v292
  %v294 = vpop.f32.mrf.mxu0
  %295 = vmatprep.mubr.f32.mxu0 0.0
  %296 = vmatmul.mubr.f32.gmra.mxu0 %v209
  %v297 = vpop.f32.mrf.mxu0
  %v298 = vadd.f32 %v194, %v297
  %v299 = vpop.f32.mrf.mxu0
  %300 = vdwg.mxu0
  %v301 = vmax.f32 %v278, 0.0
  %v302 = vmax.f32 %v283, 0.0
  %v303 = vmax.f32 %v288, 0.0
  %v304 = vmax.f32 %v293, 0.0
  %v305 = vmax.f32 %v298, 0.0
  %v306 = vmul.f32 %v301, %v50
  %v307 = vmul.f32 %v302, %v55
  %v308 = vmul.f32 %v303, %v60
  %v309 = vmul.f32 %v304, %v65
  %v310 = vmul.f32 %v305, %v70
  %311 = vst.msk [vmem:[#allocation2 + $0x2] sm:$0xff] %vm127, %v306
  %312 = vst.msk [vmem:[#allocation2 + $0xa] sm:$0xff] %vm127, %v307
  %313 = vst.msk [vmem:[#allocation2 + $0x12] sm:$0xff] %vm127, %v308
  %314 = vst.msk [vmem:[#allocation2 + $0x1a] sm:$0xff] %vm127, %v309
  %315 = vst.msk [vmem:[#allocation2 + $0x22] sm:$0xf] %vm132, %v310
  %321 = vrot.lane.b32.xlu0 %v306, 16
  %v322 = vpop.permute.xlu0 %321
  %323 = vrot.lane.b32.xlu0 %v307, 16
  %v324 = vpop.permute.xlu0 %323
  %325 = vrot.lane.b32.xlu0 %v308, 16
  %v326 = vpop.permute.xlu0 %325
  %327 = vrot.lane.b32.xlu0 %v309, 16
  %v328 = vpop.permute.xlu0 %327
  %329 = vrot.lane.b32.xlu0 %v310, 16
  %v330 = vpop.permute.xlu0 %329
  %336 = vst.msk [vmem:[#allocation2 + $0x1] sm:$0xff] %vm149, %v322
  %337 = vst.msk [vmem:[#allocation2 + $0x9] sm:$0xff] %vm149, %v324
  %338 = vst.msk [vmem:[#allocation2 + $0x11] sm:$0xff] %vm149, %v326
  %339 = vst.msk [vmem:[#allocation2 + $0x19] sm:$0xff] %vm149, %v328
  %340 = vst.msk [vmem:[#allocation2 + $0x21] sm:$0xf] %vm154, %v330
  %341 = vrot.lane.b32.xlu0 %v306, 32
  %v342 = vpop.permute.xlu0 %341
  %343 = vrot.lane.b32.xlu0 %v307, 32
  %v344 = vpop.permute.xlu0 %343
  %345 = vrot.lane.b32.xlu0 %v308, 32
  %v346 = vpop.permute.xlu0 %345
  %347 = vrot.lane.b32.xlu0 %v309, 32
  %v348 = vpop.permute.xlu0 %347
  %349 = vrot.lane.b32.xlu0 %v310, 32
  %v350 = vpop.permute.xlu0 %349
  %356 = vst.msk [vmem:[#allocation2] sm:$0xff] %vm171, %v342
  %357 = vst.msk [vmem:[#allocation2 + $0x8] sm:$0xff] %vm171, %v344
  %358 = vst.msk [vmem:[#allocation2 + $0x10] sm:$0xff] %vm171, %v346
  %359 = vst.msk [vmem:[#allocation2 + $0x18] sm:$0xff] %vm171, %v348
  %360 = vst.msk [vmem:[#allocation2 + $0x20] sm:$0xf] %vm176, %v350
  %v361 = vld [vmem:[%s4] sm:$0xff]
  %v362 = vld [vmem:[%s4 + $0x8] sm:$0xff]
  %v363 = vld [vmem:[%s4 + $0x10] sm:$0xff]
  %v364 = vld [vmem:[%s4 + $0x18] sm:$0xff]
  %v365 = vld [vmem:[%s4 + $0x20] sm:$0xff]
  %v366 = vld [vmem:[%s4 + $0x28] sm:$0xff]
  %v367 = vld [vmem:[%s5] sm:$0x1]
  %v368 = vld [vmem:[#allocation2 + $0x1] sm:$0xff]
  %v369 = vld [vmem:[#allocation2 + $0x9] sm:$0xff]
  %v370 = vld [vmem:[#allocation2 + $0x11] sm:$0xff]
  %v371 = vld [vmem:[#allocation2 + $0x19] sm:$0xff]
  %v372 = vld [vmem:[#allocation2 + $0x21] sm:$0xf]
  %v374 = vlaneseq
  %v375 = vshrl.u32 %v374, 7
  %v376 = vsub.s32 0, %v375
  %v377 = vrot.slane %v367, %v376
  %v380 = vsel %vm35, %v368, 0
  %v383 = vsel %vm35, %v369, 0
  %v386 = vsel %vm35, %v370, 0
  %v389 = vsel %vm35, %v371, 0
  %v392 = vsel %vm35, %v372, 0
  %394 = vmatprep.subr.mxu0 0.0
  %395 = vmatpush1.msra.mxu0 0.0
  %396 = vmatprep.subr.mxu0 0.0
  %397 = vmatpush1.msra.mxu0 0.0
  %398 = vmatprep.subr.mxu0 0.0
  %399 = vmatpush1.msra.mxu0 0.0
  %400 = vmatprep.subr.mxu0 0.0
  %401 = vmatpush1.msra.mxu0 0.0
  %402 = vmatprep.subr.mxu0 0.0
  %403 = vmatpush1.msra.mxu0 0.0
  %404 = vmatprep.subr.mxu0 0.0
  %405 = vmatpush1.msra.mxu0 0.0
  %406 = vmatprep.subr.mxu0 0.0
  %407 = vmatpush1.msra.mxu0 0.0
  %408 = vmatprep.subr.mxu0 0.0
  %409 = vmatpush1.msra.mxu0 0.0
  %410 = vmatprep.subr.mxu0 0.0
  %411 = vmatpush1.msra.mxu0 0.0
  %412 = vmatprep.subr.mxu0 0.0
  %413 = vmatpush1.msra.mxu0 0.0
  %414 = vmatprep.subr.mxu0 0.0
  %415 = vmatpush1.msra.mxu0 %v366
  %416 = vmatprep.subr.mxu0 0.0
  %417 = vmatpush1.msra.mxu0 %v365
  %418 = vmatprep.subr.mxu0 0.0
  %419 = vmatpush1.msra.mxu0 %v364
  %420 = vmatprep.subr.mxu0 0.0
  %421 = vmatpush1.msra.mxu0 %v363
  %422 = vmatprep.subr.mxu0 0.0
  %423 = vmatpush1.msra.mxu0 %v362
  %424 = vmatprep.subr.mxu0 0.0
  %425 = vmatpush1.msra.mxu0 %v361
  %426 = vmatprep.subr.mxu0 0.0
  %427 = vmatpush2.msra.mxu0 0.0
  %428 = vmatprep.subr.mxu0 0.0
  %429 = vmatpush2.msra.mxu0 0.0
  %430 = vmatprep.subr.mxu0 0.0
  %431 = vmatpush2.msra.mxu0 0.0
  %432 = vmatprep.subr.mxu0 0.0
  %433 = vmatpush2.msra.mxu0 0.0
  %434 = vmatprep.subr.mxu0 0.0
  %435 = vmatpush2.msra.mxu0 0.0
  %436 = vmatprep.subr.mxu0 0.0
  %437 = vmatpush2.msra.mxu0 0.0
  %438 = vmatprep.subr.mxu0 0.0
  %439 = vmatpush2.msra.mxu0 0.0
  %440 = vmatprep.subr.mxu0 0.0
  %441 = vmatpush2.msra.mxu0 0.0
  %442 = vmatprep.subr.mxu0 0.0
  %443 = vmatpush2.msra.mxu0 0.0
  %444 = vmatprep.subr.mxu0 0.0
  %445 = vmatpush2.msra.mxu0 0.0
  %446 = vmatprep.subr.mxu0 0.0
  %447 = vmatpush2.msra.mxu0 0.0
  %448 = vmatprep.subr.mxu0 0.0
  %449 = vmatpush2.msra.mxu0 0.0
  %450 = vmatprep.subr.mxu0 0.0
  %451 = vmatpush2.msra.mxu0 0.0
  %452 = vmatprep.subr.mxu0 0.0
  %453 = vmatpush2.msra.mxu0 0.0
  %454 = vmatprep.subr.mxu0 0.0
  %455 = vmatpush2.msra.mxu0 0.0
  %456 = vmatprep.subr.mxu0 0.0
  %457 = vmatpush2.msra.mxu0 0.0
  %458 = vmatprep.mubr.f32.mxu0 0.0
  %459 = vmatmul.mubr.f32.gmra.mxu0 %v380
  %v460 = vpop.f32.mrf.mxu0
  %v461 = vadd.f32 %v377, %v460
  %v462 = vpop.f32.mrf.mxu0
  %463 = vmatprep.mubr.f32.mxu0 0.0
  %464 = vmatmul.mubr.f32.gmra.mxu0 %v383
  %v465 = vpop.f32.mrf.mxu0
  %v466 = vadd.f32 %v377, %v465
  %v467 = vpop.f32.mrf.mxu0
  %468 = vmatprep.mubr.f32.mxu0 0.0
  %469 = vmatmul.mubr.f32.gmra.mxu0 %v386
  %v470 = vpop.f32.mrf.mxu0
  %v471 = vadd.f32 %v377, %v470
  %v472 = vpop.f32.mrf.mxu0
  %473 = vmatprep.mubr.f32.mxu0 0.0
  %474 = vmatmul.mubr.f32.gmra.mxu0 %v389
  %v475 = vpop.f32.mrf.mxu0
  %v476 = vadd.f32 %v377, %v475
  %v477 = vpop.f32.mrf.mxu0
  %478 = vmatprep.mubr.f32.mxu0 0.0
  %479 = vmatmul.mubr.f32.gmra.mxu0 %v392
  %v480 = vpop.f32.mrf.mxu0
  %v481 = vadd.f32 %v377, %v480
  %v482 = vpop.f32.mrf.mxu0
  %483 = vdwg.mxu0
  %v484 = vmax.f32 %v461, 0.0
  %v485 = vmax.f32 %v466, 0.0
  %v486 = vmax.f32 %v471, 0.0
  %v487 = vmax.f32 %v476, 0.0
  %v488 = vmax.f32 %v481, 0.0
  %v489 = vmul.f32 %v484, %v50
  %v490 = vmul.f32 %v485, %v55
  %v491 = vmul.f32 %v486, %v60
  %v492 = vmul.f32 %v487, %v65
  %v493 = vmul.f32 %v488, %v70
  %494 = vst.msk [vmem:[#allocation2 + $0x2] sm:$0xff] %vm127, %v489
  %495 = vst.msk [vmem:[#allocation2 + $0xa] sm:$0xff] %vm127, %v490
  %496 = vst.msk [vmem:[#allocation2 + $0x12] sm:$0xff] %vm127, %v491
  %497 = vst.msk [vmem:[#allocation2 + $0x1a] sm:$0xff] %vm127, %v492
  %498 = vst.msk [vmem:[#allocation2 + $0x22] sm:$0xf] %vm132, %v493
  %504 = vrot.lane.b32.xlu0 %v489, 16
  %v505 = vpop.permute.xlu0 %504
  %506 = vrot.lane.b32.xlu0 %v490, 16
  %v507 = vpop.permute.xlu0 %506
  %508 = vrot.lane.b32.xlu0 %v491, 16
  %v509 = vpop.permute.xlu0 %508
  %510 = vrot.lane.b32.xlu0 %v492, 16
  %v511 = vpop.permute.xlu0 %510
  %512 = vrot.lane.b32.xlu0 %v493, 16
  %v513 = vpop.permute.xlu0 %512
  %519 = vst.msk [vmem:[#allocation2 + $0x1] sm:$0xff] %vm149, %v505
  %520 = vst.msk [vmem:[#allocation2 + $0x9] sm:$0xff] %vm149, %v507
  %521 = vst.msk [vmem:[#allocation2 + $0x11] sm:$0xff] %vm149, %v509
  %522 = vst.msk [vmem:[#allocation2 + $0x19] sm:$0xff] %vm149, %v511
  %523 = vst.msk [vmem:[#allocation2 + $0x21] sm:$0xf] %vm154, %v513
  %524 = vrot.lane.b32.xlu0 %v489, 32
  %v525 = vpop.permute.xlu0 %524
  %526 = vrot.lane.b32.xlu0 %v490, 32
  %v527 = vpop.permute.xlu0 %526
  %528 = vrot.lane.b32.xlu0 %v491, 32
  %v529 = vpop.permute.xlu0 %528
  %530 = vrot.lane.b32.xlu0 %v492, 32
  %v531 = vpop.permute.xlu0 %530
  %532 = vrot.lane.b32.xlu0 %v493, 32
  %v533 = vpop.permute.xlu0 %532
  %539 = vst.msk [vmem:[#allocation2] sm:$0xff] %vm171, %v525
  %540 = vst.msk [vmem:[#allocation2 + $0x8] sm:$0xff] %vm171, %v527
  %541 = vst.msk [vmem:[#allocation2 + $0x10] sm:$0xff] %vm171, %v529
  %542 = vst.msk [vmem:[#allocation2 + $0x18] sm:$0xff] %vm171, %v531
  %543 = vst.msk [vmem:[#allocation2 + $0x20] sm:$0xf] %vm176, %v533
  %s544 = scalar_lea.vmem %s4, 48
  %v545 = vld [vmem:[%s544] sm:$0xff]
  %v546 = vld [vmem:[%s544 + $0x8] sm:$0xff]
  %v547 = vld [vmem:[%s544 + $0x10] sm:$0xff]
  %v548 = vld [vmem:[%s544 + $0x18] sm:$0xff]
  %v549 = vld [vmem:[%s544 + $0x20] sm:$0xff]
  %v550 = vld [vmem:[%s544 + $0x28] sm:$0xff]
  %s551 = scalar_lea.vmem %s5, 1
  %v552 = vld [vmem:[%s551] sm:$0x1]
  %v553 = vld [vmem:[#allocation2 + $0x1] sm:$0xff]
  %v554 = vld [vmem:[#allocation2 + $0x9] sm:$0xff]
  %v555 = vld [vmem:[#allocation2 + $0x11] sm:$0xff]
  %v556 = vld [vmem:[#allocation2 + $0x19] sm:$0xff]
  %v557 = vld [vmem:[#allocation2 + $0x21] sm:$0xf]
  %v559 = vlaneseq
  %v560 = vshrl.u32 %v559, 7
  %v561 = vsub.s32 0, %v560
  %v562 = vrot.slane %v552, %v561
  %v565 = vsel %vm35, %v553, 0
  %v568 = vsel %vm35, %v554, 0
  %v571 = vsel %vm35, %v555, 0
  %v574 = vsel %vm35, %v556, 0
  %v577 = vsel %vm35, %v557, 0
  %579 = vmatprep.subr.mxu0 0.0
  %580 = vmatpush1.msra.mxu0 0.0
  %581 = vmatprep.subr.mxu0 0.0
  %582 = vmatpush1.msra.mxu0 0.0
  %583 = vmatprep.subr.mxu0 0.0
  %584 = vmatpush1.msra.mxu0 0.0
  %585 = vmatprep.subr.mxu0 0.0
  %586 = vmatpush1.msra.mxu0 0.0
  %587 = vmatprep.subr.mxu0 0.0
  %588 = vmatpush1.msra.mxu0 0.0
  %589 = vmatprep.subr.mxu0 0.0
  %590 = vmatpush1.msra.mxu0 0.0
  %591 = vmatprep.subr.mxu0 0.0
  %592 = vmatpush1.msra.mxu0 0.0
  %593 = vmatprep.subr.mxu0 0.0
  %594 = vmatpush1.msra.mxu0 0.0
  %595 = vmatprep.subr.mxu0 0.0
  %596 = vmatpush1.msra.mxu0 0.0
  %597 = vmatprep.subr.mxu0 0.0
  %598 = vmatpush1.msra.mxu0 0.0
  %599 = vmatprep.subr.mxu0 0.0
  %600 = vmatpush1.msra.mxu0 %v550
  %601 = vmatprep.subr.mxu0 0.0
  %602 = vmatpush1.msra.mxu0 %v549
  %603 = vmatprep.subr.mxu0 0.0
  %604 = vmatpush1.msra.mxu0 %v548
  %605 = vmatprep.subr.mxu0 0.0
  %606 = vmatpush1.msra.mxu0 %v547
  %607 = vmatprep.subr.mxu0 0.0
  %608 = vmatpush1.msra.mxu0 %v546
  %609 = vmatprep.subr.mxu0 0.0
  %610 = vmatpush1.msra.mxu0 %v545
  %611 = vmatprep.subr.mxu0 0.0
  %612 = vmatpush2.msra.mxu0 0.0
  %613 = vmatprep.subr.mxu0 0.0
  %614 = vmatpush2.msra.mxu0 0.0
  %615 = vmatprep.subr.mxu0 0.0
  %616 = vmatpush2.msra.mxu0 0.0
  %617 = vmatprep.subr.mxu0 0.0
  %618 = vmatpush2.msra.mxu0 0.0
  %619 = vmatprep.subr.mxu0 0.0
  %620 = vmatpush2.msra.mxu0 0.0
  %621 = vmatprep.subr.mxu0 0.0
  %622 = vmatpush2.msra.mxu0 0.0
  %623 = vmatprep.subr.mxu0 0.0
  %624 = vmatpush2.msra.mxu0 0.0
  %625 = vmatprep.subr.mxu0 0.0
  %626 = vmatpush2.msra.mxu0 0.0
  %627 = vmatprep.subr.mxu0 0.0
  %628 = vmatpush2.msra.mxu0 0.0
  %629 = vmatprep.subr.mxu0 0.0
  %630 = vmatpush2.msra.mxu0 0.0
  %631 = vmatprep.subr.mxu0 0.0
  %632 = vmatpush2.msra.mxu0 0.0
  %633 = vmatprep.subr.mxu0 0.0
  %634 = vmatpush2.msra.mxu0 0.0
  %635 = vmatprep.subr.mxu0 0.0
  %636 = vmatpush2.msra.mxu0 0.0
  %637 = vmatprep.subr.mxu0 0.0
  %638 = vmatpush2.msra.mxu0 0.0
  %639 = vmatprep.subr.mxu0 0.0
  %640 = vmatpush2.msra.mxu0 0.0
  %641 = vmatprep.subr.mxu0 0.0
  %642 = vmatpush2.msra.mxu0 0.0
  %643 = vmatprep.mubr.f32.mxu0 0.0
  %644 = vmatmul.mubr.f32.gmra.mxu0 %v565
  %v645 = vpop.f32.mrf.mxu0
  %v646 = vadd.f32 %v562, %v645
  %v647 = vpop.f32.mrf.mxu0
  %648 = vmatprep.mubr.f32.mxu0 0.0
  %649 = vmatmul.mubr.f32.gmra.mxu0 %v568
  %v650 = vpop.f32.mrf.mxu0
  %v651 = vadd.f32 %v562, %v650
  %v652 = vpop.f32.mrf.mxu0
  %653 = vmatprep.mubr.f32.mxu0 0.0
  %654 = vmatmul.mubr.f32.gmra.mxu0 %v571
  %v655 = vpop.f32.mrf.mxu0
  %v656 = vadd.f32 %v562, %v655
  %v657 = vpop.f32.mrf.mxu0
  %658 = vmatprep.mubr.f32.mxu0 0.0
  %659 = vmatmul.mubr.f32.gmra.mxu0 %v574
  %v660 = vpop.f32.mrf.mxu0
  %v661 = vadd.f32 %v562, %v660
  %v662 = vpop.f32.mrf.mxu0
  %663 = vmatprep.mubr.f32.mxu0 0.0
  %664 = vmatmul.mubr.f32.gmra.mxu0 %v577
  %v665 = vpop.f32.mrf.mxu0
  %v666 = vadd.f32 %v562, %v665
  %v667 = vpop.f32.mrf.mxu0
  %668 = vdwg.mxu0
  %v669 = vmax.f32 %v646, 0.0
  %v670 = vmax.f32 %v651, 0.0
  %v671 = vmax.f32 %v656, 0.0
  %v672 = vmax.f32 %v661, 0.0
  %v673 = vmax.f32 %v666, 0.0
  %v674 = vmul.f32 %v669, %v50
  %v675 = vmul.f32 %v670, %v55
  %v676 = vmul.f32 %v671, %v60
  %v677 = vmul.f32 %v672, %v65
  %v678 = vmul.f32 %v673, %v70
  %679 = vst.msk [vmem:[#allocation2 + $0x2] sm:$0xff] %vm127, %v674
  %680 = vst.msk [vmem:[#allocation2 + $0xa] sm:$0xff] %vm127, %v675
  %681 = vst.msk [vmem:[#allocation2 + $0x12] sm:$0xff] %vm127, %v676
  %682 = vst.msk [vmem:[#allocation2 + $0x1a] sm:$0xff] %vm127, %v677
  %683 = vst.msk [vmem:[#allocation2 + $0x22] sm:$0xf] %vm132, %v678
  %689 = vrot.lane.b32.xlu0 %v674, 16
  %v690 = vpop.permute.xlu0 %689
  %691 = vrot.lane.b32.xlu0 %v675, 16
  %v692 = vpop.permute.xlu0 %691
  %693 = vrot.lane.b32.xlu0 %v676, 16
  %v694 = vpop.permute.xlu0 %693
  %695 = vrot.lane.b32.xlu0 %v677, 16
  %v696 = vpop.permute.xlu0 %695
  %697 = vrot.lane.b32.xlu0 %v678, 16
  %v698 = vpop.permute.xlu0 %697
  %704 = vst.msk [vmem:[#allocation2 + $0x1] sm:$0xff] %vm149, %v690
  %705 = vst.msk [vmem:[#allocation2 + $0x9] sm:$0xff] %vm149, %v692
  %706 = vst.msk [vmem:[#allocation2 + $0x11] sm:$0xff] %vm149, %v694
  %707 = vst.msk [vmem:[#allocation2 + $0x19] sm:$0xff] %vm149, %v696
  %708 = vst.msk [vmem:[#allocation2 + $0x21] sm:$0xf] %vm154, %v698
  %709 = vrot.lane.b32.xlu0 %v674, 32
  %v710 = vpop.permute.xlu0 %709
  %711 = vrot.lane.b32.xlu0 %v675, 32
  %v712 = vpop.permute.xlu0 %711
  %713 = vrot.lane.b32.xlu0 %v676, 32
  %v714 = vpop.permute.xlu0 %713
  %715 = vrot.lane.b32.xlu0 %v677, 32
  %v716 = vpop.permute.xlu0 %715
  %717 = vrot.lane.b32.xlu0 %v678, 32
  %v718 = vpop.permute.xlu0 %717
  %724 = vst.msk [vmem:[#allocation2] sm:$0xff] %vm171, %v710
  %725 = vst.msk [vmem:[#allocation2 + $0x8] sm:$0xff] %vm171, %v712
  %726 = vst.msk [vmem:[#allocation2 + $0x10] sm:$0xff] %vm171, %v714
  %727 = vst.msk [vmem:[#allocation2 + $0x18] sm:$0xff] %vm171, %v716
  %728 = vst.msk [vmem:[#allocation2 + $0x20] sm:$0xf] %vm176, %v718
  %v729 = vld [vmem:[%s8] sm:$0x1]
  %v730 = vld [vmem:[%s9] sm:$0x1]
  %v731 = vld [vmem:[#allocation2 + $0x1] sm:$0xff]
  %v732 = vld [vmem:[#allocation2 + $0x9] sm:$0xff]
  %v733 = vld [vmem:[#allocation2 + $0x11] sm:$0xff]
  %v734 = vld [vmem:[#allocation2 + $0x19] sm:$0xff]
  %v735 = vld [vmem:[#allocation2 + $0x21] sm:$0xf]
  %v736 = vsel %vm149, %v731, 0.0
  %v737 = vsel %vm149, %v732, 0.0
  %v738 = vadd.f32 %v736, %v737
  %v739 = vsel %vm149, %v733, 0.0
  %v740 = vadd.f32 %v738, %v739
  %v741 = vsel %vm149, %v734, 0.0
  %v742 = vadd.f32 %v740, %v741
  %v743 = vsel %vm154, %v735, 0.0
  %v744 = vadd.f32 %v742, %v743
  %v745 = vrot.slane %v744, 4
  %v746 = vadd.f32 %v744, %v745
  %v747 = vrot.slane %v746, 2
  %v748 = vadd.f32 %v746, %v747
  %v749 = vrot.slane %v748, 1
  %v750 = vadd.f32 %v748, %v749
  %v751 = vmul.f32 %v750, 0.029411765
  %v752 = vsub.f32 %v731, %v751
  %v753 = vsub.f32 %v732, %v751
  %v754 = vsub.f32 %v733, %v751
  %v755 = vsub.f32 %v734, %v751
  %v756 = vsub.f32 %v735, %v751
  %v757 = vmul.f32 %v50, %v752
  %v758 = vmul.f32 %v55, %v753
  %v759 = vmul.f32 %v60, %v754
  %v760 = vmul.f32 %v65, %v755
  %v761 = vmul.f32 %v70, %v756
  %v762 = vmul.f32 %v757, %v752
  %v763 = vmul.f32 %v758, %v753
  %v764 = vmul.f32 %v759, %v754
  %v765 = vmul.f32 %v760, %v755
  %v766 = vmul.f32 %v761, %v756
  %v767 = vsel %vm149, %v762, 0.0
  %v768 = vsel %vm149, %v763, 0.0
  %v769 = vadd.f32 %v767, %v768
  %v770 = vsel %vm149, %v764, 0.0
  %v771 = vadd.f32 %v769, %v770
  %v772 = vsel %vm149, %v765, 0.0
  %v773 = vadd.f32 %v771, %v772
  %v774 = vsel %vm154, %v766, 0.0
  %v775 = vadd.f32 %v773, %v774
  %v776 = vrot.slane %v775, 4
  %v777 = vadd.f32 %v775, %v776
  %v778 = vrot.slane %v777, 2
  %v779 = vadd.f32 %v777, %v778
  %v780 = vrot.slane %v779, 1
  %v781 = vadd.f32 %v779, %v780
  %v782 = vmul.f32 %v781, 0.029411765
  %v783 = vadd.f32 %v782, 1e-05
  %v784 = vrsqrt.pop %v783
  %v785 = vmul.f32 %v752, %v784
  %v786 = vmul.f32 %v753, %v784
  %v787 = vmul.f32 %v754, %v784
  %v788 = vmul.f32 %v755, %v784
  %v789 = vmul.f32 %v756, %v784
  %v791 = vlaneseq
  %v792 = vshrl.u32 %v791, 7
  %v793 = vsub.s32 0, %v792
  %v794 = vrot.slane %v729, %v793
  %795 = vrot.lane.b32.xlu0 %v794, 16
  %v796 = vpop.permute.xlu0 %795
  %v798 = vmul.f32 %v785, %v796
  %v799 = vmul.f32 %v786, %v796
  %v800 = vmul.f32 %v787, %v796
  %v801 = vmul.f32 %v788, %v796
  %v802 = vmul.f32 %v789, %v796
  %v804 = vlaneseq
  %v805 = vshrl.u32 %v804, 7
  %v806 = vsub.s32 0, %v805
  %v807 = vrot.slane %v730, %v806
  %808 = vrot.lane.b32.xlu0 %v807, 16
  %v809 = vpop.permute.xlu0 %808
  %v811 = vadd.f32 %v798, %v809
  %v812 = vadd.f32 %v799, %v809
  %v813 = vadd.f32 %v800, %v809
  %v814 = vadd.f32 %v801, %v809
  %v815 = vadd.f32 %v802, %v809
  %v816 = vmul.f32 %v50, %v811
  %v817 = vmul.f32 %v55, %v812
  %v818 = vmul.f32 %v60, %v813
  %v819 = vmul.f32 %v65, %v814
  %v820 = vmul.f32 %v70, %v815
  %v821 = vadd.f32 %v816, %v105
  %v822 = vadd.f32 %v817, %v110
  %v823 = vadd.f32 %v818, %v115
  %v824 = vadd.f32 %v819, %v120
  %v825 = vadd.f32 %v820, %v125
  %831 = vrot.lane.b32.xlu0 %v821, 112
  %v832 = vpop.permute.xlu0 %831
  %833 = vrot.lane.b32.xlu0 %v822, 112
  %v834 = vpop.permute.xlu0 %833
  %835 = vrot.lane.b32.xlu0 %v823, 112
  %v836 = vpop.permute.xlu0 %835
  %837 = vrot.lane.b32.xlu0 %v824, 112
  %v838 = vpop.permute.xlu0 %837
  %839 = vrot.lane.b32.xlu0 %v825, 112
  %v840 = vpop.permute.xlu0 %839
  %846 = vst.msk [vmem:[#allocation2 + $0x2] sm:$0xff] %vm127, %v832
  %847 = vst.msk [vmem:[#allocation2 + $0xa] sm:$0xff] %vm127, %v834
  %848 = vst.msk [vmem:[#allocation2 + $0x12] sm:$0xff] %vm127, %v836
  %849 = vst.msk [vmem:[#allocation2 + $0x1a] sm:$0xff] %vm127, %v838
  %850 = vst.msk [vmem:[#allocation2 + $0x22] sm:$0xf] %vm132, %v840
  %851 = vst.msk [vmem:[#allocation2 + $0x1] sm:$0xff] %vm149, %v821
  %852 = vst.msk [vmem:[#allocation2 + $0x9] sm:$0xff] %vm149, %v822
  %853 = vst.msk [vmem:[#allocation2 + $0x11] sm:$0xff] %vm149, %v823
  %854 = vst.msk [vmem:[#allocation2 + $0x19] sm:$0xff] %vm149, %v824
  %855 = vst.msk [vmem:[#allocation2 + $0x21] sm:$0xf] %vm154, %v825
  %856 = vrot.lane.b32.xlu0 %v821, 16
  %v857 = vpop.permute.xlu0 %856
  %858 = vrot.lane.b32.xlu0 %v822, 16
  %v859 = vpop.permute.xlu0 %858
  %860 = vrot.lane.b32.xlu0 %v823, 16
  %v861 = vpop.permute.xlu0 %860
  %862 = vrot.lane.b32.xlu0 %v824, 16
  %v863 = vpop.permute.xlu0 %862
  %864 = vrot.lane.b32.xlu0 %v825, 16
  %v865 = vpop.permute.xlu0 %864
  %871 = vst.msk [vmem:[#allocation2] sm:$0xff] %vm171, %v857
  %872 = vst.msk [vmem:[#allocation2 + $0x8] sm:$0xff] %vm171, %v859
  %873 = vst.msk [vmem:[#allocation2 + $0x10] sm:$0xff] %vm171, %v861
  %874 = vst.msk [vmem:[#allocation2 + $0x18] sm:$0xff] %vm171, %v863
  %875 = vst.msk [vmem:[#allocation2 + $0x20] sm:$0xf] %vm176, %v865
  %s876 = scalar_lea.vmem %s4, 96
  %v877 = vld [vmem:[%s876] sm:$0xff]
  %v878 = vld [vmem:[%s876 + $0x8] sm:$0xff]
  %v879 = vld [vmem:[%s876 + $0x10] sm:$0xff]
  %v880 = vld [vmem:[%s876 + $0x18] sm:$0xff]
  %v881 = vld [vmem:[%s876 + $0x20] sm:$0xff]
  %v882 = vld [vmem:[%s876 + $0x28] sm:$0xff]
  %s883 = scalar_lea.vmem %s5, 2
  %v884 = vld [vmem:[%s883] sm:$0x1]
  %v885 = vld [vmem:[#allocation2 + $0x1] sm:$0xff]
  %v886 = vld [vmem:[#allocation2 + $0x9] sm:$0xff]
  %v887 = vld [vmem:[#allocation2 + $0x11] sm:$0xff]
  %v888 = vld [vmem:[#allocation2 + $0x19] sm:$0xff]
  %v889 = vld [vmem:[#allocation2 + $0x21] sm:$0xf]
  %v891 = vlaneseq
  %v892 = vshrl.u32 %v891, 7
  %v893 = vsub.s32 0, %v892
  %v894 = vrot.slane %v884, %v893
  %v897 = vsel %vm35, %v885, 0
  %v900 = vsel %vm35, %v886, 0
  %v903 = vsel %vm35, %v887, 0
  %v906 = vsel %vm35, %v888, 0
  %v909 = vsel %vm35, %v889, 0
  %911 = vmatprep.subr.mxu0 0.0
  %912 = vmatpush1.msra.mxu0 0.0
  %913 = vmatprep.subr.mxu0 0.0
  %914 = vmatpush1.msra.mxu0 0.0
  %915 = vmatprep.subr.mxu0 0.0
  %916 = vmatpush1.msra.mxu0 0.0
  %917 = vmatprep.subr.mxu0 0.0
  %918 = vmatpush1.msra.mxu0 0.0
  %919 = vmatprep.subr.mxu0 0.0
  %920 = vmatpush1.msra.mxu0 0.0
  %921 = vmatprep.subr.mxu0 0.0
  %922 = vmatpush1.msra.mxu0 0.0
  %923 = vmatprep.subr.mxu0 0.0
  %924 = vmatpush1.msra.mxu0 0.0
  %925 = vmatprep.subr.mxu0 0.0
  %926 = vmatpush1.msra.mxu0 0.0
  %927 = vmatprep.subr.mxu0 0.0
  %928 = vmatpush1.msra.mxu0 0.0
  %929 = vmatprep.subr.mxu0 0.0
  %930 = vmatpush1.msra.mxu0 0.0
  %931 = vmatprep.subr.mxu0 0.0
  %932 = vmatpush1.msra.mxu0 %v882
  %933 = vmatprep.subr.mxu0 0.0
  %934 = vmatpush1.msra.mxu0 %v881
  %935 = vmatprep.subr.mxu0 0.0
  %936 = vmatpush1.msra.mxu0 %v880
  %937 = vmatprep.subr.mxu0 0.0
  %938 = vmatpush1.msra.mxu0 %v879
  %939 = vmatprep.subr.mxu0 0.0
  %940 = vmatpush1.msra.mxu0 %v878
  %941 = vmatprep.subr.mxu0 0.0
  %942 = vmatpush1.msra.mxu0 %v877
  %943 = vmatprep.subr.mxu0 0.0
  %944 = vmatpush2.msra.mxu0 0.0
  %945 = vmatprep.subr.mxu0 0.0
  %946 = vmatpush2.msra.mxu0 0.0
  %947 = vmatprep.subr.mxu0 0.0
  %948 = vmatpush2.msra.mxu0 0.0
  %949 = vmatprep.subr.mxu0 0.0
  %950 = vmatpush2.msra.mxu0 0.0
  %951 = vmatprep.subr.mxu0 0.0
  %952 = vmatpush2.msra.mxu0 0.0
  %953 = vmatprep.subr.mxu0 0.0
  %954 = vmatpush2.msra.mxu0 0.0
  %955 = vmatprep.subr.mxu0 0.0
  %956 = vmatpush2.msra.mxu0 0.0
  %957 = vmatprep.subr.mxu0 0.0
  %958 = vmatpush2.msra.mxu0 0.0
  %959 = vmatprep.subr.mxu0 0.0
  %960 = vmatpush2.msra.mxu0 0.0
  %961 = vmatprep.subr.mxu0 0.0
  %962 = vmatpush2.msra.mxu0 0.0
  %963 = vmatprep.subr.mxu0 0.0
  %964 = vmatpush2.msra.mxu0 0.0
  %965 = vmatprep.subr.mxu0 0.0
  %966 = vmatpush2.msra.mxu0 0.0
  %967 = vmatprep.subr.mxu0 0.0
  %968 = vmatpush2.msra.mxu0 0.0
  %969 = vmatprep.subr.mxu0 0.0
  %970 = vmatpush2.msra.mxu0 0.0
  %971 = vmatprep.subr.mxu0 0.0
  %972 = vmatpush2.msra.mxu0 0.0
  %973 = vmatprep.subr.mxu0 0.0
  %974 = vmatpush2.msra.mxu0 0.0
  %975 = vmatprep.mubr.f32.mxu0 0.0
  %976 = vmatmul.mubr.f32.gmra.mxu0 %v897
  %v977 = vpop.f32.mrf.mxu0
  %v978 = vadd.f32 %v894, %v977
  %v979 = vpop.f32.mrf.mxu0
  %980 = vmatprep.mubr.f32.mxu0 0.0
  %981 = vmatmul.mubr.f32.gmra.mxu0 %v900
  %v982 = vpop.f32.mrf.mxu0
  %v983 = vadd.f32 %v894, %v982
  %v984 = vpop.f32.mrf.mxu0
  %985 = vmatprep.mubr.f32.mxu0 0.0
  %986 = vmatmul.mubr.f32.gmra.mxu0 %v903
  %v987 = vpop.f32.mrf.mxu0
  %v988 = vadd.f32 %v894, %v987
  %v989 = vpop.f32.mrf.mxu0
  %990 = vmatprep.mubr.f32.mxu0 0.0
  %991 = vmatmul.mubr.f32.gmra.mxu0 %v906
  %v992 = vpop.f32.mrf.mxu0
  %v993 = vadd.f32 %v894, %v992
  %v994 = vpop.f32.mrf.mxu0
  %995 = vmatprep.mubr.f32.mxu0 0.0
  %996 = vmatmul.mubr.f32.gmra.mxu0 %v909
  %v997 = vpop.f32.mrf.mxu0
  %v998 = vadd.f32 %v894, %v997
  %v999 = vpop.f32.mrf.mxu0
  %1000 = vdwg.mxu0
  %v1001 = vmax.f32 %v978, 0.0
  %v1002 = vmax.f32 %v983, 0.0
  %v1003 = vmax.f32 %v988, 0.0
  %v1004 = vmax.f32 %v993, 0.0
  %v1005 = vmax.f32 %v998, 0.0
  %v1006 = vmul.f32 %v1001, %v50
  %v1007 = vmul.f32 %v1002, %v55
  %v1008 = vmul.f32 %v1003, %v60
  %v1009 = vmul.f32 %v1004, %v65
  %v1010 = vmul.f32 %v1005, %v70
  %1011 = vst.msk [vmem:[#allocation2 + $0x2] sm:$0xff] %vm127, %v1006
  %1012 = vst.msk [vmem:[#allocation2 + $0xa] sm:$0xff] %vm127, %v1007
  %1013 = vst.msk [vmem:[#allocation2 + $0x12] sm:$0xff] %vm127, %v1008
  %1014 = vst.msk [vmem:[#allocation2 + $0x1a] sm:$0xff] %vm127, %v1009
  %1015 = vst.msk [vmem:[#allocation2 + $0x22] sm:$0xf] %vm132, %v1010
  %1021 = vrot.lane.b32.xlu0 %v1006, 16
  %v1022 = vpop.permute.xlu0 %1021
  %1023 = vrot.lane.b32.xlu0 %v1007, 16
  %v1024 = vpop.permute.xlu0 %1023
  %1025 = vrot.lane.b32.xlu0 %v1008, 16
  %v1026 = vpop.permute.xlu0 %1025
  %1027 = vrot.lane.b32.xlu0 %v1009, 16
  %v1028 = vpop.permute.xlu0 %1027
  %1029 = vrot.lane.b32.xlu0 %v1010, 16
  %v1030 = vpop.permute.xlu0 %1029
  %1036 = vst.msk [vmem:[#allocation2 + $0x1] sm:$0xff] %vm149, %v1022
  %1037 = vst.msk [vmem:[#allocation2 + $0x9] sm:$0xff] %vm149, %v1024
  %1038 = vst.msk [vmem:[#allocation2 + $0x11] sm:$0xff] %vm149, %v1026
  %1039 = vst.msk [vmem:[#allocation2 + $0x19] sm:$0xff] %vm149, %v1028
  %1040 = vst.msk [vmem:[#allocation2 + $0x21] sm:$0xf] %vm154, %v1030
  %1041 = vrot.lane.b32.xlu0 %v1006, 32
  %v1042 = vpop.permute.xlu0 %1041
  %1043 = vrot.lane.b32.xlu0 %v1007, 32
  %v1044 = vpop.permute.xlu0 %1043
  %1045 = vrot.lane.b32.xlu0 %v1008, 32
  %v1046 = vpop.permute.xlu0 %1045
  %1047 = vrot.lane.b32.xlu0 %v1009, 32
  %v1048 = vpop.permute.xlu0 %1047
  %1049 = vrot.lane.b32.xlu0 %v1010, 32
  %v1050 = vpop.permute.xlu0 %1049
  %1056 = vst.msk [vmem:[#allocation2] sm:$0xff] %vm171, %v1042
  %1057 = vst.msk [vmem:[#allocation2 + $0x8] sm:$0xff] %vm171, %v1044
  %1058 = vst.msk [vmem:[#allocation2 + $0x10] sm:$0xff] %vm171, %v1046
  %1059 = vst.msk [vmem:[#allocation2 + $0x18] sm:$0xff] %vm171, %v1048
  %1060 = vst.msk [vmem:[#allocation2 + $0x20] sm:$0xf] %vm176, %v1050
  %s1061 = scalar_lea.vmem %s4, 144
  %v1062 = vld [vmem:[%s1061] sm:$0xff]
  %v1063 = vld [vmem:[%s1061 + $0x8] sm:$0xff]
  %v1064 = vld [vmem:[%s1061 + $0x10] sm:$0xff]
  %v1065 = vld [vmem:[%s1061 + $0x18] sm:$0xff]
  %v1066 = vld [vmem:[%s1061 + $0x20] sm:$0xff]
  %v1067 = vld [vmem:[%s1061 + $0x28] sm:$0xff]
  %s1068 = scalar_lea.vmem %s5, 3
  %v1069 = vld [vmem:[%s1068] sm:$0x1]
  %v1070 = vld [vmem:[#allocation2 + $0x1] sm:$0xff]
  %v1071 = vld [vmem:[#allocation2 + $0x9] sm:$0xff]
  %v1072 = vld [vmem:[#allocation2 + $0x11] sm:$0xff]
  %v1073 = vld [vmem:[#allocation2 + $0x19] sm:$0xff]
  %v1074 = vld [vmem:[#allocation2 + $0x21] sm:$0xf]
  %v1076 = vlaneseq
  %v1077 = vshrl.u32 %v1076, 7
  %v1078 = vsub.s32 0, %v1077
  %v1079 = vrot.slane %v1069, %v1078
  %v1082 = vsel %vm35, %v1070, 0
  %v1085 = vsel %vm35, %v1071, 0
  %v1088 = vsel %vm35, %v1072, 0
  %v1091 = vsel %vm35, %v1073, 0
  %v1094 = vsel %vm35, %v1074, 0
  %1096 = vmatprep.subr.mxu0 0.0
  %1097 = vmatpush1.msra.mxu0 0.0
  %1098 = vmatprep.subr.mxu0 0.0
  %1099 = vmatpush1.msra.mxu0 0.0
  %1100 = vmatprep.subr.mxu0 0.0
  %1101 = vmatpush1.msra.mxu0 0.0
  %1102 = vmatprep.subr.mxu0 0.0
  %1103 = vmatpush1.msra.mxu0 0.0
  %1104 = vmatprep.subr.mxu0 0.0
  %1105 = vmatpush1.msra.mxu0 0.0
  %1106 = vmatprep.subr.mxu0 0.0
  %1107 = vmatpush1.msra.mxu0 0.0
  %1108 = vmatprep.subr.mxu0 0.0
  %1109 = vmatpush1.msra.mxu0 0.0
  %1110 = vmatprep.subr.mxu0 0.0
  %1111 = vmatpush1.msra.mxu0 0.0
  %1112 = vmatprep.subr.mxu0 0.0
  %1113 = vmatpush1.msra.mxu0 0.0
  %1114 = vmatprep.subr.mxu0 0.0
  %1115 = vmatpush1.msra.mxu0 0.0
  %1116 = vmatprep.subr.mxu0 0.0
  %1117 = vmatpush1.msra.mxu0 %v1067
  %1118 = vmatprep.subr.mxu0 0.0
  %1119 = vmatpush1.msra.mxu0 %v1066
  %1120 = vmatprep.subr.mxu0 0.0
  %1121 = vmatpush1.msra.mxu0 %v1065
  %1122 = vmatprep.subr.mxu0 0.0
  %1123 = vmatpush1.msra.mxu0 %v1064
  %1124 = vmatprep.subr.mxu0 0.0
  %1125 = vmatpush1.msra.mxu0 %v1063
  %1126 = vmatprep.subr.mxu0 0.0
  %1127 = vmatpush1.msra.mxu0 %v1062
  %1128 = vmatprep.subr.mxu0 0.0
  %1129 = vmatpush2.msra.mxu0 0.0
  %1130 = vmatprep.subr.mxu0 0.0
  %1131 = vmatpush2.msra.mxu0 0.0
  %1132 = vmatprep.subr.mxu0 0.0
  %1133 = vmatpush2.msra.mxu0 0.0
  %1134 = vmatprep.subr.mxu0 0.0
  %1135 = vmatpush2.msra.mxu0 0.0
  %1136 = vmatprep.subr.mxu0 0.0
  %1137 = vmatpush2.msra.mxu0 0.0
  %1138 = vmatprep.subr.mxu0 0.0
  %1139 = vmatpush2.msra.mxu0 0.0
  %1140 = vmatprep.subr.mxu0 0.0
  %1141 = vmatpush2.msra.mxu0 0.0
  %1142 = vmatprep.subr.mxu0 0.0
  %1143 = vmatpush2.msra.mxu0 0.0
  %1144 = vmatprep.subr.mxu0 0.0
  %1145 = vmatpush2.msra.mxu0 0.0
  %1146 = vmatprep.subr.mxu0 0.0
  %1147 = vmatpush2.msra.mxu0 0.0
  %1148 = vmatprep.subr.mxu0 0.0
  %1149 = vmatpush2.msra.mxu0 0.0
  %1150 = vmatprep.subr.mxu0 0.0
  %1151 = vmatpush2.msra.mxu0 0.0
  %1152 = vmatprep.subr.mxu0 0.0
  %1153 = vmatpush2.msra.mxu0 0.0
  %1154 = vmatprep.subr.mxu0 0.0
  %1155 = vmatpush2.msra.mxu0 0.0
  %1156 = vmatprep.subr.mxu0 0.0
  %1157 = vmatpush2.msra.mxu0 0.0
  %1158 = vmatprep.subr.mxu0 0.0
  %1159 = vmatpush2.msra.mxu0 0.0
  %1160 = vmatprep.mubr.f32.mxu0 0.0
  %1161 = vmatmul.mubr.f32.gmra.mxu0 %v1082
  %v1162 = vpop.f32.mrf.mxu0
  %v1163 = vadd.f32 %v1079, %v1162
  %v1164 = vpop.f32.mrf.mxu0
  %1165 = vmatprep.mubr.f32.mxu0 0.0
  %1166 = vmatmul.mubr.f32.gmra.mxu0 %v1085
  %v1167 = vpop.f32.mrf.mxu0
  %v1168 = vadd.f32 %v1079, %v1167
  %v1169 = vpop.f32.mrf.mxu0
  %1170 = vmatprep.mubr.f32.mxu0 0.0
  %1171 = vmatmul.mubr.f32.gmra.mxu0 %v1088
  %v1172 = vpop.f32.mrf.mxu0
  %v1173 = vadd.f32 %v1079, %v1172
  %v1174 = vpop.f32.mrf.mxu0
  %1175 = vmatprep.mubr.f32.mxu0 0.0
  %1176 = vmatmul.mubr.f32.gmra.mxu0 %v1091
  %v1177 = vpop.f32.mrf.mxu0
  %v1178 = vadd.f32 %v1079, %v1177
  %v1179 = vpop.f32.mrf.mxu0
  %1180 = vmatprep.mubr.f32.mxu0 0.0
  %1181 = vmatmul.mubr.f32.gmra.mxu0 %v1094
  %v1182 = vpop.f32.mrf.mxu0
  %v1183 = vadd.f32 %v1079, %v1182
  %v1184 = vpop.f32.mrf.mxu0
  %1185 = vdwg.mxu0
  %v1186 = vmax.f32 %v1163, 0.0
  %v1187 = vmax.f32 %v1168, 0.0
  %v1188 = vmax.f32 %v1173, 0.0
  %v1189 = vmax.f32 %v1178, 0.0
  %v1190 = vmax.f32 %v1183, 0.0
  %v1191 = vmul.f32 %v1186, %v50
  %v1192 = vmul.f32 %v1187, %v55
  %v1193 = vmul.f32 %v1188, %v60
  %v1194 = vmul.f32 %v1189, %v65
  %v1195 = vmul.f32 %v1190, %v70
  %1196 = vst.msk [vmem:[#allocation2 + $0x2] sm:$0xff] %vm127, %v1191
  %1197 = vst.msk [vmem:[#allocation2 + $0xa] sm:$0xff] %vm127, %v1192
  %1198 = vst.msk [vmem:[#allocation2 + $0x12] sm:$0xff] %vm127, %v1193
  %1199 = vst.msk [vmem:[#allocation2 + $0x1a] sm:$0xff] %vm127, %v1194
  %1200 = vst.msk [vmem:[#allocation2 + $0x22] sm:$0xf] %vm132, %v1195
  %1206 = vrot.lane.b32.xlu0 %v1191, 16
  %v1207 = vpop.permute.xlu0 %1206
  %1208 = vrot.lane.b32.xlu0 %v1192, 16
  %v1209 = vpop.permute.xlu0 %1208
  %1210 = vrot.lane.b32.xlu0 %v1193, 16
  %v1211 = vpop.permute.xlu0 %1210
  %1212 = vrot.lane.b32.xlu0 %v1194, 16
  %v1213 = vpop.permute.xlu0 %1212
  %1214 = vrot.lane.b32.xlu0 %v1195, 16
  %v1215 = vpop.permute.xlu0 %1214
  %1221 = vst.msk [vmem:[#allocation2 + $0x1] sm:$0xff] %vm149, %v1207
  %1222 = vst.msk [vmem:[#allocation2 + $0x9] sm:$0xff] %vm149, %v1209
  %1223 = vst.msk [vmem:[#allocation2 + $0x11] sm:$0xff] %vm149, %v1211
  %1224 = vst.msk [vmem:[#allocation2 + $0x19] sm:$0xff] %vm149, %v1213
  %1225 = vst.msk [vmem:[#allocation2 + $0x21] sm:$0xf] %vm154, %v1215
  %1226 = vrot.lane.b32.xlu0 %v1191, 32
  %v1227 = vpop.permute.xlu0 %1226
  %1228 = vrot.lane.b32.xlu0 %v1192, 32
  %v1229 = vpop.permute.xlu0 %1228
  %1230 = vrot.lane.b32.xlu0 %v1193, 32
  %v1231 = vpop.permute.xlu0 %1230
  %1232 = vrot.lane.b32.xlu0 %v1194, 32
  %v1233 = vpop.permute.xlu0 %1232
  %1234 = vrot.lane.b32.xlu0 %v1195, 32
  %v1235 = vpop.permute.xlu0 %1234
  %1241 = vst.msk [vmem:[#allocation2] sm:$0xff] %vm171, %v1227
  %1242 = vst.msk [vmem:[#allocation2 + $0x8] sm:$0xff] %vm171, %v1229
  %1243 = vst.msk [vmem:[#allocation2 + $0x10] sm:$0xff] %vm171, %v1231
  %1244 = vst.msk [vmem:[#allocation2 + $0x18] sm:$0xff] %vm171, %v1233
  %1245 = vst.msk [vmem:[#allocation2 + $0x20] sm:$0xf] %vm176, %v1235
  %s1246 = scalar_lea.vmem %s4, 192
  %v1247 = vld [vmem:[%s1246] sm:$0xff]
  %v1248 = vld [vmem:[%s1246 + $0x8] sm:$0xff]
  %v1249 = vld [vmem:[%s1246 + $0x10] sm:$0xff]
  %v1250 = vld [vmem:[%s1246 + $0x18] sm:$0xff]
  %v1251 = vld [vmem:[%s1246 + $0x20] sm:$0xff]
  %v1252 = vld [vmem:[%s1246 + $0x28] sm:$0xff]
  %s1253 = scalar_lea.vmem %s5, 4
  %v1254 = vld [vmem:[%s1253] sm:$0x1]
  %v1255 = vld [vmem:[#allocation2 + $0x1] sm:$0xff]
  %v1256 = vld [vmem:[#allocation2 + $0x9] sm:$0xff]
  %v1257 = vld [vmem:[#allocation2 + $0x11] sm:$0xff]
  %v1258 = vld [vmem:[#allocation2 + $0x19] sm:$0xff]
  %v1259 = vld [vmem:[#allocation2 + $0x21] sm:$0xf]
  %v1261 = vlaneseq
  %v1262 = vshrl.u32 %v1261, 7
  %v1263 = vsub.s32 0, %v1262
  %v1264 = vrot.slane %v1254, %v1263
  %v1267 = vsel %vm35, %v1255, 0
  %v1270 = vsel %vm35, %v1256, 0
  %v1273 = vsel %vm35, %v1257, 0
  %v1276 = vsel %vm35, %v1258, 0
  %v1279 = vsel %vm35, %v1259, 0
  %1281 = vmatprep.subr.mxu0 0.0
  %1282 = vmatpush1.msra.mxu0 0.0
  %1283 = vmatprep.subr.mxu0 0.0
  %1284 = vmatpush1.msra.mxu0 0.0
  %1285 = vmatprep.subr.mxu0 0.0
  %1286 = vmatpush1.msra.mxu0 0.0
  %1287 = vmatprep.subr.mxu0 0.0
  %1288 = vmatpush1.msra.mxu0 0.0
  %1289 = vmatprep.subr.mxu0 0.0
  %1290 = vmatpush1.msra.mxu0 0.0
  %1291 = vmatprep.subr.mxu0 0.0
  %1292 = vmatpush1.msra.mxu0 0.0
  %1293 = vmatprep.subr.mxu0 0.0
  %1294 = vmatpush1.msra.mxu0 0.0
  %1295 = vmatprep.subr.mxu0 0.0
  %1296 = vmatpush1.msra.mxu0 0.0
  %1297 = vmatprep.subr.mxu0 0.0
  %1298 = vmatpush1.msra.mxu0 0.0
  %1299 = vmatprep.subr.mxu0 0.0
  %1300 = vmatpush1.msra.mxu0 0.0
  %1301 = vmatprep.subr.mxu0 0.0
  %1302 = vmatpush1.msra.mxu0 %v1252
  %1303 = vmatprep.subr.mxu0 0.0
  %1304 = vmatpush1.msra.mxu0 %v1251
  %1305 = vmatprep.subr.mxu0 0.0
  %1306 = vmatpush1.msra.mxu0 %v1250
  %1307 = vmatprep.subr.mxu0 0.0
  %1308 = vmatpush1.msra.mxu0 %v1249
  %1309 = vmatprep.subr.mxu0 0.0
  %1310 = vmatpush1.msra.mxu0 %v1248
  %1311 = vmatprep.subr.mxu0 0.0
  %1312 = vmatpush1.msra.mxu0 %v1247
  %1313 = vmatprep.subr.mxu0 0.0
  %1314 = vmatpush2.msra.mxu0 0.0
  %1315 = vmatprep.subr.mxu0 0.0
  %1316 = vmatpush2.msra.mxu0 0.0
  %1317 = vmatprep.subr.mxu0 0.0
  %1318 = vmatpush2.msra.mxu0 0.0
  %1319 = vmatprep.subr.mxu0 0.0
  %1320 = vmatpush2.msra.mxu0 0.0
  %1321 = vmatprep.subr.mxu0 0.0
  %1322 = vmatpush2.msra.mxu0 0.0
  %1323 = vmatprep.subr.mxu0 0.0
  %1324 = vmatpush2.msra.mxu0 0.0
  %1325 = vmatprep.subr.mxu0 0.0
  %1326 = vmatpush2.msra.mxu0 0.0
  %1327 = vmatprep.subr.mxu0 0.0
  %1328 = vmatpush2.msra.mxu0 0.0
  %1329 = vmatprep.subr.mxu0 0.0
  %1330 = vmatpush2.msra.mxu0 0.0
  %1331 = vmatprep.subr.mxu0 0.0
  %1332 = vmatpush2.msra.mxu0 0.0
  %1333 = vmatprep.subr.mxu0 0.0
  %1334 = vmatpush2.msra.mxu0 0.0
  %1335 = vmatprep.subr.mxu0 0.0
  %1336 = vmatpush2.msra.mxu0 0.0
  %1337 = vmatprep.subr.mxu0 0.0
  %1338 = vmatpush2.msra.mxu0 0.0
  %1339 = vmatprep.subr.mxu0 0.0
  %1340 = vmatpush2.msra.mxu0 0.0
  %1341 = vmatprep.subr.mxu0 0.0
  %1342 = vmatpush2.msra.mxu0 0.0
  %1343 = vmatprep.subr.mxu0 0.0
  %1344 = vmatpush2.msra.mxu0 0.0
  %1345 = vmatprep.mubr.f32.mxu0 0.0
  %1346 = vmatmul.mubr.f32.gmra.mxu0 %v1267
  %v1347 = vpop.f32.mrf.mxu0
  %v1348 = vadd.f32 %v1264, %v1347
  %v1349 = vpop.f32.mrf.mxu0
  %1350 = vmatprep.mubr.f32.mxu0 0.0
  %1351 = vmatmul.mubr.f32.gmra.mxu0 %v1270
  %v1352 = vpop.f32.mrf.mxu0
  %v1353 = vadd.f32 %v1264, %v1352
  %v1354 = vpop.f32.mrf.mxu0
  %1355 = vmatprep.mubr.f32.mxu0 0.0
  %1356 = vmatmul.mubr.f32.gmra.mxu0 %v1273
  %v1357 = vpop.f32.mrf.mxu0
  %v1358 = vadd.f32 %v1264, %v1357
  %v1359 = vpop.f32.mrf.mxu0
  %1360 = vmatprep.mubr.f32.mxu0 0.0
  %1361 = vmatmul.mubr.f32.gmra.mxu0 %v1276
  %v1362 = vpop.f32.mrf.mxu0
  %v1363 = vadd.f32 %v1264, %v1362
  %v1364 = vpop.f32.mrf.mxu0
  %1365 = vmatprep.mubr.f32.mxu0 0.0
  %1366 = vmatmul.mubr.f32.gmra.mxu0 %v1279
  %v1367 = vpop.f32.mrf.mxu0
  %v1368 = vadd.f32 %v1264, %v1367
  %v1369 = vpop.f32.mrf.mxu0
  %1370 = vdwg.mxu0
  %v1371 = vmax.f32 %v1348, 0.0
  %v1372 = vmax.f32 %v1353, 0.0
  %v1373 = vmax.f32 %v1358, 0.0
  %v1374 = vmax.f32 %v1363, 0.0
  %v1375 = vmax.f32 %v1368, 0.0
  %v1376 = vmul.f32 %v1371, %v50
  %v1377 = vmul.f32 %v1372, %v55
  %v1378 = vmul.f32 %v1373, %v60
  %v1379 = vmul.f32 %v1374, %v65
  %v1380 = vmul.f32 %v1375, %v70
  %1381 = vst.msk [vmem:[#allocation2 + $0x2] sm:$0xff] %vm127, %v1376
  %1382 = vst.msk [vmem:[#allocation2 + $0xa] sm:$0xff] %vm127, %v1377
  %1383 = vst.msk [vmem:[#allocation2 + $0x12] sm:$0xff] %vm127, %v1378
  %1384 = vst.msk [vmem:[#allocation2 + $0x1a] sm:$0xff] %vm127, %v1379
  %1385 = vst.msk [vmem:[#allocation2 + $0x22] sm:$0xf] %vm132, %v1380
  %1391 = vrot.lane.b32.xlu0 %v1376, 16
  %v1392 = vpop.permute.xlu0 %1391
  %1393 = vrot.lane.b32.xlu0 %v1377, 16
  %v1394 = vpop.permute.xlu0 %1393
  %1395 = vrot.lane.b32.xlu0 %v1378, 16
  %v1396 = vpop.permute.xlu0 %1395
  %1397 = vrot.lane.b32.xlu0 %v1379, 16
  %v1398 = vpop.permute.xlu0 %1397
  %1399 = vrot.lane.b32.xlu0 %v1380, 16
  %v1400 = vpop.permute.xlu0 %1399
  %1406 = vst.msk [vmem:[#allocation2 + $0x1] sm:$0xff] %vm149, %v1392
  %1407 = vst.msk [vmem:[#allocation2 + $0x9] sm:$0xff] %vm149, %v1394
  %1408 = vst.msk [vmem:[#allocation2 + $0x11] sm:$0xff] %vm149, %v1396
  %1409 = vst.msk [vmem:[#allocation2 + $0x19] sm:$0xff] %vm149, %v1398
  %1410 = vst.msk [vmem:[#allocation2 + $0x21] sm:$0xf] %vm154, %v1400
  %1411 = vrot.lane.b32.xlu0 %v1376, 32
  %v1412 = vpop.permute.xlu0 %1411
  %1413 = vrot.lane.b32.xlu0 %v1377, 32
  %v1414 = vpop.permute.xlu0 %1413
  %1415 = vrot.lane.b32.xlu0 %v1378, 32
  %v1416 = vpop.permute.xlu0 %1415
  %1417 = vrot.lane.b32.xlu0 %v1379, 32
  %v1418 = vpop.permute.xlu0 %1417
  %1419 = vrot.lane.b32.xlu0 %v1380, 32
  %v1420 = vpop.permute.xlu0 %1419
  %1426 = vst.msk [vmem:[#allocation2] sm:$0xff] %vm171, %v1412
  %1427 = vst.msk [vmem:[#allocation2 + $0x8] sm:$0xff] %vm171, %v1414
  %1428 = vst.msk [vmem:[#allocation2 + $0x10] sm:$0xff] %vm171, %v1416
  %1429 = vst.msk [vmem:[#allocation2 + $0x18] sm:$0xff] %vm171, %v1418
  %1430 = vst.msk [vmem:[#allocation2 + $0x20] sm:$0xf] %vm176, %v1420
  %s1431 = scalar_lea.vmem %s8, 1
  %v1432 = vld [vmem:[%s1431] sm:$0x1]
  %s1433 = scalar_lea.vmem %s9, 1
  %v1434 = vld [vmem:[%s1433] sm:$0x1]
  %v1435 = vld [vmem:[#allocation2 + $0x1] sm:$0xff]
  %v1436 = vld [vmem:[#allocation2 + $0x9] sm:$0xff]
  %v1437 = vld [vmem:[#allocation2 + $0x11] sm:$0xff]
  %v1438 = vld [vmem:[#allocation2 + $0x19] sm:$0xff]
  %v1439 = vld [vmem:[#allocation2 + $0x21] sm:$0xf]
  %v1440 = vsel %vm149, %v1435, 0.0
  %v1441 = vsel %vm149, %v1436, 0.0
  %v1442 = vadd.f32 %v1440, %v1441
  %v1443 = vsel %vm149, %v1437, 0.0
  %v1444 = vadd.f32 %v1442, %v1443
  %v1445 = vsel %vm149, %v1438, 0.0
  %v1446 = vadd.f32 %v1444, %v1445
  %v1447 = vsel %vm154, %v1439, 0.0
  %v1448 = vadd.f32 %v1446, %v1447
  %v1449 = vrot.slane %v1448, 4
  %v1450 = vadd.f32 %v1448, %v1449
  %v1451 = vrot.slane %v1450, 2
  %v1452 = vadd.f32 %v1450, %v1451
  %v1453 = vrot.slane %v1452, 1
  %v1454 = vadd.f32 %v1452, %v1453
  %v1455 = vmul.f32 %v1454, 0.029411765
  %v1456 = vsub.f32 %v1435, %v1455
  %v1457 = vsub.f32 %v1436, %v1455
  %v1458 = vsub.f32 %v1437, %v1455
  %v1459 = vsub.f32 %v1438, %v1455
  %v1460 = vsub.f32 %v1439, %v1455
  %v1461 = vmul.f32 %v50, %v1456
  %v1462 = vmul.f32 %v55, %v1457
  %v1463 = vmul.f32 %v60, %v1458
  %v1464 = vmul.f32 %v65, %v1459
  %v1465 = vmul.f32 %v70, %v1460
  %v1466 = vmul.f32 %v1461, %v1456
  %v1467 = vmul.f32 %v1462, %v1457
  %v1468 = vmul.f32 %v1463, %v1458
  %v1469 = vmul.f32 %v1464, %v1459
  %v1470 = vmul.f32 %v1465, %v1460
  %v1471 = vsel %vm149, %v1466, 0.0
  %v1472 = vsel %vm149, %v1467, 0.0
  %v1473 = vadd.f32 %v1471, %v1472
  %v1474 = vsel %vm149, %v1468, 0.0
  %v1475 = vadd.f32 %v1473, %v1474
  %v1476 = vsel %vm149, %v1469, 0.0
  %v1477 = vadd.f32 %v1475, %v1476
  %v1478 = vsel %vm154, %v1470, 0.0
  %v1479 = vadd.f32 %v1477, %v1478
  %v1480 = vrot.slane %v1479, 4
  %v1481 = vadd.f32 %v1479, %v1480
  %v1482 = vrot.slane %v1481, 2
  %v1483 = vadd.f32 %v1481, %v1482
  %v1484 = vrot.slane %v1483, 1
  %v1485 = vadd.f32 %v1483, %v1484
  %v1486 = vmul.f32 %v1485, 0.029411765
  %v1487 = vadd.f32 %v1486, 1e-05
  %v1488 = vrsqrt.pop %v1487
  %v1489 = vmul.f32 %v1456, %v1488
  %v1490 = vmul.f32 %v1457, %v1488
  %v1491 = vmul.f32 %v1458, %v1488
  %v1492 = vmul.f32 %v1459, %v1488
  %v1493 = vmul.f32 %v1460, %v1488
  %v1495 = vlaneseq
  %v1496 = vshrl.u32 %v1495, 7
  %v1497 = vsub.s32 0, %v1496
  %v1498 = vrot.slane %v1432, %v1497
  %1499 = vrot.lane.b32.xlu0 %v1498, 16
  %v1500 = vpop.permute.xlu0 %1499
  %v1502 = vmul.f32 %v1489, %v1500
  %v1503 = vmul.f32 %v1490, %v1500
  %v1504 = vmul.f32 %v1491, %v1500
  %v1505 = vmul.f32 %v1492, %v1500
  %v1506 = vmul.f32 %v1493, %v1500
  %v1508 = vlaneseq
  %v1509 = vshrl.u32 %v1508, 7
  %v1510 = vsub.s32 0, %v1509
  %v1511 = vrot.slane %v1434, %v1510
  %1512 = vrot.lane.b32.xlu0 %v1511, 16
  %v1513 = vpop.permute.xlu0 %1512
  %v1515 = vadd.f32 %v1502, %v1513
  %v1516 = vadd.f32 %v1503, %v1513
  %v1517 = vadd.f32 %v1504, %v1513
  %v1518 = vadd.f32 %v1505, %v1513
  %v1519 = vadd.f32 %v1506, %v1513
  %v1520 = vmul.f32 %v50, %v1515
  %v1521 = vmul.f32 %v55, %v1516
  %v1522 = vmul.f32 %v60, %v1517
  %v1523 = vmul.f32 %v65, %v1518
  %v1524 = vmul.f32 %v70, %v1519
  %v1525 = vadd.f32 %v1520, %v105
  %v1526 = vadd.f32 %v1521, %v110
  %v1527 = vadd.f32 %v1522, %v115
  %v1528 = vadd.f32 %v1523, %v120
  %v1529 = vadd.f32 %v1524, %v125
  %1535 = vrot.lane.b32.xlu0 %v1525, 112
  %v1536 = vpop.permute.xlu0 %1535
  %1537 = vrot.lane.b32.xlu0 %v1526, 112
  %v1538 = vpop.permute.xlu0 %1537
  %1539 = vrot.lane.b32.xlu0 %v1527, 112
  %v1540 = vpop.permute.xlu0 %1539
  %1541 = vrot.lane.b32.xlu0 %v1528, 112
  %v1542 = vpop.permute.xlu0 %1541
  %1543 = vrot.lane.b32.xlu0 %v1529, 112
  %v1544 = vpop.permute.xlu0 %1543
  %1550 = vst.msk [vmem:[#allocation2 + $0x2] sm:$0xff] %vm127, %v1536
  %1551 = vst.msk [vmem:[#allocation2 + $0xa] sm:$0xff] %vm127, %v1538
  %1552 = vst.msk [vmem:[#allocation2 + $0x12] sm:$0xff] %vm127, %v1540
  %1553 = vst.msk [vmem:[#allocation2 + $0x1a] sm:$0xff] %vm127, %v1542
  %1554 = vst.msk [vmem:[#allocation2 + $0x22] sm:$0xf] %vm132, %v1544
  %1555 = vst.msk [vmem:[#allocation2 + $0x1] sm:$0xff] %vm149, %v1525
  %1556 = vst.msk [vmem:[#allocation2 + $0x9] sm:$0xff] %vm149, %v1526
  %1557 = vst.msk [vmem:[#allocation2 + $0x11] sm:$0xff] %vm149, %v1527
  %1558 = vst.msk [vmem:[#allocation2 + $0x19] sm:$0xff] %vm149, %v1528
  %1559 = vst.msk [vmem:[#allocation2 + $0x21] sm:$0xf] %vm154, %v1529
  %1560 = vrot.lane.b32.xlu0 %v1525, 16
  %v1561 = vpop.permute.xlu0 %1560
  %1562 = vrot.lane.b32.xlu0 %v1526, 16
  %v1563 = vpop.permute.xlu0 %1562
  %1564 = vrot.lane.b32.xlu0 %v1527, 16
  %v1565 = vpop.permute.xlu0 %1564
  %1566 = vrot.lane.b32.xlu0 %v1528, 16
  %v1567 = vpop.permute.xlu0 %1566
  %1568 = vrot.lane.b32.xlu0 %v1529, 16
  %v1569 = vpop.permute.xlu0 %1568
  %1575 = vst.msk [vmem:[#allocation2] sm:$0xff] %vm171, %v1561
  %1576 = vst.msk [vmem:[#allocation2 + $0x8] sm:$0xff] %vm171, %v1563
  %1577 = vst.msk [vmem:[#allocation2 + $0x10] sm:$0xff] %vm171, %v1565
  %1578 = vst.msk [vmem:[#allocation2 + $0x18] sm:$0xff] %vm171, %v1567
  %1579 = vst.msk [vmem:[#allocation2 + $0x20] sm:$0xf] %vm176, %v1569
  %s1580 = scalar_lea.vmem %s4, 240
  %v1581 = vld [vmem:[%s1580] sm:$0xff]
  %v1582 = vld [vmem:[%s1580 + $0x8] sm:$0xff]
  %v1583 = vld [vmem:[%s1580 + $0x10] sm:$0xff]
  %v1584 = vld [vmem:[%s1580 + $0x18] sm:$0xff]
  %v1585 = vld [vmem:[%s1580 + $0x20] sm:$0xff]
  %v1586 = vld [vmem:[%s1580 + $0x28] sm:$0xff]
  %s1587 = scalar_lea.vmem %s5, 5
  %v1588 = vld [vmem:[%s1587] sm:$0x1]
  %v1589 = vld [vmem:[#allocation2 + $0x1] sm:$0xff]
  %v1590 = vld [vmem:[#allocation2 + $0x9] sm:$0xff]
  %v1591 = vld [vmem:[#allocation2 + $0x11] sm:$0xff]
  %v1592 = vld [vmem:[#allocation2 + $0x19] sm:$0xff]
  %v1593 = vld [vmem:[#allocation2 + $0x21] sm:$0xf]
  %v1595 = vlaneseq
  %v1596 = vshrl.u32 %v1595, 7
  %v1597 = vsub.s32 0, %v1596
  %v1598 = vrot.slane %v1588, %v1597
  %v1601 = vsel %vm35, %v1589, 0
  %v1604 = vsel %vm35, %v1590, 0
  %v1607 = vsel %vm35, %v1591, 0
  %v1610 = vsel %vm35, %v1592, 0
  %v1613 = vsel %vm35, %v1593, 0
  %1615 = vmatprep.subr.mxu0 0.0
  %1616 = vmatpush1.msra.mxu0 0.0
  %1617 = vmatprep.subr.mxu0 0.0
  %1618 = vmatpush1.msra.mxu0 0.0
  %1619 = vmatprep.subr.mxu0 0.0
  %1620 = vmatpush1.msra.mxu0 0.0
  %1621 = vmatprep.subr.mxu0 0.0
  %1622 = vmatpush1.msra.mxu0 0.0
  %1623 = vmatprep.subr.mxu0 0.0
  %1624 = vmatpush1.msra.mxu0 0.0
  %1625 = vmatprep.subr.mxu0 0.0
  %1626 = vmatpush1.msra.mxu0 0.0
  %1627 = vmatprep.subr.mxu0 0.0
  %1628 = vmatpush1.msra.mxu0 0.0
  %1629 = vmatprep.subr.mxu0 0.0
  %1630 = vmatpush1.msra.mxu0 0.0
  %1631 = vmatprep.subr.mxu0 0.0
  %1632 = vmatpush1.msra.mxu0 0.0
  %1633 = vmatprep.subr.mxu0 0.0
  %1634 = vmatpush1.msra.mxu0 0.0
  %1635 = vmatprep.subr.mxu0 0.0
  %1636 = vmatpush1.msra.mxu0 %v1586
  %1637 = vmatprep.subr.mxu0 0.0
  %1638 = vmatpush1.msra.mxu0 %v1585
  %1639 = vmatprep.subr.mxu0 0.0
  %1640 = vmatpush1.msra.mxu0 %v1584
  %1641 = vmatprep.subr.mxu0 0.0
  %1642 = vmatpush1.msra.mxu0 %v1583
  %1643 = vmatprep.subr.mxu0 0.0
  %1644 = vmatpush1.msra.mxu0 %v1582
  %1645 = vmatprep.subr.mxu0 0.0
  %1646 = vmatpush1.msra.mxu0 %v1581
  %1647 = vmatprep.subr.mxu0 0.0
  %1648 = vmatpush2.msra.mxu0 0.0
  %1649 = vmatprep.subr.mxu0 0.0
  %1650 = vmatpush2.msra.mxu0 0.0
  %1651 = vmatprep.subr.mxu0 0.0
  %1652 = vmatpush2.msra.mxu0 0.0
  %1653 = vmatprep.subr.mxu0 0.0
  %1654 = vmatpush2.msra.mxu0 0.0
  %1655 = vmatprep.subr.mxu0 0.0
  %1656 = vmatpush2.msra.mxu0 0.0
  %1657 = vmatprep.subr.mxu0 0.0
  %1658 = vmatpush2.msra.mxu0 0.0
  %1659 = vmatprep.subr.mxu0 0.0
  %1660 = vmatpush2.msra.mxu0 0.0
  %1661 = vmatprep.subr.mxu0 0.0
  %1662 = vmatpush2.msra.mxu0 0.0
  %1663 = vmatprep.subr.mxu0 0.0
  %1664 = vmatpush2.msra.mxu0 0.0
  %1665 = vmatprep.subr.mxu0 0.0
  %1666 = vmatpush2.msra.mxu0 0.0
  %1667 = vmatprep.subr.mxu0 0.0
  %1668 = vmatpush2.msra.mxu0 0.0
  %1669 = vmatprep.subr.mxu0 0.0
  %1670 = vmatpush2.msra.mxu0 0.0
  %1671 = vmatprep.subr.mxu0 0.0
  %1672 = vmatpush2.msra.mxu0 0.0
  %1673 = vmatprep.subr.mxu0 0.0
  %1674 = vmatpush2.msra.mxu0 0.0
  %1675 = vmatprep.subr.mxu0 0.0
  %1676 = vmatpush2.msra.mxu0 0.0
  %1677 = vmatprep.subr.mxu0 0.0
  %1678 = vmatpush2.msra.mxu0 0.0
  %1679 = vmatprep.mubr.f32.mxu0 0.0
  %1680 = vmatmul.mubr.f32.gmra.mxu0 %v1601
  %v1681 = vpop.f32.mrf.mxu0
  %v1682 = vadd.f32 %v1598, %v1681
  %v1683 = vpop.f32.mrf.mxu0
  %1684 = vmatprep.mubr.f32.mxu0 0.0
  %1685 = vmatmul.mubr.f32.gmra.mxu0 %v1604
  %v1686 = vpop.f32.mrf.mxu0
  %v1687 = vadd.f32 %v1598, %v1686
  %v1688 = vpop.f32.mrf.mxu0
  %1689 = vmatprep.mubr.f32.mxu0 0.0
  %1690 = vmatmul.mubr.f32.gmra.mxu0 %v1607
  %v1691 = vpop.f32.mrf.mxu0
  %v1692 = vadd.f32 %v1598, %v1691
  %v1693 = vpop.f32.mrf.mxu0
  %1694 = vmatprep.mubr.f32.mxu0 0.0
  %1695 = vmatmul.mubr.f32.gmra.mxu0 %v1610
  %v1696 = vpop.f32.mrf.mxu0
  %v1697 = vadd.f32 %v1598, %v1696
  %v1698 = vpop.f32.mrf.mxu0
  %1699 = vmatprep.mubr.f32.mxu0 0.0
  %1700 = vmatmul.mubr.f32.gmra.mxu0 %v1613
  %v1701 = vpop.f32.mrf.mxu0
  %v1702 = vadd.f32 %v1598, %v1701
  %v1703 = vpop.f32.mrf.mxu0
  %1704 = vdwg.mxu0
  %v1705 = vmax.f32 %v1682, 0.0
  %v1706 = vmax.f32 %v1687, 0.0
  %v1707 = vmax.f32 %v1692, 0.0
  %v1708 = vmax.f32 %v1697, 0.0
  %v1709 = vmax.f32 %v1702, 0.0
  %v1710 = vmul.f32 %v1705, %v50
  %v1711 = vmul.f32 %v1706, %v55
  %v1712 = vmul.f32 %v1707, %v60
  %v1713 = vmul.f32 %v1708, %v65
  %v1714 = vmul.f32 %v1709, %v70
  %1715 = vst.msk [vmem:[#allocation2 + $0x2] sm:$0xff] %vm127, %v1710
  %1716 = vst.msk [vmem:[#allocation2 + $0xa] sm:$0xff] %vm127, %v1711
  %1717 = vst.msk [vmem:[#allocation2 + $0x12] sm:$0xff] %vm127, %v1712
  %1718 = vst.msk [vmem:[#allocation2 + $0x1a] sm:$0xff] %vm127, %v1713
  %1719 = vst.msk [vmem:[#allocation2 + $0x22] sm:$0xf] %vm132, %v1714
  %1725 = vrot.lane.b32.xlu0 %v1710, 16
  %v1726 = vpop.permute.xlu0 %1725
  %1727 = vrot.lane.b32.xlu0 %v1711, 16
  %v1728 = vpop.permute.xlu0 %1727
  %1729 = vrot.lane.b32.xlu0 %v1712, 16
  %v1730 = vpop.permute.xlu0 %1729
  %1731 = vrot.lane.b32.xlu0 %v1713, 16
  %v1732 = vpop.permute.xlu0 %1731
  %1733 = vrot.lane.b32.xlu0 %v1714, 16
  %v1734 = vpop.permute.xlu0 %1733
  %1740 = vst.msk [vmem:[#allocation2 + $0x1] sm:$0xff] %vm149, %v1726
  %1741 = vst.msk [vmem:[#allocation2 + $0x9] sm:$0xff] %vm149, %v1728
  %1742 = vst.msk [vmem:[#allocation2 + $0x11] sm:$0xff] %vm149, %v1730
  %1743 = vst.msk [vmem:[#allocation2 + $0x19] sm:$0xff] %vm149, %v1732
  %1744 = vst.msk [vmem:[#allocation2 + $0x21] sm:$0xf] %vm154, %v1734
  %1745 = vrot.lane.b32.xlu0 %v1710, 32
  %v1746 = vpop.permute.xlu0 %1745
  %1747 = vrot.lane.b32.xlu0 %v1711, 32
  %v1748 = vpop.permute.xlu0 %1747
  %1749 = vrot.lane.b32.xlu0 %v1712, 32
  %v1750 = vpop.permute.xlu0 %1749
  %1751 = vrot.lane.b32.xlu0 %v1713, 32
  %v1752 = vpop.permute.xlu0 %1751
  %1753 = vrot.lane.b32.xlu0 %v1714, 32
  %v1754 = vpop.permute.xlu0 %1753
  %1760 = vst.msk [vmem:[#allocation2] sm:$0xff] %vm171, %v1746
  %1761 = vst.msk [vmem:[#allocation2 + $0x8] sm:$0xff] %vm171, %v1748
  %1762 = vst.msk [vmem:[#allocation2 + $0x10] sm:$0xff] %vm171, %v1750
  %1763 = vst.msk [vmem:[#allocation2 + $0x18] sm:$0xff] %vm171, %v1752
  %1764 = vst.msk [vmem:[#allocation2 + $0x20] sm:$0xf] %vm176, %v1754
  %s1765 = scalar_lea.vmem %s4, 288
  %v1766 = vld [vmem:[%s1765] sm:$0xff]
  %v1767 = vld [vmem:[%s1765 + $0x8] sm:$0xff]
  %v1768 = vld [vmem:[%s1765 + $0x10] sm:$0xff]
  %v1769 = vld [vmem:[%s1765 + $0x18] sm:$0xff]
  %v1770 = vld [vmem:[%s1765 + $0x20] sm:$0xff]
  %v1771 = vld [vmem:[%s1765 + $0x28] sm:$0xff]
  %s1772 = scalar_lea.vmem %s5, 6
  %v1773 = vld [vmem:[%s1772] sm:$0x1]
  %v1774 = vld [vmem:[#allocation2 + $0x1] sm:$0xff]
  %v1775 = vld [vmem:[#allocation2 + $0x9] sm:$0xff]
  %v1776 = vld [vmem:[#allocation2 + $0x11] sm:$0xff]
  %v1777 = vld [vmem:[#allocation2 + $0x19] sm:$0xff]
  %v1778 = vld [vmem:[#allocation2 + $0x21] sm:$0xf]
  %v1780 = vlaneseq
  %v1781 = vshrl.u32 %v1780, 7
  %v1782 = vsub.s32 0, %v1781
  %v1783 = vrot.slane %v1773, %v1782
  %v1786 = vsel %vm35, %v1774, 0
  %v1789 = vsel %vm35, %v1775, 0
  %v1792 = vsel %vm35, %v1776, 0
  %v1795 = vsel %vm35, %v1777, 0
  %v1798 = vsel %vm35, %v1778, 0
  %1800 = vmatprep.subr.mxu0 0.0
  %1801 = vmatpush1.msra.mxu0 0.0
  %1802 = vmatprep.subr.mxu0 0.0
  %1803 = vmatpush1.msra.mxu0 0.0
  %1804 = vmatprep.subr.mxu0 0.0
  %1805 = vmatpush1.msra.mxu0 0.0
  %1806 = vmatprep.subr.mxu0 0.0
  %1807 = vmatpush1.msra.mxu0 0.0
  %1808 = vmatprep.subr.mxu0 0.0
  %1809 = vmatpush1.msra.mxu0 0.0
  %1810 = vmatprep.subr.mxu0 0.0
  %1811 = vmatpush1.msra.mxu0 0.0
  %1812 = vmatprep.subr.mxu0 0.0
  %1813 = vmatpush1.msra.mxu0 0.0
  %1814 = vmatprep.subr.mxu0 0.0
  %1815 = vmatpush1.msra.mxu0 0.0
  %1816 = vmatprep.subr.mxu0 0.0
  %1817 = vmatpush1.msra.mxu0 0.0
  %1818 = vmatprep.subr.mxu0 0.0
  %1819 = vmatpush1.msra.mxu0 0.0
  %1820 = vmatprep.subr.mxu0 0.0
  %1821 = vmatpush1.msra.mxu0 %v1771
  %1822 = vmatprep.subr.mxu0 0.0
  %1823 = vmatpush1.msra.mxu0 %v1770
  %1824 = vmatprep.subr.mxu0 0.0
  %1825 = vmatpush1.msra.mxu0 %v1769
  %1826 = vmatprep.subr.mxu0 0.0
  %1827 = vmatpush1.msra.mxu0 %v1768
  %1828 = vmatprep.subr.mxu0 0.0
  %1829 = vmatpush1.msra.mxu0 %v1767
  %1830 = vmatprep.subr.mxu0 0.0
  %1831 = vmatpush1.msra.mxu0 %v1766
  %1832 = vmatprep.subr.mxu0 0.0
  %1833 = vmatpush2.msra.mxu0 0.0
  %1834 = vmatprep.subr.mxu0 0.0
  %1835 = vmatpush2.msra.mxu0 0.0
  %1836 = vmatprep.subr.mxu0 0.0
  %1837 = vmatpush2.msra.mxu0 0.0
  %1838 = vmatprep.subr.mxu0 0.0
  %1839 = vmatpush2.msra.mxu0 0.0
  %1840 = vmatprep.subr.mxu0 0.0
  %1841 = vmatpush2.msra.mxu0 0.0
  %1842 = vmatprep.subr.mxu0 0.0
  %1843 = vmatpush2.msra.mxu0 0.0
  %1844 = vmatprep.subr.mxu0 0.0
  %1845 = vmatpush2.msra.mxu0 0.0
  %1846 = vmatprep.subr.mxu0 0.0
  %1847 = vmatpush2.msra.mxu0 0.0
  %1848 = vmatprep.subr.mxu0 0.0
  %1849 = vmatpush2.msra.mxu0 0.0
  %1850 = vmatprep.subr.mxu0 0.0
  %1851 = vmatpush2.msra.mxu0 0.0
  %1852 = vmatprep.subr.mxu0 0.0
  %1853 = vmatpush2.msra.mxu0 0.0
  %1854 = vmatprep.subr.mxu0 0.0
  %1855 = vmatpush2.msra.mxu0 0.0
  %1856 = vmatprep.subr.mxu0 0.0
  %1857 = vmatpush2.msra.mxu0 0.0
  %1858 = vmatprep.subr.mxu0 0.0
  %1859 = vmatpush2.msra.mxu0 0.0
  %1860 = vmatprep.subr.mxu0 0.0
  %1861 = vmatpush2.msra.mxu0 0.0
  %1862 = vmatprep.subr.mxu0 0.0
  %1863 = vmatpush2.msra.mxu0 0.0
  %1864 = vmatprep.mubr.f32.mxu0 0.0
  %1865 = vmatmul.mubr.f32.gmra.mxu0 %v1786
  %v1866 = vpop.f32.mrf.mxu0
  %v1867 = vadd.f32 %v1783, %v1866
  %v1868 = vpop.f32.mrf.mxu0
  %1869 = vmatprep.mubr.f32.mxu0 0.0
  %1870 = vmatmul.mubr.f32.gmra.mxu0 %v1789
  %v1871 = vpop.f32.mrf.mxu0
  %v1872 = vadd.f32 %v1783, %v1871
  %v1873 = vpop.f32.mrf.mxu0
  %1874 = vmatprep.mubr.f32.mxu0 0.0
  %1875 = vmatmul.mubr.f32.gmra.mxu0 %v1792
  %v1876 = vpop.f32.mrf.mxu0
  %v1877 = vadd.f32 %v1783, %v1876
  %v1878 = vpop.f32.mrf.mxu0
  %1879 = vmatprep.mubr.f32.mxu0 0.0
  %1880 = vmatmul.mubr.f32.gmra.mxu0 %v1795
  %v1881 = vpop.f32.mrf.mxu0
  %v1882 = vadd.f32 %v1783, %v1881
  %v1883 = vpop.f32.mrf.mxu0
  %1884 = vmatprep.mubr.f32.mxu0 0.0
  %1885 = vmatmul.mubr.f32.gmra.mxu0 %v1798
  %v1886 = vpop.f32.mrf.mxu0
  %v1887 = vadd.f32 %v1783, %v1886
  %v1888 = vpop.f32.mrf.mxu0
  %1889 = vdwg.mxu0
  %v1890 = vmax.f32 %v1867, 0.0
  %v1891 = vmax.f32 %v1872, 0.0
  %v1892 = vmax.f32 %v1877, 0.0
  %v1893 = vmax.f32 %v1882, 0.0
  %v1894 = vmax.f32 %v1887, 0.0
  %v1895 = vmul.f32 %v1890, %v50
  %v1896 = vmul.f32 %v1891, %v55
  %v1897 = vmul.f32 %v1892, %v60
  %v1898 = vmul.f32 %v1893, %v65
  %v1899 = vmul.f32 %v1894, %v70
  %1900 = vst.msk [vmem:[#allocation2 + $0x2] sm:$0xff] %vm127, %v1895
  %1901 = vst.msk [vmem:[#allocation2 + $0xa] sm:$0xff] %vm127, %v1896
  %1902 = vst.msk [vmem:[#allocation2 + $0x12] sm:$0xff] %vm127, %v1897
  %1903 = vst.msk [vmem:[#allocation2 + $0x1a] sm:$0xff] %vm127, %v1898
  %1904 = vst.msk [vmem:[#allocation2 + $0x22] sm:$0xf] %vm132, %v1899
  %1910 = vrot.lane.b32.xlu0 %v1895, 16
  %v1911 = vpop.permute.xlu0 %1910
  %1912 = vrot.lane.b32.xlu0 %v1896, 16
  %v1913 = vpop.permute.xlu0 %1912
  %1914 = vrot.lane.b32.xlu0 %v1897, 16
  %v1915 = vpop.permute.xlu0 %1914
  %1916 = vrot.lane.b32.xlu0 %v1898, 16
  %v1917 = vpop.permute.xlu0 %1916
  %1918 = vrot.lane.b32.xlu0 %v1899, 16
  %v1919 = vpop.permute.xlu0 %1918
  %1925 = vst.msk [vmem:[#allocation2 + $0x1] sm:$0xff] %vm149, %v1911
  %1926 = vst.msk [vmem:[#allocation2 + $0x9] sm:$0xff] %vm149, %v1913
  %1927 = vst.msk [vmem:[#allocation2 + $0x11] sm:$0xff] %vm149, %v1915
  %1928 = vst.msk [vmem:[#allocation2 + $0x19] sm:$0xff] %vm149, %v1917
  %1929 = vst.msk [vmem:[#allocation2 + $0x21] sm:$0xf] %vm154, %v1919
  %1930 = vrot.lane.b32.xlu0 %v1895, 32
  %v1931 = vpop.permute.xlu0 %1930
  %1932 = vrot.lane.b32.xlu0 %v1896, 32
  %v1933 = vpop.permute.xlu0 %1932
  %1934 = vrot.lane.b32.xlu0 %v1897, 32
  %v1935 = vpop.permute.xlu0 %1934
  %1936 = vrot.lane.b32.xlu0 %v1898, 32
  %v1937 = vpop.permute.xlu0 %1936
  %1938 = vrot.lane.b32.xlu0 %v1899, 32
  %v1939 = vpop.permute.xlu0 %1938
  %1945 = vst.msk [vmem:[#allocation2] sm:$0xff] %vm171, %v1931
  %1946 = vst.msk [vmem:[#allocation2 + $0x8] sm:$0xff] %vm171, %v1933
  %1947 = vst.msk [vmem:[#allocation2 + $0x10] sm:$0xff] %vm171, %v1935
  %1948 = vst.msk [vmem:[#allocation2 + $0x18] sm:$0xff] %vm171, %v1937
  %1949 = vst.msk [vmem:[#allocation2 + $0x20] sm:$0xf] %vm176, %v1939
  %s1950 = scalar_lea.vmem %s4, 336
  %v1951 = vld [vmem:[%s1950] sm:$0xff]
  %v1952 = vld [vmem:[%s1950 + $0x8] sm:$0xff]
  %v1953 = vld [vmem:[%s1950 + $0x10] sm:$0xff]
  %v1954 = vld [vmem:[%s1950 + $0x18] sm:$0xff]
  %v1955 = vld [vmem:[%s1950 + $0x20] sm:$0xff]
  %v1956 = vld [vmem:[%s1950 + $0x28] sm:$0xff]
  %s1957 = scalar_lea.vmem %s5, 7
  %v1958 = vld [vmem:[%s1957] sm:$0x1]
  %v1959 = vld [vmem:[#allocation2 + $0x1] sm:$0xff]
  %v1960 = vld [vmem:[#allocation2 + $0x9] sm:$0xff]
  %v1961 = vld [vmem:[#allocation2 + $0x11] sm:$0xff]
  %v1962 = vld [vmem:[#allocation2 + $0x19] sm:$0xff]
  %v1963 = vld [vmem:[#allocation2 + $0x21] sm:$0xf]
  %v1965 = vlaneseq
  %v1966 = vshrl.u32 %v1965, 7
  %v1967 = vsub.s32 0, %v1966
  %v1968 = vrot.slane %v1958, %v1967
  %v1971 = vsel %vm35, %v1959, 0
  %v1974 = vsel %vm35, %v1960, 0
  %v1977 = vsel %vm35, %v1961, 0
  %v1980 = vsel %vm35, %v1962, 0
  %v1983 = vsel %vm35, %v1963, 0
  %1985 = vmatprep.subr.mxu0 0.0
  %1986 = vmatpush1.msra.mxu0 0.0
  %1987 = vmatprep.subr.mxu0 0.0
  %1988 = vmatpush1.msra.mxu0 0.0
  %1989 = vmatprep.subr.mxu0 0.0
  %1990 = vmatpush1.msra.mxu0 0.0
  %1991 = vmatprep.subr.mxu0 0.0
  %1992 = vmatpush1.msra.mxu0 0.0
  %1993 = vmatprep.subr.mxu0 0.0
  %1994 = vmatpush1.msra.mxu0 0.0
  %1995 = vmatprep.subr.mxu0 0.0
  %1996 = vmatpush1.msra.mxu0 0.0
  %1997 = vmatprep.subr.mxu0 0.0
  %1998 = vmatpush1.msra.mxu0 0.0
  %1999 = vmatprep.subr.mxu0 0.0
  %2000 = vmatpush1.msra.mxu0 0.0
  %2001 = vmatprep.subr.mxu0 0.0
  %2002 = vmatpush1.msra.mxu0 0.0
  %2003 = vmatprep.subr.mxu0 0.0
  %2004 = vmatpush1.msra.mxu0 0.0
  %2005 = vmatprep.subr.mxu0 0.0
  %2006 = vmatpush1.msra.mxu0 %v1956
  %2007 = vmatprep.subr.mxu0 0.0
  %2008 = vmatpush1.msra.mxu0 %v1955
  %2009 = vmatprep.subr.mxu0 0.0
  %2010 = vmatpush1.msra.mxu0 %v1954
  %2011 = vmatprep.subr.mxu0 0.0
  %2012 = vmatpush1.msra.mxu0 %v1953
  %2013 = vmatprep.subr.mxu0 0.0
  %2014 = vmatpush1.msra.mxu0 %v1952
  %2015 = vmatprep.subr.mxu0 0.0
  %2016 = vmatpush1.msra.mxu0 %v1951
  %2017 = vmatprep.subr.mxu0 0.0
  %2018 = vmatpush2.msra.mxu0 0.0
  %2019 = vmatprep.subr.mxu0 0.0
  %2020 = vmatpush2.msra.mxu0 0.0
  %2021 = vmatprep.subr.mxu0 0.0
  %2022 = vmatpush2.msra.mxu0 0.0
  %2023 = vmatprep.subr.mxu0 0.0
  %2024 = vmatpush2.msra.mxu0 0.0
  %2025 = vmatprep.subr.mxu0 0.0
  %2026 = vmatpush2.msra.mxu0 0.0
  %2027 = vmatprep.subr.mxu0 0.0
  %2028 = vmatpush2.msra.mxu0 0.0
  %2029 = vmatprep.subr.mxu0 0.0
  %2030 = vmatpush2.msra.mxu0 0.0
  %2031 = vmatprep.subr.mxu0 0.0
  %2032 = vmatpush2.msra.mxu0 0.0
  %2033 = vmatprep.subr.mxu0 0.0
  %2034 = vmatpush2.msra.mxu0 0.0
  %2035 = vmatprep.subr.mxu0 0.0
  %2036 = vmatpush2.msra.mxu0 0.0
  %2037 = vmatprep.subr.mxu0 0.0
  %2038 = vmatpush2.msra.mxu0 0.0
  %2039 = vmatprep.subr.mxu0 0.0
  %2040 = vmatpush2.msra.mxu0 0.0
  %2041 = vmatprep.subr.mxu0 0.0
  %2042 = vmatpush2.msra.mxu0 0.0
  %2043 = vmatprep.subr.mxu0 0.0
  %2044 = vmatpush2.msra.mxu0 0.0
  %2045 = vmatprep.subr.mxu0 0.0
  %2046 = vmatpush2.msra.mxu0 0.0
  %2047 = vmatprep.subr.mxu0 0.0
  %2048 = vmatpush2.msra.mxu0 0.0
  %2049 = vmatprep.mubr.f32.mxu0 0.0
  %2050 = vmatmul.mubr.f32.gmra.mxu0 %v1971
  %v2051 = vpop.f32.mrf.mxu0
  %v2052 = vadd.f32 %v1968, %v2051
  %v2053 = vpop.f32.mrf.mxu0
  %2054 = vmatprep.mubr.f32.mxu0 0.0
  %2055 = vmatmul.mubr.f32.gmra.mxu0 %v1974
  %v2056 = vpop.f32.mrf.mxu0
  %v2057 = vadd.f32 %v1968, %v2056
  %v2058 = vpop.f32.mrf.mxu0
  %2059 = vmatprep.mubr.f32.mxu0 0.0
  %2060 = vmatmul.mubr.f32.gmra.mxu0 %v1977
  %v2061 = vpop.f32.mrf.mxu0
  %v2062 = vadd.f32 %v1968, %v2061
  %v2063 = vpop.f32.mrf.mxu0
  %2064 = vmatprep.mubr.f32.mxu0 0.0
  %2065 = vmatmul.mubr.f32.gmra.mxu0 %v1980
  %v2066 = vpop.f32.mrf.mxu0
  %v2067 = vadd.f32 %v1968, %v2066
  %v2068 = vpop.f32.mrf.mxu0
  %2069 = vmatprep.mubr.f32.mxu0 0.0
  %2070 = vmatmul.mubr.f32.gmra.mxu0 %v1983
  %v2071 = vpop.f32.mrf.mxu0
  %v2072 = vadd.f32 %v1968, %v2071
  %v2073 = vpop.f32.mrf.mxu0
  %2074 = vdwg.mxu0
  %v2075 = vmax.f32 %v2052, 0.0
  %v2076 = vmax.f32 %v2057, 0.0
  %v2077 = vmax.f32 %v2062, 0.0
  %v2078 = vmax.f32 %v2067, 0.0
  %v2079 = vmax.f32 %v2072, 0.0
  %v2080 = vmul.f32 %v2075, %v50
  %v2081 = vmul.f32 %v2076, %v55
  %v2082 = vmul.f32 %v2077, %v60
  %v2083 = vmul.f32 %v2078, %v65
  %v2084 = vmul.f32 %v2079, %v70
  %2085 = vst.msk [vmem:[#allocation2 + $0x2] sm:$0xff] %vm127, %v2080
  %2086 = vst.msk [vmem:[#allocation2 + $0xa] sm:$0xff] %vm127, %v2081
  %2087 = vst.msk [vmem:[#allocation2 + $0x12] sm:$0xff] %vm127, %v2082
  %2088 = vst.msk [vmem:[#allocation2 + $0x1a] sm:$0xff] %vm127, %v2083
  %2089 = vst.msk [vmem:[#allocation2 + $0x22] sm:$0xf] %vm132, %v2084
  %2095 = vrot.lane.b32.xlu0 %v2080, 16
  %v2096 = vpop.permute.xlu0 %2095
  %2097 = vrot.lane.b32.xlu0 %v2081, 16
  %v2098 = vpop.permute.xlu0 %2097
  %2099 = vrot.lane.b32.xlu0 %v2082, 16
  %v2100 = vpop.permute.xlu0 %2099
  %2101 = vrot.lane.b32.xlu0 %v2083, 16
  %v2102 = vpop.permute.xlu0 %2101
  %2103 = vrot.lane.b32.xlu0 %v2084, 16
  %v2104 = vpop.permute.xlu0 %2103
  %2110 = vst.msk [vmem:[#allocation2 + $0x1] sm:$0xff] %vm149, %v2096
  %2111 = vst.msk [vmem:[#allocation2 + $0x9] sm:$0xff] %vm149, %v2098
  %2112 = vst.msk [vmem:[#allocation2 + $0x11] sm:$0xff] %vm149, %v2100
  %2113 = vst.msk [vmem:[#allocation2 + $0x19] sm:$0xff] %vm149, %v2102
  %2114 = vst.msk [vmem:[#allocation2 + $0x21] sm:$0xf] %vm154, %v2104
  %2115 = vrot.lane.b32.xlu0 %v2080, 32
  %v2116 = vpop.permute.xlu0 %2115
  %2117 = vrot.lane.b32.xlu0 %v2081, 32
  %v2118 = vpop.permute.xlu0 %2117
  %2119 = vrot.lane.b32.xlu0 %v2082, 32
  %v2120 = vpop.permute.xlu0 %2119
  %2121 = vrot.lane.b32.xlu0 %v2083, 32
  %v2122 = vpop.permute.xlu0 %2121
  %2123 = vrot.lane.b32.xlu0 %v2084, 32
  %v2124 = vpop.permute.xlu0 %2123
  %2130 = vst.msk [vmem:[#allocation2] sm:$0xff] %vm171, %v2116
  %2131 = vst.msk [vmem:[#allocation2 + $0x8] sm:$0xff] %vm171, %v2118
  %2132 = vst.msk [vmem:[#allocation2 + $0x10] sm:$0xff] %vm171, %v2120
  %2133 = vst.msk [vmem:[#allocation2 + $0x18] sm:$0xff] %vm171, %v2122
  %2134 = vst.msk [vmem:[#allocation2 + $0x20] sm:$0xf] %vm176, %v2124
  %s2135 = scalar_lea.vmem %s8, 2
  %v2136 = vld [vmem:[%s2135] sm:$0x1]
  %s2137 = scalar_lea.vmem %s9, 2
  %v2138 = vld [vmem:[%s2137] sm:$0x1]
  %v2139 = vld [vmem:[#allocation2 + $0x1] sm:$0xff]
  %v2140 = vld [vmem:[#allocation2 + $0x9] sm:$0xff]
  %v2141 = vld [vmem:[#allocation2 + $0x11] sm:$0xff]
  %v2142 = vld [vmem:[#allocation2 + $0x19] sm:$0xff]
  %v2143 = vld [vmem:[#allocation2 + $0x21] sm:$0xf]
  %v2144 = vsel %vm149, %v2139, 0.0
  %v2145 = vsel %vm149, %v2140, 0.0
  %v2146 = vadd.f32 %v2144, %v2145
  %v2147 = vsel %vm149, %v2141, 0.0
  %v2148 = vadd.f32 %v2146, %v2147
  %v2149 = vsel %vm149, %v2142, 0.0
  %v2150 = vadd.f32 %v2148, %v2149
  %v2151 = vsel %vm154, %v2143, 0.0
  %v2152 = vadd.f32 %v2150, %v2151
  %v2153 = vrot.slane %v2152, 4
  %v2154 = vadd.f32 %v2152, %v2153
  %v2155 = vrot.slane %v2154, 2
  %v2156 = vadd.f32 %v2154, %v2155
  %v2157 = vrot.slane %v2156, 1
  %v2158 = vadd.f32 %v2156, %v2157
  %v2159 = vmul.f32 %v2158, 0.029411765
  %v2160 = vsub.f32 %v2139, %v2159
  %v2161 = vsub.f32 %v2140, %v2159
  %v2162 = vsub.f32 %v2141, %v2159
  %v2163 = vsub.f32 %v2142, %v2159
  %v2164 = vsub.f32 %v2143, %v2159
  %v2165 = vmul.f32 %v50, %v2160
  %v2166 = vmul.f32 %v55, %v2161
  %v2167 = vmul.f32 %v60, %v2162
  %v2168 = vmul.f32 %v65, %v2163
  %v2169 = vmul.f32 %v70, %v2164
  %v2170 = vmul.f32 %v2165, %v2160
  %v2171 = vmul.f32 %v2166, %v2161
  %v2172 = vmul.f32 %v2167, %v2162
  %v2173 = vmul.f32 %v2168, %v2163
  %v2174 = vmul.f32 %v2169, %v2164
  %v2175 = vsel %vm149, %v2170, 0.0
  %v2176 = vsel %vm149, %v2171, 0.0
  %v2177 = vadd.f32 %v2175, %v2176
  %v2178 = vsel %vm149, %v2172, 0.0
  %v2179 = vadd.f32 %v2177, %v2178
  %v2180 = vsel %vm149, %v2173, 0.0
  %v2181 = vadd.f32 %v2179, %v2180
  %v2182 = vsel %vm154, %v2174, 0.0
  %v2183 = vadd.f32 %v2181, %v2182
  %v2184 = vrot.slane %v2183, 4
  %v2185 = vadd.f32 %v2183, %v2184
  %v2186 = vrot.slane %v2185, 2
  %v2187 = vadd.f32 %v2185, %v2186
  %v2188 = vrot.slane %v2187, 1
  %v2189 = vadd.f32 %v2187, %v2188
  %v2190 = vmul.f32 %v2189, 0.029411765
  %v2191 = vadd.f32 %v2190, 1e-05
  %v2192 = vrsqrt.pop %v2191
  %v2193 = vmul.f32 %v2160, %v2192
  %v2194 = vmul.f32 %v2161, %v2192
  %v2195 = vmul.f32 %v2162, %v2192
  %v2196 = vmul.f32 %v2163, %v2192
  %v2197 = vmul.f32 %v2164, %v2192
  %v2199 = vlaneseq
  %v2200 = vshrl.u32 %v2199, 7
  %v2201 = vsub.s32 0, %v2200
  %v2202 = vrot.slane %v2136, %v2201
  %2203 = vrot.lane.b32.xlu0 %v2202, 16
  %v2204 = vpop.permute.xlu0 %2203
  %v2206 = vmul.f32 %v2193, %v2204
  %v2207 = vmul.f32 %v2194, %v2204
  %v2208 = vmul.f32 %v2195, %v2204
  %v2209 = vmul.f32 %v2196, %v2204
  %v2210 = vmul.f32 %v2197, %v2204
  %v2212 = vlaneseq
  %v2213 = vshrl.u32 %v2212, 7
  %v2214 = vsub.s32 0, %v2213
  %v2215 = vrot.slane %v2138, %v2214
  %2216 = vrot.lane.b32.xlu0 %v2215, 16
  %v2217 = vpop.permute.xlu0 %2216
  %v2219 = vadd.f32 %v2206, %v2217
  %v2220 = vadd.f32 %v2207, %v2217
  %v2221 = vadd.f32 %v2208, %v2217
  %v2222 = vadd.f32 %v2209, %v2217
  %v2223 = vadd.f32 %v2210, %v2217
  %v2224 = vmul.f32 %v50, %v2219
  %v2225 = vmul.f32 %v55, %v2220
  %v2226 = vmul.f32 %v60, %v2221
  %v2227 = vmul.f32 %v65, %v2222
  %v2228 = vmul.f32 %v70, %v2223
  %v2229 = vadd.f32 %v2224, %v105
  %v2230 = vadd.f32 %v2225, %v110
  %v2231 = vadd.f32 %v2226, %v115
  %v2232 = vadd.f32 %v2227, %v120
  %v2233 = vadd.f32 %v2228, %v125
  %2239 = vrot.lane.b32.xlu0 %v2229, 112
  %v2240 = vpop.permute.xlu0 %2239
  %2241 = vrot.lane.b32.xlu0 %v2230, 112
  %v2242 = vpop.permute.xlu0 %2241
  %2243 = vrot.lane.b32.xlu0 %v2231, 112
  %v2244 = vpop.permute.xlu0 %2243
  %2245 = vrot.lane.b32.xlu0 %v2232, 112
  %v2246 = vpop.permute.xlu0 %2245
  %2247 = vrot.lane.b32.xlu0 %v2233, 112
  %v2248 = vpop.permute.xlu0 %2247
  %2254 = vst.msk [vmem:[#allocation2 + $0x2] sm:$0xff] %vm127, %v2240
  %2255 = vst.msk [vmem:[#allocation2 + $0xa] sm:$0xff] %vm127, %v2242
  %2256 = vst.msk [vmem:[#allocation2 + $0x12] sm:$0xff] %vm127, %v2244
  %2257 = vst.msk [vmem:[#allocation2 + $0x1a] sm:$0xff] %vm127, %v2246
  %2258 = vst.msk [vmem:[#allocation2 + $0x22] sm:$0xf] %vm132, %v2248
  %2259 = vst.msk [vmem:[#allocation2 + $0x1] sm:$0xff] %vm149, %v2229
  %2260 = vst.msk [vmem:[#allocation2 + $0x9] sm:$0xff] %vm149, %v2230
  %2261 = vst.msk [vmem:[#allocation2 + $0x11] sm:$0xff] %vm149, %v2231
  %2262 = vst.msk [vmem:[#allocation2 + $0x19] sm:$0xff] %vm149, %v2232
  %2263 = vst.msk [vmem:[#allocation2 + $0x21] sm:$0xf] %vm154, %v2233
  %2264 = vrot.lane.b32.xlu0 %v2229, 16
  %v2265 = vpop.permute.xlu0 %2264
  %2266 = vrot.lane.b32.xlu0 %v2230, 16
  %v2267 = vpop.permute.xlu0 %2266
  %2268 = vrot.lane.b32.xlu0 %v2231, 16
  %v2269 = vpop.permute.xlu0 %2268
  %2270 = vrot.lane.b32.xlu0 %v2232, 16
  %v2271 = vpop.permute.xlu0 %2270
  %2272 = vrot.lane.b32.xlu0 %v2233, 16
  %v2273 = vpop.permute.xlu0 %2272
  %2279 = vst.msk [vmem:[#allocation2] sm:$0xff] %vm171, %v2265
  %2280 = vst.msk [vmem:[#allocation2 + $0x8] sm:$0xff] %vm171, %v2267
  %2281 = vst.msk [vmem:[#allocation2 + $0x10] sm:$0xff] %vm171, %v2269
  %2282 = vst.msk [vmem:[#allocation2 + $0x18] sm:$0xff] %vm171, %v2271
  %2283 = vst.msk [vmem:[#allocation2 + $0x20] sm:$0xf] %vm176, %v2273
  %s2284 = scalar_lea.vmem %s4, 384
  %v2285 = vld [vmem:[%s2284] sm:$0xff]
  %v2286 = vld [vmem:[%s2284 + $0x8] sm:$0xff]
  %v2287 = vld [vmem:[%s2284 + $0x10] sm:$0xff]
  %v2288 = vld [vmem:[%s2284 + $0x18] sm:$0xff]
  %v2289 = vld [vmem:[%s2284 + $0x20] sm:$0xff]
  %v2290 = vld [vmem:[%s2284 + $0x28] sm:$0xff]
  %s2291 = scalar_lea.vmem %s5, 8
  %v2292 = vld [vmem:[%s2291] sm:$0x1]
  %v2293 = vld [vmem:[#allocation2 + $0x1] sm:$0xff]
  %v2294 = vld [vmem:[#allocation2 + $0x9] sm:$0xff]
  %v2295 = vld [vmem:[#allocation2 + $0x11] sm:$0xff]
  %v2296 = vld [vmem:[#allocation2 + $0x19] sm:$0xff]
  %v2297 = vld [vmem:[#allocation2 + $0x21] sm:$0xf]
  %v2299 = vlaneseq
  %v2300 = vshrl.u32 %v2299, 7
  %v2301 = vsub.s32 0, %v2300
  %v2302 = vrot.slane %v2292, %v2301
  %v2305 = vsel %vm35, %v2293, 0
  %v2308 = vsel %vm35, %v2294, 0
  %v2311 = vsel %vm35, %v2295, 0
  %v2314 = vsel %vm35, %v2296, 0
  %v2317 = vsel %vm35, %v2297, 0
  %2319 = vmatprep.subr.mxu0 0.0
  %2320 = vmatpush1.msra.mxu0 0.0
  %2321 = vmatprep.subr.mxu0 0.0
  %2322 = vmatpush1.msra.mxu0 0.0
  %2323 = vmatprep.subr.mxu0 0.0
  %2324 = vmatpush1.msra.mxu0 0.0
  %2325 = vmatprep.subr.mxu0 0.0
  %2326 = vmatpush1.msra.mxu0 0.0
  %2327 = vmatprep.subr.mxu0 0.0
  %2328 = vmatpush1.msra.mxu0 0.0
  %2329 = vmatprep.subr.mxu0 0.0
  %2330 = vmatpush1.msra.mxu0 0.0
  %2331 = vmatprep.subr.mxu0 0.0
  %2332 = vmatpush1.msra.mxu0 0.0
  %2333 = vmatprep.subr.mxu0 0.0
  %2334 = vmatpush1.msra.mxu0 0.0
  %2335 = vmatprep.subr.mxu0 0.0
  %2336 = vmatpush1.msra.mxu0 0.0
  %2337 = vmatprep.subr.mxu0 0.0
  %2338 = vmatpush1.msra.mxu0 0.0
  %2339 = vmatprep.subr.mxu0 0.0
  %2340 = vmatpush1.msra.mxu0 %v2290
  %2341 = vmatprep.subr.mxu0 0.0
  %2342 = vmatpush1.msra.mxu0 %v2289
  %2343 = vmatprep.subr.mxu0 0.0
  %2344 = vmatpush1.msra.mxu0 %v2288
  %2345 = vmatprep.subr.mxu0 0.0
  %2346 = vmatpush1.msra.mxu0 %v2287
  %2347 = vmatprep.subr.mxu0 0.0
  %2348 = vmatpush1.msra.mxu0 %v2286
  %2349 = vmatprep.subr.mxu0 0.0
  %2350 = vmatpush1.msra.mxu0 %v2285
  %2351 = vmatprep.subr.mxu0 0.0
  %2352 = vmatpush2.msra.mxu0 0.0
  %2353 = vmatprep.subr.mxu0 0.0
  %2354 = vmatpush2.msra.mxu0 0.0
  %2355 = vmatprep.subr.mxu0 0.0
  %2356 = vmatpush2.msra.mxu0 0.0
  %2357 = vmatprep.subr.mxu0 0.0
  %2358 = vmatpush2.msra.mxu0 0.0
  %2359 = vmatprep.subr.mxu0 0.0
  %2360 = vmatpush2.msra.mxu0 0.0
  %2361 = vmatprep.subr.mxu0 0.0
  %2362 = vmatpush2.msra.mxu0 0.0
  %2363 = vmatprep.subr.mxu0 0.0
  %2364 = vmatpush2.msra.mxu0 0.0
  %2365 = vmatprep.subr.mxu0 0.0
  %2366 = vmatpush2.msra.mxu0 0.0
  %2367 = vmatprep.subr.mxu0 0.0
  %2368 = vmatpush2.msra.mxu0 0.0
  %2369 = vmatprep.subr.mxu0 0.0
  %2370 = vmatpush2.msra.mxu0 0.0
  %2371 = vmatprep.subr.mxu0 0.0
  %2372 = vmatpush2.msra.mxu0 0.0
  %2373 = vmatprep.subr.mxu0 0.0
  %2374 = vmatpush2.msra.mxu0 0.0
  %2375 = vmatprep.subr.mxu0 0.0
  %2376 = vmatpush2.msra.mxu0 0.0
  %2377 = vmatprep.subr.mxu0 0.0
  %2378 = vmatpush2.msra.mxu0 0.0
  %2379 = vmatprep.subr.mxu0 0.0
  %2380 = vmatpush2.msra.mxu0 0.0
  %2381 = vmatprep.subr.mxu0 0.0
  %2382 = vmatpush2.msra.mxu0 0.0
  %2383 = vmatprep.mubr.f32.mxu0 0.0
  %2384 = vmatmul.mubr.f32.gmra.mxu0 %v2305
  %v2385 = vpop.f32.mrf.mxu0
  %v2386 = vadd.f32 %v2302, %v2385
  %v2387 = vpop.f32.mrf.mxu0
  %2388 = vmatprep.mubr.f32.mxu0 0.0
  %2389 = vmatmul.mubr.f32.gmra.mxu0 %v2308
  %v2390 = vpop.f32.mrf.mxu0
  %v2391 = vadd.f32 %v2302, %v2390
  %v2392 = vpop.f32.mrf.mxu0
  %2393 = vmatprep.mubr.f32.mxu0 0.0
  %2394 = vmatmul.mubr.f32.gmra.mxu0 %v2311
  %v2395 = vpop.f32.mrf.mxu0
  %v2396 = vadd.f32 %v2302, %v2395
  %v2397 = vpop.f32.mrf.mxu0
  %2398 = vmatprep.mubr.f32.mxu0 0.0
  %2399 = vmatmul.mubr.f32.gmra.mxu0 %v2314
  %v2400 = vpop.f32.mrf.mxu0
  %v2401 = vadd.f32 %v2302, %v2400
  %v2402 = vpop.f32.mrf.mxu0
  %2403 = vmatprep.mubr.f32.mxu0 0.0
  %2404 = vmatmul.mubr.f32.gmra.mxu0 %v2317
  %v2405 = vpop.f32.mrf.mxu0
  %v2406 = vadd.f32 %v2302, %v2405
  %v2407 = vpop.f32.mrf.mxu0
  %2408 = vdwg.mxu0
  %v2409 = vmax.f32 %v2386, 0.0
  %v2410 = vmax.f32 %v2391, 0.0
  %v2411 = vmax.f32 %v2396, 0.0
  %v2412 = vmax.f32 %v2401, 0.0
  %v2413 = vmax.f32 %v2406, 0.0
  %v2414 = vmul.f32 %v2409, %v50
  %v2415 = vmul.f32 %v2410, %v55
  %v2416 = vmul.f32 %v2411, %v60
  %v2417 = vmul.f32 %v2412, %v65
  %v2418 = vmul.f32 %v2413, %v70
  %2419 = vst.msk [vmem:[#allocation2 + $0x2] sm:$0xff] %vm127, %v2414
  %2420 = vst.msk [vmem:[#allocation2 + $0xa] sm:$0xff] %vm127, %v2415
  %2421 = vst.msk [vmem:[#allocation2 + $0x12] sm:$0xff] %vm127, %v2416
  %2422 = vst.msk [vmem:[#allocation2 + $0x1a] sm:$0xff] %vm127, %v2417
  %2423 = vst.msk [vmem:[#allocation2 + $0x22] sm:$0xf] %vm132, %v2418
  %2429 = vrot.lane.b32.xlu0 %v2414, 16
  %v2430 = vpop.permute.xlu0 %2429
  %2431 = vrot.lane.b32.xlu0 %v2415, 16
  %v2432 = vpop.permute.xlu0 %2431
  %2433 = vrot.lane.b32.xlu0 %v2416, 16
  %v2434 = vpop.permute.xlu0 %2433
  %2435 = vrot.lane.b32.xlu0 %v2417, 16
  %v2436 = vpop.permute.xlu0 %2435
  %2437 = vrot.lane.b32.xlu0 %v2418, 16
  %v2438 = vpop.permute.xlu0 %2437
  %2444 = vst.msk [vmem:[#allocation2 + $0x1] sm:$0xff] %vm149, %v2430
  %2445 = vst.msk [vmem:[#allocation2 + $0x9] sm:$0xff] %vm149, %v2432
  %2446 = vst.msk [vmem:[#allocation2 + $0x11] sm:$0xff] %vm149, %v2434
  %2447 = vst.msk [vmem:[#allocation2 + $0x19] sm:$0xff] %vm149, %v2436
  %2448 = vst.msk [vmem:[#allocation2 + $0x21] sm:$0xf] %vm154, %v2438
  %2449 = vrot.lane.b32.xlu0 %v2414, 32
  %v2450 = vpop.permute.xlu0 %2449
  %2451 = vrot.lane.b32.xlu0 %v2415, 32
  %v2452 = vpop.permute.xlu0 %2451
  %2453 = vrot.lane.b32.xlu0 %v2416, 32
  %v2454 = vpop.permute.xlu0 %2453
  %2455 = vrot.lane.b32.xlu0 %v2417, 32
  %v2456 = vpop.permute.xlu0 %2455
  %2457 = vrot.lane.b32.xlu0 %v2418, 32
  %v2458 = vpop.permute.xlu0 %2457
  %2464 = vst.msk [vmem:[#allocation2] sm:$0xff] %vm171, %v2450
  %2465 = vst.msk [vmem:[#allocation2 + $0x8] sm:$0xff] %vm171, %v2452
  %2466 = vst.msk [vmem:[#allocation2 + $0x10] sm:$0xff] %vm171, %v2454
  %2467 = vst.msk [vmem:[#allocation2 + $0x18] sm:$0xff] %vm171, %v2456
  %2468 = vst.msk [vmem:[#allocation2 + $0x20] sm:$0xf] %vm176, %v2458
  %s2469 = scalar_lea.vmem %s4, 432
  %v2470 = vld [vmem:[%s2469] sm:$0xff]
  %v2471 = vld [vmem:[%s2469 + $0x8] sm:$0xff]
  %v2472 = vld [vmem:[%s2469 + $0x10] sm:$0xff]
  %v2473 = vld [vmem:[%s2469 + $0x18] sm:$0xff]
  %v2474 = vld [vmem:[%s2469 + $0x20] sm:$0xff]
  %v2475 = vld [vmem:[%s2469 + $0x28] sm:$0xff]
  %s2476 = scalar_lea.vmem %s5, 9
  %v2477 = vld [vmem:[%s2476] sm:$0x1]
  %v2478 = vld [vmem:[#allocation2 + $0x1] sm:$0xff]
  %v2479 = vld [vmem:[#allocation2 + $0x9] sm:$0xff]
  %v2480 = vld [vmem:[#allocation2 + $0x11] sm:$0xff]
  %v2481 = vld [vmem:[#allocation2 + $0x19] sm:$0xff]
  %v2482 = vld [vmem:[#allocation2 + $0x21] sm:$0xf]
  %v2484 = vlaneseq
  %v2485 = vshrl.u32 %v2484, 7
  %v2486 = vsub.s32 0, %v2485
  %v2487 = vrot.slane %v2477, %v2486
  %v2490 = vsel %vm35, %v2478, 0
  %v2493 = vsel %vm35, %v2479, 0
  %v2496 = vsel %vm35, %v2480, 0
  %v2499 = vsel %vm35, %v2481, 0
  %v2502 = vsel %vm35, %v2482, 0
  %2504 = vmatprep.subr.mxu0 0.0
  %2505 = vmatpush1.msra.mxu0 0.0
  %2506 = vmatprep.subr.mxu0 0.0
  %2507 = vmatpush1.msra.mxu0 0.0
  %2508 = vmatprep.subr.mxu0 0.0
  %2509 = vmatpush1.msra.mxu0 0.0
  %2510 = vmatprep.subr.mxu0 0.0
  %2511 = vmatpush1.msra.mxu0 0.0
  %2512 = vmatprep.subr.mxu0 0.0
  %2513 = vmatpush1.msra.mxu0 0.0
  %2514 = vmatprep.subr.mxu0 0.0
  %2515 = vmatpush1.msra.mxu0 0.0
  %2516 = vmatprep.subr.mxu0 0.0
  %2517 = vmatpush1.msra.mxu0 0.0
  %2518 = vmatprep.subr.mxu0 0.0
  %2519 = vmatpush1.msra.mxu0 0.0
  %2520 = vmatprep.subr.mxu0 0.0
  %2521 = vmatpush1.msra.mxu0 0.0
  %2522 = vmatprep.subr.mxu0 0.0
  %2523 = vmatpush1.msra.mxu0 0.0
  %2524 = vmatprep.subr.mxu0 0.0
  %2525 = vmatpush1.msra.mxu0 %v2475
  %2526 = vmatprep.subr.mxu0 0.0
  %2527 = vmatpush1.msra.mxu0 %v2474
  %2528 = vmatprep.subr.mxu0 0.0
  %2529 = vmatpush1.msra.mxu0 %v2473
  %2530 = vmatprep.subr.mxu0 0.0
  %2531 = vmatpush1.msra.mxu0 %v2472
  %2532 = vmatprep.subr.mxu0 0.0
  %2533 = vmatpush1.msra.mxu0 %v2471
  %2534 = vmatprep.subr.mxu0 0.0
  %2535 = vmatpush1.msra.mxu0 %v2470
  %2536 = vmatprep.subr.mxu0 0.0
  %2537 = vmatpush2.msra.mxu0 0.0
  %2538 = vmatprep.subr.mxu0 0.0
  %2539 = vmatpush2.msra.mxu0 0.0
  %2540 = vmatprep.subr.mxu0 0.0
  %2541 = vmatpush2.msra.mxu0 0.0
  %2542 = vmatprep.subr.mxu0 0.0
  %2543 = vmatpush2.msra.mxu0 0.0
  %2544 = vmatprep.subr.mxu0 0.0
  %2545 = vmatpush2.msra.mxu0 0.0
  %2546 = vmatprep.subr.mxu0 0.0
  %2547 = vmatpush2.msra.mxu0 0.0
  %2548 = vmatprep.subr.mxu0 0.0
  %2549 = vmatpush2.msra.mxu0 0.0
  %2550 = vmatprep.subr.mxu0 0.0
  %2551 = vmatpush2.msra.mxu0 0.0
  %2552 = vmatprep.subr.mxu0 0.0
  %2553 = vmatpush2.msra.mxu0 0.0
  %2554 = vmatprep.subr.mxu0 0.0
  %2555 = vmatpush2.msra.mxu0 0.0
  %2556 = vmatprep.subr.mxu0 0.0
  %2557 = vmatpush2.msra.mxu0 0.0
  %2558 = vmatprep.subr.mxu0 0.0
  %2559 = vmatpush2.msra.mxu0 0.0
  %2560 = vmatprep.subr.mxu0 0.0
  %2561 = vmatpush2.msra.mxu0 0.0
  %2562 = vmatprep.subr.mxu0 0.0
  %2563 = vmatpush2.msra.mxu0 0.0
  %2564 = vmatprep.subr.mxu0 0.0
  %2565 = vmatpush2.msra.mxu0 0.0
  %2566 = vmatprep.subr.mxu0 0.0
  %2567 = vmatpush2.msra.mxu0 0.0
  %2568 = vmatprep.mubr.f32.mxu0 0.0
  %2569 = vmatmul.mubr.f32.gmra.mxu0 %v2490
  %v2570 = vpop.f32.mrf.mxu0
  %v2571 = vadd.f32 %v2487, %v2570
  %v2572 = vpop.f32.mrf.mxu0
  %2573 = vmatprep.mubr.f32.mxu0 0.0
  %2574 = vmatmul.mubr.f32.gmra.mxu0 %v2493
  %v2575 = vpop.f32.mrf.mxu0
  %v2576 = vadd.f32 %v2487, %v2575
  %v2577 = vpop.f32.mrf.mxu0
  %2578 = vmatprep.mubr.f32.mxu0 0.0
  %2579 = vmatmul.mubr.f32.gmra.mxu0 %v2496
  %v2580 = vpop.f32.mrf.mxu0
  %v2581 = vadd.f32 %v2487, %v2580
  %v2582 = vpop.f32.mrf.mxu0
  %2583 = vmatprep.mubr.f32.mxu0 0.0
  %2584 = vmatmul.mubr.f32.gmra.mxu0 %v2499
  %v2585 = vpop.f32.mrf.mxu0
  %v2586 = vadd.f32 %v2487, %v2585
  %v2587 = vpop.f32.mrf.mxu0
  %2588 = vmatprep.mubr.f32.mxu0 0.0
  %2589 = vmatmul.mubr.f32.gmra.mxu0 %v2502
  %v2590 = vpop.f32.mrf.mxu0
  %v2591 = vadd.f32 %v2487, %v2590
  %v2592 = vpop.f32.mrf.mxu0
  %2593 = vdwg.mxu0
  %v2594 = vmax.f32 %v2571, 0.0
  %v2595 = vmax.f32 %v2576, 0.0
  %v2596 = vmax.f32 %v2581, 0.0
  %v2597 = vmax.f32 %v2586, 0.0
  %v2598 = vmax.f32 %v2591, 0.0
  %v2599 = vmul.f32 %v2594, %v50
  %v2600 = vmul.f32 %v2595, %v55
  %v2601 = vmul.f32 %v2596, %v60
  %v2602 = vmul.f32 %v2597, %v65
  %v2603 = vmul.f32 %v2598, %v70
  %2604 = vst.msk [vmem:[#allocation2 + $0x2] sm:$0xff] %vm127, %v2599
  %2605 = vst.msk [vmem:[#allocation2 + $0xa] sm:$0xff] %vm127, %v2600
  %2606 = vst.msk [vmem:[#allocation2 + $0x12] sm:$0xff] %vm127, %v2601
  %2607 = vst.msk [vmem:[#allocation2 + $0x1a] sm:$0xff] %vm127, %v2602
  %2608 = vst.msk [vmem:[#allocation2 + $0x22] sm:$0xf] %vm132, %v2603
  %2614 = vrot.lane.b32.xlu0 %v2599, 16
  %v2615 = vpop.permute.xlu0 %2614
  %2616 = vrot.lane.b32.xlu0 %v2600, 16
  %v2617 = vpop.permute.xlu0 %2616
  %2618 = vrot.lane.b32.xlu0 %v2601, 16
  %v2619 = vpop.permute.xlu0 %2618
  %2620 = vrot.lane.b32.xlu0 %v2602, 16
  %v2621 = vpop.permute.xlu0 %2620
  %2622 = vrot.lane.b32.xlu0 %v2603, 16
  %v2623 = vpop.permute.xlu0 %2622
  %2629 = vst.msk [vmem:[#allocation2 + $0x1] sm:$0xff] %vm149, %v2615
  %2630 = vst.msk [vmem:[#allocation2 + $0x9] sm:$0xff] %vm149, %v2617
  %2631 = vst.msk [vmem:[#allocation2 + $0x11] sm:$0xff] %vm149, %v2619
  %2632 = vst.msk [vmem:[#allocation2 + $0x19] sm:$0xff] %vm149, %v2621
  %2633 = vst.msk [vmem:[#allocation2 + $0x21] sm:$0xf] %vm154, %v2623
  %2634 = vrot.lane.b32.xlu0 %v2599, 32
  %v2635 = vpop.permute.xlu0 %2634
  %2636 = vrot.lane.b32.xlu0 %v2600, 32
  %v2637 = vpop.permute.xlu0 %2636
  %2638 = vrot.lane.b32.xlu0 %v2601, 32
  %v2639 = vpop.permute.xlu0 %2638
  %2640 = vrot.lane.b32.xlu0 %v2602, 32
  %v2641 = vpop.permute.xlu0 %2640
  %2642 = vrot.lane.b32.xlu0 %v2603, 32
  %v2643 = vpop.permute.xlu0 %2642
  %2649 = vst.msk [vmem:[#allocation2] sm:$0xff] %vm171, %v2635
  %2650 = vst.msk [vmem:[#allocation2 + $0x8] sm:$0xff] %vm171, %v2637
  %2651 = vst.msk [vmem:[#allocation2 + $0x10] sm:$0xff] %vm171, %v2639
  %2652 = vst.msk [vmem:[#allocation2 + $0x18] sm:$0xff] %vm171, %v2641
  %2653 = vst.msk [vmem:[#allocation2 + $0x20] sm:$0xf] %vm176, %v2643
  %v2654 = vld [vmem:[#allocation2 + $0x1] sm:$0xff]
  %v2655 = vld [vmem:[#allocation2 + $0x9] sm:$0xff]
  %v2656 = vld [vmem:[#allocation2 + $0x11] sm:$0xff]
  %v2657 = vld [vmem:[#allocation2 + $0x19] sm:$0xff]
  %v2658 = vld [vmem:[#allocation2 + $0x21] sm:$0xf]
  %v2659 = vld [vmem:[%s6] sm:$0xff]
  %v2660 = vld [vmem:[%s6 + $0x8] sm:$0xff]
  %v2661 = vld [vmem:[%s6 + $0x10] sm:$0xff]
  %v2662 = vld [vmem:[%s6 + $0x18] sm:$0xff]
  %v2663 = vld [vmem:[%s6 + $0x20] sm:$0xff]
  %v2664 = vld [vmem:[%s6 + $0x28] sm:$0xff]
  %v2665 = vld [vmem:[%s7] sm:$0x1]
  %v2667 = vlaneseq
  %v2668 = vshrl.u32 %v2667, 7
  %v2669 = vsub.s32 0, %v2668
  %v2670 = vrot.slane %v2665, %v2669
  %v2673 = vsel %vm35, %v2654, 0
  %v2676 = vsel %vm35, %v2655, 0
  %v2679 = vsel %vm35, %v2656, 0
  %v2682 = vsel %vm35, %v2657, 0
  %v2685 = vsel %vm35, %v2658, 0
  %2687 = vmatprep.subr.mxu0 0.0
  %2688 = vmatpush1.msra.mxu0 0.0
  %2689 = vmatprep.subr.mxu0 0.0
  %2690 = vmatpush1.msra.mxu0 0.0
  %2691 = vmatprep.subr.mxu0 0.0
  %2692 = vmatpush1.msra.mxu0 0.0
  %2693 = vmatprep.subr.mxu0 0.0
  %2694 = vmatpush1.msra.mxu0 0.0
  %2695 = vmatprep.subr.mxu0 0.0
  %2696 = vmatpush1.msra.mxu0 0.0
  %2697 = vmatprep.subr.mxu0 0.0
  %2698 = vmatpush1.msra.mxu0 0.0
  %2699 = vmatprep.subr.mxu0 0.0
  %2700 = vmatpush1.msra.mxu0 0.0
  %2701 = vmatprep.subr.mxu0 0.0
  %2702 = vmatpush1.msra.mxu0 0.0
  %2703 = vmatprep.subr.mxu0 0.0
  %2704 = vmatpush1.msra.mxu0 0.0
  %2705 = vmatprep.subr.mxu0 0.0
  %2706 = vmatpush1.msra.mxu0 0.0
  %2707 = vmatprep.subr.mxu0 0.0
  %2708 = vmatpush1.msra.mxu0 %v2664
  %2709 = vmatprep.subr.mxu0 0.0
  %2710 = vmatpush1.msra.mxu0 %v2663
  %2711 = vmatprep.subr.mxu0 0.0
  %2712 = vmatpush1.msra.mxu0 %v2662
  %2713 = vmatprep.subr.mxu0 0.0
  %2714 = vmatpush1.msra.mxu0 %v2661
  %2715 = vmatprep.subr.mxu0 0.0
  %2716 = vmatpush1.msra.mxu0 %v2660
  %2717 = vmatprep.subr.mxu0 0.0
  %2718 = vmatpush1.msra.mxu0 %v2659
  %2719 = vmatprep.subr.mxu0 0.0
  %2720 = vmatpush2.msra.mxu0 0.0
  %2721 = vmatprep.subr.mxu0 0.0
  %2722 = vmatpush2.msra.mxu0 0.0
  %2723 = vmatprep.subr.mxu0 0.0
  %2724 = vmatpush2.msra.mxu0 0.0
  %2725 = vmatprep.subr.mxu0 0.0
  %2726 = vmatpush2.msra.mxu0 0.0
  %2727 = vmatprep.subr.mxu0 0.0
  %2728 = vmatpush2.msra.mxu0 0.0
  %2729 = vmatprep.subr.mxu0 0.0
  %2730 = vmatpush2.msra.mxu0 0.0
  %2731 = vmatprep.subr.mxu0 0.0
  %2732 = vmatpush2.msra.mxu0 0.0
  %2733 = vmatprep.subr.mxu0 0.0
  %2734 = vmatpush2.msra.mxu0 0.0
  %2735 = vmatprep.subr.mxu0 0.0
  %2736 = vmatpush2.msra.mxu0 0.0
  %2737 = vmatprep.subr.mxu0 0.0
  %2738 = vmatpush2.msra.mxu0 0.0
  %2739 = vmatprep.subr.mxu0 0.0
  %2740 = vmatpush2.msra.mxu0 0.0
  %2741 = vmatprep.subr.mxu0 0.0
  %2742 = vmatpush2.msra.mxu0 0.0
  %2743 = vmatprep.subr.mxu0 0.0
  %2744 = vmatpush2.msra.mxu0 0.0
  %2745 = vmatprep.subr.mxu0 0.0
  %2746 = vmatpush2.msra.mxu0 0.0
  %2747 = vmatprep.subr.mxu0 0.0
  %2748 = vmatpush2.msra.mxu0 0.0
  %2749 = vmatprep.subr.mxu0 0.0
  %2750 = vmatpush2.msra.mxu0 0.0
  %2751 = vmatprep.mubr.f32.mxu0 0.0
  %2752 = vmatmul.mubr.f32.gmra.mxu0 %v2673
  %v2753 = vpop.f32.mrf.mxu0
  %v2754 = vadd.f32 %v2670, %v2753
  %v2755 = vpop.f32.mrf.mxu0
  %2756 = vmatprep.mubr.f32.mxu0 0.0
  %2757 = vmatmul.mubr.f32.gmra.mxu0 %v2676
  %v2758 = vpop.f32.mrf.mxu0
  %v2759 = vadd.f32 %v2670, %v2758
  %v2760 = vpop.f32.mrf.mxu0
  %2761 = vmatprep.mubr.f32.mxu0 0.0
  %2762 = vmatmul.mubr.f32.gmra.mxu0 %v2679
  %v2763 = vpop.f32.mrf.mxu0
  %v2764 = vadd.f32 %v2670, %v2763
  %v2765 = vpop.f32.mrf.mxu0
  %2766 = vmatprep.mubr.f32.mxu0 0.0
  %2767 = vmatmul.mubr.f32.gmra.mxu0 %v2682
  %v2768 = vpop.f32.mrf.mxu0
  %v2769 = vadd.f32 %v2670, %v2768
  %v2770 = vpop.f32.mrf.mxu0
  %2771 = vmatprep.mubr.f32.mxu0 0.0
  %2772 = vmatmul.mubr.f32.gmra.mxu0 %v2685
  %v2773 = vpop.f32.mrf.mxu0
  %v2774 = vadd.f32 %v2670, %v2773
  %v2775 = vpop.f32.mrf.mxu0
  %2776 = vdwg.mxu0
  %v2777 = vmax.f32 %v2754, 0.0
  %v2778 = vmax.f32 %v2759, 0.0
  %v2779 = vmax.f32 %v2764, 0.0
  %v2780 = vmax.f32 %v2769, 0.0
  %v2781 = vmax.f32 %v2774, 0.0
  %vm2782 = vcmask 15360
  %2783 = vst.msk [vmem:[%s10] sm:$0xff] %vm2782, %v2777
  %2784 = vst.msk [vmem:[%s10 + $0x8] sm:$0xff] %vm2782, %v2778
  %2785 = vst.msk [vmem:[%s10 + $0x10] sm:$0xff] %vm2782, %v2779
  %2786 = vst.msk [vmem:[%s10 + $0x18] sm:$0xff] %vm2782, %v2780
  %vm2787 = vcmask 11264
  %2788 = vst.msk [vmem:[%s10 + $0x20] sm:$0xf] %vm2787, %v2781
  // Predicated region
  $region42: #{pointsolver_forward.1} parent=0 // pred_check
    _
  $region43: #{pointsolver_forward.1} parent=0 // pred_check_branch
    %2790 = sbr.rel (0) target = $region45
  $region44: #{pointsolver_forward.1} parent=0 // pred_region
    _
  $region45: #{pointsolver_forward.1} parent=0 // pred_fallthru
    _
  // Predicated region
  $region46: #{pointsolver_forward.1} parent=0 // pred_check
    _
  $region47: #{pointsolver_forward.1} parent=0 // pred_check_branch
    %2792 = sbr.rel (0) target = $region49
  $region48: #{pointsolver_forward.1} parent=0 // pred_region
    _
  $region49: #{pointsolver_forward.1} parent=0 // pred_fallthru
    _

</llo_original>
